<compile_context>
chip_gen: v7x
topology: tpu7x:2x2x1
jax: 0.10.0
libtpu: 0.0.40
codegen_flags: <defaults>
</compile_context>

<pallas_src>
import functools

import jax
import jax.numpy as jnp
from jax import lax
from jax.experimental import pallas as pl
from jax.experimental.pallas import tpu as pltpu

_VMEM_LIMIT_BYTES = 48 * 1024 * 1024   # safe on v5e/v6e (128 MiB phys) and v7x (64 MiB)
_ROW_BLOCK_BUDGET = 12 * 1024 * 1024   # per-step row-tile working-set target
_FULL_WEIGHT_BYTES = 6 * 1024 * 1024   # keep whole (K, Cout) weight resident below this


# ---------------------------------------------------------------------------
# Kernels
# ---------------------------------------------------------------------------
def _mm_kernel(x_ref, w_ref, b_ref, o_ref, *, relu):
    # y = x @ w + b ; optional ReLU.  BN scale is pre-folded into w.
    acc = jnp.dot(x_ref[...], w_ref[...], preferred_element_type=jnp.float32)
    y = acc + b_ref[...]
    if relu:
        y = jnp.maximum(y, 0.0)
    o_ref[...] = y.astype(o_ref.dtype)


def _mm_residual_relu_kernel(x_ref, w_ref, b_ref, r_ref, o_ref):
    # y = relu(x @ w + b + residual)   (identity shortcut fused)
    acc = jnp.dot(x_ref[...], w_ref[...], preferred_element_type=jnp.float32)
    y = acc + b_ref[...] + r_ref[...].astype(jnp.float32)
    o_ref[...] = jnp.maximum(y, 0.0).astype(o_ref.dtype)


def _mm_dual_relu_kernel(x_ref, w_ref, xs_ref, ws_ref, b_ref, o_ref):
    # y = relu(x @ w + xs @ ws + b)    (projection shortcut fused)
    acc = jnp.dot(x_ref[...], w_ref[...], preferred_element_type=jnp.float32)
    acc = acc + jnp.dot(xs_ref[...], ws_ref[...], preferred_element_type=jnp.float32)
    o_ref[...] = jnp.maximum(acc + b_ref[...], 0.0).astype(o_ref.dtype)


def _conv3x3_kernel(x_ref, w_ref, b_ref, o_ref, *, stride, hout, wout):
    # x_ref: (1, H+2, W+2, Cin) padded image tile (read from HBM once)
    # w_ref: (9*Cin, Cout) scale-folded weights, b_ref: (1, Cout) f32 bias
    # o_ref: (1, hout*wout, Cout)
    cin = x_ref.shape[3]
    taps = []
    for dy in range(3):
        for dx in range(3):
            if stride == 1:
                t = x_ref[0, pl.ds(dy, hout), pl.ds(dx, wout), :]
            else:
                t = x_ref[0, pl.ds(dy, hout, stride), pl.ds(dx, wout, stride), :]
            taps.append(t.reshape(hout * wout, cin))
    xcol = jnp.concatenate(taps, axis=-1)                    # (HW, 9*Cin)
    acc = jnp.dot(xcol, w_ref[...], preferred_element_type=jnp.float32)
    o_ref[0] = jnp.maximum(acc + b_ref[...], 0.0).astype(o_ref.dtype)


# ---------------------------------------------------------------------------
# Wrappers around pallas_call
# ---------------------------------------------------------------------------
def _pick_tm(M, bytes_per_row):
    """Largest row tile (multiple of 8 or the full dim) under the VMEM budget."""
    budget_rows = max(8, _ROW_BLOCK_BUDGET // max(int(bytes_per_row), 1))
    target = min(M, budget_rows)
    if M >= 1024:                         # >=2 row blocks so work can shard across
        target = min(target, -(-M // 2))  # TensorCores (v7x megacore)
    if target >= M:
        return M
    return max((target // 8) * 8, 8)


def _fused_matmul(x, w, bias, *, relu, residual=None, xs=None, ws=None,
                  compute_dtype=jnp.bfloat16):
    """y = x @ w [+ xs @ ws] + bias [+ residual]; optional ReLU.

    BN scale is expected to be pre-folded into w / ws. bias is f32 (Cout,).
    x: (M, K), w: (K, Cout), residual: (M, Cout), xs: (M, Ks), ws: (Ks, Cout).
    """
    M, K = x.shape
    Cout = w.shape[1]
    esz = jnp.dtype(compute_dtype).itemsize

    # Keep whole (K, Cout) weight resident when it fits -> no weight re-DMA.
    if K * Cout * esz <= _FULL_WEIGHT_BYTES:
        tn = Cout
    else:
        tn = 256
    n_blocks = pl.cdiv(Cout, tn)

    bytes_per_row = 2 * K * esz + 2 * tn * esz + tn * 4       # x, out (dbl buf), f32 acc
    if residual is not None:
        bytes_per_row += 2 * tn * esz
    if xs is not None:
        bytes_per_row += 2 * xs.shape[1] * esz
    tm = _pick_tm(M, bytes_per_row)
    m_blocks = pl.cdiv(M, tm)

    bias2 = bias.reshape(1, Cout).astype(jnp.float32)

    in_specs = [
        pl.BlockSpec((tm, K), lambda i, j: (i, 0)),
        pl.BlockSpec((K, tn), lambda i, j: (0, j)),
    ]
    args = [x.astype(compute_dtype), w.astype(compute_dtype)]
    if xs is not None:
        Ks = xs.shape[1]
        in_specs += [pl.BlockSpec((tm, Ks), lambda i, j: (i, 0)),
                     pl.BlockSpec((Ks, tn), lambda i, j: (0, j))]
        args += [xs.astype(compute_dtype), ws.astype(compute_dtype)]
    in_specs.append(pl.BlockSpec((1, tn), lambda i, j: (0, j)))
    args.append(bias2)
    if residual is not None:
        in_specs.append(pl.BlockSpec((tm, tn), lambda i, j: (i, j)))
        args.append(residual.astype(compute_dtype))

    if xs is not None:
        kernel = _mm_dual_relu_kernel
    elif residual is not None:
        kernel = _mm_residual_relu_kernel
    else:
        kernel = functools.partial(_mm_kernel, relu=relu)

    w_reads = m_blocks if n_blocks > 1 else 1
    flops = 2 * M * K * Cout
    bytes_accessed = M * K * esz + K * Cout * esz * w_reads + M * Cout * esz + Cout * 4
    if xs is not None:
        flops += 2 * M * xs.shape[1] * Cout
        bytes_accessed += M * xs.shape[1] * esz + xs.shape[1] * Cout * esz * w_reads
    if residual is not None:
        bytes_accessed += M * Cout * esz

    return pl.pallas_call(
        kernel,
        out_shape=jax.ShapeDtypeStruct((M, Cout), compute_dtype),
        grid_spec=pltpu.PrefetchScalarGridSpec(
            num_scalar_prefetch=0,
            grid=(m_blocks, n_blocks),
            in_specs=in_specs,
            out_specs=pl.BlockSpec((tm, tn), lambda i, j: (i, j)),
        ),
        compiler_params=pltpu.CompilerParams(
            dimension_semantics=("parallel", "parallel"),
            vmem_limit_bytes=_VMEM_LIMIT_BYTES),
        cost_estimate=pl.CostEstimate(
            flops=int(flops), transcendentals=0, bytes_accessed=int(bytes_accessed)),
    )(*args)


def _conv3x3_bn_relu(x_nhwc, w_oihw, scale, bias, *, stride, compute_dtype):
    """3x3 conv (pad=1, stride) + folded BN + ReLU.  Taps formed in-kernel."""
    N, H, W, Cin = x_nhwc.shape
    Cout = w_oihw.shape[0]
    hout = (H + 2 - 3) // stride + 1
    wout = (W + 2 - 3) // stride + 1
    esz = jnp.dtype(compute_dtype).itemsize

    # Pad spatial dims by 1 (data movement only; activation crosses HBM once).
    xp = jnp.pad(x_nhwc.astype(compute_dtype), ((0, 0), (1, 1), (1, 1), (0, 0)))

    # (Cout, Cin, 3, 3) -> (3, 3, Cin, Cout) -> (9*Cin, Cout); fold BN scale.
    w = jnp.transpose(w_oihw, (2, 3, 1, 0)).reshape(9 * Cin, Cout)
    w = (w * scale.reshape(1, Cout)).astype(compute_dtype)
    bias2 = bias.reshape(1, Cout).astype(jnp.float32)

    kernel = functools.partial(_conv3x3_kernel, stride=stride, hout=hout, wout=wout)
    flops = 2 * N * hout * wout * 9 * Cin * Cout
    bytes_accessed = (N * (H + 2) * (W + 2) * Cin + 9 * Cin * Cout
                      + N * hout * wout * Cout) * esz + Cout * 4

    out = pl.pallas_call(
        kernel,
        out_shape=jax.ShapeDtypeStruct((N, hout * wout, Cout), compute_dtype),
        grid_spec=pltpu.PrefetchScalarGridSpec(
            num_scalar_prefetch=0,
            grid=(N,),
            in_specs=[
                pl.BlockSpec((1, H + 2, W + 2, Cin), lambda n: (n, 0, 0, 0)),
                pl.BlockSpec((9 * Cin, Cout), lambda n: (0, 0)),
                pl.BlockSpec((1, Cout), lambda n: (0, 0)),
            ],
            out_specs=pl.BlockSpec((1, hout * wout, Cout), lambda n: (n, 0, 0)),
        ),
        compiler_params=pltpu.CompilerParams(
            dimension_semantics=("parallel",),
            vmem_limit_bytes=_VMEM_LIMIT_BYTES),
        cost_estimate=pl.CostEstimate(
            flops=int(flops), transcendentals=0, bytes_accessed=int(bytes_accessed)),
    )(xp, w, bias2)
    return out, hout, wout


# ---------------------------------------------------------------------------
# Bottleneck forward (inference-mode BatchNorm folded into scale/bias)
# ---------------------------------------------------------------------------
def _fold_bn(gamma, beta, mean, var, eps=1e-5):
    scale = gamma * lax.rsqrt(var + eps)
    bias = beta - mean * scale
    return scale, bias


def bottleneck_forward(x_nchw, params, *, stride=1, eps=1e-5,
                       compute_dtype=jnp.bfloat16):
    """Pallas forward pass of the PyTorch Bottleneck block. x: NCHW float32."""
    N, Cin, H, W = x_nchw.shape
    w1 = params["conv1_w"]     # (planes, Cin, 1, 1)   OIHW
    w2 = params["conv2_w"]     # (planes, planes, 3, 3)
    w3 = params["conv3_w"]     # (4*planes, planes, 1, 1)
    planes = w1.shape[0]
    Cexp = w3.shape[0]
    has_projection = (stride != 1) or (Cin != Cexp)

    # NHWC: channels on the fast lane axis.
    x = jnp.transpose(x_nchw, (0, 2, 3, 1)).astype(jnp.float32)

    # ---- conv1 (1x1) + bn1 + relu -----------------------------------------
    s1, b1 = _fold_bn(params["bn1_g"], params["bn1_b"],
                      params["bn1_m"], params["bn1_v"], eps)
    w1m = jnp.transpose(w1.reshape(planes, Cin), (1, 0)) * s1.reshape(1, planes)
    out1 = _fused_matmul(x.reshape(N * H * W, Cin), w1m, b1, relu=True,
                         compute_dtype=compute_dtype)

    # ---- conv2 (3x3, stride, pad=1) + bn2 + relu --------------------------
    s2, b2 = _fold_bn(params["bn2_g"], params["bn2_b"],
                      params["bn2_m"], params["bn2_v"], eps)
    out2, hout, wout = _conv3x3_bn_relu(out1.reshape(N, H, W, planes), w2, s2, b2,
                                        stride=stride, compute_dtype=compute_dtype)
    M2 = N * hout * wout
    out2 = out2.reshape(M2, planes)

    # ---- conv3 (1x1) + bn3 + shortcut + relu (single fused kernel) --------
    s3, b3 = _fold_bn(params["bn3_g"], params["bn3_b"],
                      params["bn3_m"], params["bn3_v"], eps)
    w3m = jnp.transpose(w3.reshape(Cexp, planes), (1, 0)) * s3.reshape(1, Cexp)

    if has_projection:
        ws = params["sc_conv_w"]   # (Cexp, Cin, 1, 1)
        ss, bs = _fold_bn(params["sc_bn_g"], params["sc_bn_b"],
                          params["sc_bn_m"], params["sc_bn_v"], eps)
        wsm = jnp.transpose(ws.reshape(Cexp, Cin), (1, 0)) * ss.reshape(1, Cexp)
        x_s = x[:, ::stride, ::stride, :].reshape(M2, Cin)   # strided 1x1 == subsample
        out = _fused_matmul(out2, w3m, b3 + bs, relu=True,
                            xs=x_s, ws=wsm, compute_dtype=compute_dtype)
    else:
        out = _fused_matmul(out2, w3m, b3, relu=True,
                            residual=x.reshape(M2, Cexp), compute_dtype=compute_dtype)

    out = out.reshape(N, hout, wout, Cexp).astype(x_nchw.dtype)
    return jnp.transpose(out, (0, 3, 1, 2))


# ---------------------------------------------------------------------------
# Plain-JAX reference (eval-mode BN), for correctness checking
# ---------------------------------------------------------------------------
def _bn_ref(x, g, b, m, v, eps=1e-5):
    g = g.reshape(1, -1, 1, 1); b = b.reshape(1, -1, 1, 1)
    m = m.reshape(1, -1, 1, 1); v = v.reshape(1, -1, 1, 1)
    return (x - m) / jnp.sqrt(v + eps) * g + b


def _conv_ref(x, w, stride=1, padding=0):
    return lax.conv_general_dilated(
        x, w, window_strides=(stride, stride),
        padding=[(padding, padding), (padding, padding)],
        dimension_numbers=("NCHW", "OIHW", "NCHW"),
        precision=lax.Precision.HIGHEST)


def bottleneck_reference(x, params, *, stride=1, eps=1e-5):
    out = jax.nn.relu(_bn_ref(_conv_ref(x, params["conv1_w"]),
                              params["bn1_g"], params["bn1_b"],
                              params["bn1_m"], params["bn1_v"], eps))
    out = jax.nn.relu(_bn_ref(_conv_ref(out, params["conv2_w"], stride, 1),
                              params["bn2_g"], params["bn2_b"],
                              params["bn2_m"], params["bn2_v"], eps))
    out = _bn_ref(_conv_ref(out, params["conv3_w"]),
                  params["bn3_g"], params["bn3_b"],
                  params["bn3_m"], params["bn3_v"], eps)
    Cexp = params["conv3_w"].shape[0]
    if stride != 1 or x.shape[1] != Cexp:
        sc = _bn_ref(_conv_ref(x, params["sc_conv_w"], stride),
                     params["sc_bn_g"], params["sc_bn_b"],
                     params["sc_bn_m"], params["sc_bn_v"], eps)
    else:
        sc = x
    return jax.nn.relu(out + sc)


if __name__ == "__main__":
    def make_params(key, in_planes, planes, with_projection):
        Cexp = 4 * planes
        keys = iter(jax.random.split(key, 32))

        def conv_init(shape):
            fan_in = shape[1] * shape[2] * shape[3]
            return jax.random.normal(next(keys), shape, jnp.float32) / jnp.sqrt(float(fan_in))

        def bn_init(c):
            return (jax.random.uniform(next(keys), (c,), jnp.float32, 0.5, 1.5),
                    0.1 * jax.random.normal(next(keys), (c,), jnp.float32),
                    0.1 * jax.random.normal(next(keys), (c,), jnp.float32),
                    jax.random.uniform(next(keys), (c,), jnp.float32, 0.5, 1.5))

        p = {}
        p["conv1_w"] = conv_init((planes, in_planes, 1, 1))
        p["bn1_g"], p["bn1_b"], p["bn1_m"], p["bn1_v"] = bn_init(planes)
        p["conv2_w"] = conv_init((planes, planes, 3, 3))
        p["bn2_g"], p["bn2_b"], p["bn2_m"], p["bn2_v"] = bn_init(planes)
        p["conv3_w"] = conv_init((Cexp, planes, 1, 1))
        p["bn3_g"], p["bn3_b"], p["bn3_m"], p["bn3_v"] = bn_init(Cexp)
        if with_projection:
            p["sc_conv_w"] = conv_init((Cexp, in_planes, 1, 1))
            p["sc_bn_g"], p["sc_bn_b"], p["sc_bn_m"], p["sc_bn_v"] = bn_init(Cexp)
        return p

    k1, k2, k3, k4 = jax.random.split(jax.random.PRNGKey(0), 4)

    # Config A: projection shortcut (in_planes != 4*planes), stride=1.
    N, in_planes, planes, H, W, stride = 2, 8, 4, 16, 16, 1
    params_a = make_params(k1, in_planes, planes, with_projection=True)
    x_a = jax.random.normal(k2, (N, in_planes, H, W), jnp.float32)
    ref_a = bottleneck_reference(x_a, params_a, stride=stride)

    y_f32 = jax.block_until_ready(
        jax.jit(functools.partial(bottleneck_forward, stride=stride,
                                  compute_dtype=jnp.float32))(x_a, params_a))
    assert y_f32.shape == ref_a.shape == (N, 4 * planes, H, W)
    err_f32 = float(jnp.max(jnp.abs(y_f32 - ref_a)))
    assert jnp.allclose(y_f32, ref_a, atol=2e-3, rtol=2e-3), f"f32 max_err={err_f32}"

    y_bf16 = jax.block_until_ready(
        jax.jit(functools.partial(bottleneck_forward, stride=stride,
                                  compute_dtype=jnp.bfloat16))(x_a, params_a))
    err_bf = float(jnp.max(jnp.abs(y_bf16 - ref_a)))
    assert jnp.allclose(y_bf16, ref_a, atol=6e-2, rtol=6e-2), f"bf16 max_err={err_bf}"

    # Config B: identity shortcut (in_planes == 4*planes), stride=1.
    params_b = make_params(k3, 16, planes, with_projection=False)
    x_b = jax.random.normal(k4, (N, 16, H, W), jnp.float32)
    ref_b = bottleneck_reference(x_b, params_b, stride=1)
    y_b = jax.block_until_ready(
        jax.jit(functools.partial(bottleneck_forward, stride=1,
                                  compute_dtype=jnp.float32))(x_b, params_b))
    err_b = float(jnp.max(jnp.abs(y_b - ref_b)))
    assert jnp.allclose(y_b, ref_b, atol=2e-3, rtol=2e-3), f"identity max_err={err_b}"

    print("KERNEL_OK")
</pallas_src>

<mosaic_0001>
module attributes {stable_mosaic.version = 11 : i64} {
  func.func @_mm_kernel(%arg0: i32, %arg1: i32, %arg2: memref<512x8xf32, #tpu.memory_space<vmem>>, %arg3: memref<8x4xf32, #tpu.memory_space<vmem>>, %arg4: memref<1x4xf32, #tpu.memory_space<vmem>>, %arg5: memref<512x4xf32, #tpu.memory_space<vmem>>) attributes {dimension_semantics = [#tpu.dimension_semantics<parallel>, #tpu.dimension_semantics<parallel>], iteration_bounds = array<i64: 1, 1>, scalar_prefetch = 0 : i64, scratch_operands = 0 : i64, tpu.core_type = #tpu.core_type<tc>, window_params = [{transform_indices = @transform_0, window_bounds = array<i64: 512, 8>}, {transform_indices = @transform_1, window_bounds = array<i64: 8, 4>}, {transform_indices = @transform_2, window_bounds = array<i64: 1, 4>}, {transform_indices = @transform_3, window_bounds = array<i64: 512, 4>}]} {
    %c0 = arith.constant 0 : index
    %c0_0 = arith.constant 0 : index
    %0 = vector.load %arg2[%c0, %c0_0] : memref<512x8xf32, #tpu.memory_space<vmem>>, vector<512x8xf32>
    %c0_1 = arith.constant 0 : index
    %c0_2 = arith.constant 0 : index
    %1 = vector.load %arg3[%c0_1, %c0_2] : memref<8x4xf32, #tpu.memory_space<vmem>>, vector<8x4xf32>
    %cst = arith.constant dense<0.000000e+00> : vector<512x4xf32>
    %2 = tpu.matmul %0, %1, %cst {dimension_numbers = #tpu.dot_dimension_numbers<[1], [0], [0], [1], [0, 0, 1, 1], [], []>} : vector<512x8xf32>, vector<8x4xf32>, vector<512x4xf32> -> vector<512x4xf32>
    %c0_3 = arith.constant 0 : index
    %c0_4 = arith.constant 0 : index
    %3 = vector.load %arg4[%c0_3, %c0_4] : memref<1x4xf32, #tpu.memory_space<vmem>>, vector<1x4xf32>
    %4 = vector.broadcast %3 : vector<1x4xf32> to vector<512x4xf32>
    %5 = arith.addf %2, %4 : vector<512x4xf32>
    %cst_5 = arith.constant 0.000000e+00 : f32
    %6 = vector.broadcast %cst_5 : f32 to vector<512x4xf32>
    %7 = arith.maximumf %5, %6 : vector<512x4xf32>
    %c0_6 = arith.constant 0 : index
    %c0_7 = arith.constant 0 : index
    %8 = vector.load %arg5[%c0_6, %c0_7] : memref<512x4xf32, #tpu.memory_space<vmem>>, vector<512x4xf32>
    tpu.vector_store %arg5[%c0_6, %c0_7], %7 {strides = array<i32>} : memref<512x4xf32, #tpu.memory_space<vmem>>, vector<512x4xf32>,
    return
  }
  func.func @transform_0(%arg0: i32, %arg1: i32) -> (i32, i32) {
    %c0_i32 = arith.constant 0 : i32
    %c0_i32_0 = arith.constant 0 : i32
    return %arg0, %c0_i32 : i32, i32
  }
  func.func @transform_1(%arg0: i32, %arg1: i32) -> (i32, i32) {
    %c0_i32 = arith.constant 0 : i32
    %c0_i32_0 = arith.constant 0 : i32
    return %c0_i32, %arg1 : i32, i32
  }
  func.func @transform_2(%arg0: i32, %arg1: i32) -> (i32, i32) {
    %c0_i32 = arith.constant 0 : i32
    %c0_i32_0 = arith.constant 0 : i32
    return %c0_i32, %arg1 : i32, i32
  }
  func.func @transform_3(%arg0: i32, %arg1: i32) -> (i32, i32) {
    %c0_i32 = arith.constant 0 : i32
    return %arg0, %arg1 : i32, i32
  }
}

module attributes {stable_mosaic.version = 11 : i64} {
  func.func @_conv3x3_kernel(%arg0: i32, %arg1: memref<1x18x18x4xf32, #tpu.memory_space<vmem>>, %arg2: memref<36x4xf32, #tpu.memory_space<vmem>>, %arg3: memref<1x4xf32, #tpu.memory_space<vmem>>, %arg4: memref<1x256x4xf32, #tpu.memory_space<vmem>>) attributes {dimension_semantics = [#tpu.dimension_semantics<parallel>], iteration_bounds = array<i64: 2>, scalar_prefetch = 0 : i64, scratch_operands = 0 : i64, tpu.core_type = #tpu.core_type<tc>, window_params = [{transform_indices = @transform_0, window_bounds = array<i64: 1, 18, 18, 4>}, {pipeline_mode = #tpu.pipeline_mode<synchronous>, transform_indices = @transform_1, window_bounds = array<i64: 36, 4>}, {pipeline_mode = #tpu.pipeline_mode<synchronous>, transform_indices = @transform_2, window_bounds = array<i64: 1, 4>}, {transform_indices = @transform_3, window_bounds = array<i64: 1, 256, 4>}]} {
    %c0 = arith.constant 0 : index
    %c0_0 = arith.constant 0 : index
    %c0_1 = arith.constant 0 : index
    %c0_2 = arith.constant 0 : index
    %0 = vector.load %arg1[%c0, %c0_0, %c0_1, %c0_2] : memref<1x18x18x4xf32, #tpu.memory_space<vmem>>, vector<1x16x16x4xf32>
    %1 = vector.shape_cast %0 : vector<1x16x16x4xf32> to vector<16x16x4xf32>
    %2 = vector.shape_cast %1 : vector<16x16x4xf32> to vector<256x4xf32>
    %c0_3 = arith.constant 0 : index
    %c0_4 = arith.constant 0 : index
    %c1 = arith.constant 1 : index
    %c0_5 = arith.constant 0 : index
    %3 = vector.load %arg1[%c0_3, %c0_4, %c1, %c0_5] : memref<1x18x18x4xf32, #tpu.memory_space<vmem>>, vector<1x16x16x4xf32>
    %4 = vector.shape_cast %3 : vector<1x16x16x4xf32> to vector<16x16x4xf32>
    %5 = vector.shape_cast %4 : vector<16x16x4xf32> to vector<256x4xf32>
    %c0_6 = arith.constant 0 : index
    %c0_7 = arith.constant 0 : index
    %c2 = arith.constant 2 : index
    %c0_8 = arith.constant 0 : index
    %6 = vector.load %arg1[%c0_6, %c0_7, %c2, %c0_8] : memref<1x18x18x4xf32, #tpu.memory_space<vmem>>, vector<1x16x16x4xf32>
    %7 = vector.shape_cast %6 : vector<1x16x16x4xf32> to vector<16x16x4xf32>
    %8 = vector.shape_cast %7 : vector<16x16x4xf32> to vector<256x4xf32>
    %c0_9 = arith.constant 0 : index
    %c1_10 = arith.constant 1 : index
    %c0_11 = arith.constant 0 : index
    %c0_12 = arith.constant 0 : index
    %9 = vector.load %arg1[%c0_9, %c1_10, %c0_11, %c0_12] : memref<1x18x18x4xf32, #tpu.memory_space<vmem>>, vector<1x16x16x4xf32>
    %10 = vector.shape_cast %9 : vector<1x16x16x4xf32> to vector<16x16x4xf32>
    %11 = vector.shape_cast %10 : vector<16x16x4xf32> to vector<256x4xf32>
    %c0_13 = arith.constant 0 : index
    %c1_14 = arith.constant 1 : index
    %c1_15 = arith.constant 1 : index
    %c0_16 = arith.constant 0 : index
    %12 = vector.load %arg1[%c0_13, %c1_14, %c1_15, %c0_16] : memref<1x18x18x4xf32, #tpu.memory_space<vmem>>, vector<1x16x16x4xf32>
    %13 = vector.shape_cast %12 : vector<1x16x16x4xf32> to vector<16x16x4xf32>
    %14 = vector.shape_cast %13 : vector<16x16x4xf32> to vector<256x4xf32>
    %c0_17 = arith.constant 0 : index
    %c1_18 = arith.constant 1 : index
    %c2_19 = arith.constant 2 : index
    %c0_20 = arith.constant 0 : index
    %15 = vector.load %arg1[%c0_17, %c1_18, %c2_19, %c0_20] : memref<1x18x18x4xf32, #tpu.memory_space<vmem>>, vector<1x16x16x4xf32>
    %16 = vector.shape_cast %15 : vector<1x16x16x4xf32> to vector<16x16x4xf32>
    %17 = vector.shape_cast %16 : vector<16x16x4xf32> to vector<256x4xf32>
    %c0_21 = arith.constant 0 : index
    %c2_22 = arith.constant 2 : index
    %c0_23 = arith.constant 0 : index
    %c0_24 = arith.constant 0 : index
    %18 = vector.load %arg1[%c0_21, %c2_22, %c0_23, %c0_24] : memref<1x18x18x4xf32, #tpu.memory_space<vmem>>, vector<1x16x16x4xf32>
    %19 = vector.shape_cast %18 : vector<1x16x16x4xf32> to vector<16x16x4xf32>
    %20 = vector.shape_cast %19 : vector<16x16x4xf32> to vector<256x4xf32>
    %c0_25 = arith.constant 0 : index
    %c2_26 = arith.constant 2 : index
    %c1_27 = arith.constant 1 : index
    %c0_28 = arith.constant 0 : index
    %21 = vector.load %arg1[%c0_25, %c2_26, %c1_27, %c0_28] : memref<1x18x18x4xf32, #tpu.memory_space<vmem>>, vector<1x16x16x4xf32>
    %22 = vector.shape_cast %21 : vector<1x16x16x4xf32> to vector<16x16x4xf32>
    %23 = vector.shape_cast %22 : vector<16x16x4xf32> to vector<256x4xf32>
    %c0_29 = arith.constant 0 : index
    %c2_30 = arith.constant 2 : index
    %c2_31 = arith.constant 2 : index
    %c0_32 = arith.constant 0 : index
    %24 = vector.load %arg1[%c0_29, %c2_30, %c2_31, %c0_32] : memref<1x18x18x4xf32, #tpu.memory_space<vmem>>, vector<1x16x16x4xf32>
    %25 = vector.shape_cast %24 : vector<1x16x16x4xf32> to vector<16x16x4xf32>
    %26 = vector.shape_cast %25 : vector<16x16x4xf32> to vector<256x4xf32>
    %27 = tpu.concatenate %2, %5, %8, %11, %14, %17, %20, %23, %26 in 1 : vector<256x4xf32>, vector<256x4xf32>, vector<256x4xf32>, vector<256x4xf32>, vector<256x4xf32>, vector<256x4xf32>, vector<256x4xf32>, vector<256x4xf32>, vector<256x4xf32> -> vector<256x36xf32>
    %c0_33 = arith.constant 0 : index
    %c0_34 = arith.constant 0 : index
    %28 = vector.load %arg2[%c0_33, %c0_34] : memref<36x4xf32, #tpu.memory_space<vmem>>, vector<36x4xf32>
    %cst = arith.constant dense<0.000000e+00> : vector<256x4xf32>
    %29 = tpu.matmul %27, %28, %cst {dimension_numbers = #tpu.dot_dimension_numbers<[1], [0], [0], [1], [0, 0, 1, 1], [], []>} : vector<256x36xf32>, vector<36x4xf32>, vector<256x4xf32> -> vector<256x4xf32>
    %c0_35 = arith.constant 0 : index
    %c0_36 = arith.constant 0 : index
    %30 = vector.load %arg3[%c0_35, %c0_36] : memref<1x4xf32, #tpu.memory_space<vmem>>, vector<1x4xf32>
    %31 = vector.broadcast %30 : vector<1x4xf32> to vector<256x4xf32>
    %32 = arith.addf %29, %31 : vector<256x4xf32>
    %cst_37 = arith.constant 0.000000e+00 : f32
    %33 = vector.broadcast %cst_37 : f32 to vector<256x4xf32>
    %34 = arith.maximumf %32, %33 : vector<256x4xf32>
    %c0_38 = arith.constant 0 : index
    %c0_39 = arith.constant 0 : index
    %c0_40 = arith.constant 0 : index
    %35 = vector.load %arg4[%c0_38, %c0_39, %c0_40] : memref<1x256x4xf32, #tpu.memory_space<vmem>>, vector<1x256x4xf32>
    %36 = vector.shape_cast %35 : vector<1x256x4xf32> to vector<256x4xf32>
    %37 = vector.shape_cast %34 : vector<256x4xf32> to vector<1x256x4xf32>
    tpu.vector_store %arg4[%c0_38, %c0_39, %c0_40], %37 {strides = array<i32>} : memref<1x256x4xf32, #tpu.memory_space<vmem>>, vector<1x256x4xf32>,
    return
  }
  func.func @transform_0(%arg0: i32) -> (i32, i32, i32, i32) {
    %c0_i32 = arith.constant 0 : i32
    %c0_i32_0 = arith.constant 0 : i32
    %c0_i32_1 = arith.constant 0 : i32
    %c0_i32_2 = arith.constant 0 : i32
    return %arg0, %c0_i32, %c0_i32_0, %c0_i32_1 : i32, i32, i32, i32
  }
  func.func @transform_1(%arg0: i32) -> (i32, i32) {
    %c0_i32 = arith.constant 0 : i32
    %c0_i32_0 = arith.constant 0 : i32
    %c0_i32_1 = arith.constant 0 : i32
    return %c0_i32, %c0_i32_0 : i32, i32
  }
  func.func @transform_2(%arg0: i32) -> (i32, i32) {
    %c0_i32 = arith.constant 0 : i32
    %c0_i32_0 = arith.constant 0 : i32
    %c0_i32_1 = arith.constant 0 : i32
    return %c0_i32, %c0_i32_0 : i32, i32
  }
  func.func @transform_3(%arg0: i32) -> (i32, i32, i32) {
    %c0_i32 = arith.constant 0 : i32
    %c0_i32_0 = arith.constant 0 : i32
    %c0_i32_1 = arith.constant 0 : i32
    return %arg0, %c0_i32, %c0_i32_0 : i32, i32, i32
  }
}

module attributes {stable_mosaic.version = 11 : i64} {
  func.func @_mm_dual_relu_kernel(%arg0: i32, %arg1: i32, %arg2: memref<512x4xf32, #tpu.memory_space<vmem>>, %arg3: memref<4x16xf32, #tpu.memory_space<vmem>>, %arg4: memref<512x8xf32, #tpu.memory_space<vmem>>, %arg5: memref<8x16xf32, #tpu.memory_space<vmem>>, %arg6: memref<1x16xf32, #tpu.memory_space<vmem>>, %arg7: memref<512x16xf32, #tpu.memory_space<vmem>>) attributes {dimension_semantics = [#tpu.dimension_semantics<parallel>, #tpu.dimension_semantics<parallel>], iteration_bounds = array<i64: 1, 1>, scalar_prefetch = 0 : i64, scratch_operands = 0 : i64, tpu.core_type = #tpu.core_type<tc>, window_params = [{transform_indices = @transform_0, window_bounds = array<i64: 512, 4>}, {transform_indices = @transform_1, window_bounds = array<i64: 4, 16>}, {transform_indices = @transform_2, window_bounds = array<i64: 512, 8>}, {transform_indices = @transform_3, window_bounds = array<i64: 8, 16>}, {transform_indices = @transform_4, window_bounds = array<i64: 1, 16>}, {transform_indices = @transform_5, window_bounds = array<i64: 512, 16>}]} {
    %c0 = arith.constant 0 : index
    %c0_0 = arith.constant 0 : index
    %0 = vector.load %arg2[%c0, %c0_0] : memref<512x4xf32, #tpu.memory_space<vmem>>, vector<512x4xf32>
    %c0_1 = arith.constant 0 : index
    %c0_2 = arith.constant 0 : index
    %1 = vector.load %arg3[%c0_1, %c0_2] : memref<4x16xf32, #tpu.memory_space<vmem>>, vector<4x16xf32>
    %cst = arith.constant dense<0.000000e+00> : vector<512x16xf32>
    %2 = tpu.matmul %0, %1, %cst {dimension_numbers = #tpu.dot_dimension_numbers<[1], [0], [0], [1], [0, 0, 1, 1], [], []>} : vector<512x4xf32>, vector<4x16xf32>, vector<512x16xf32> -> vector<512x16xf32>
    %c0_3 = arith.constant 0 : index
    %c0_4 = arith.constant 0 : index
    %3 = vector.load %arg4[%c0_3, %c0_4] : memref<512x8xf32, #tpu.memory_space<vmem>>, vector<512x8xf32>
    %c0_5 = arith.constant 0 : index
    %c0_6 = arith.constant 0 : index
    %4 = vector.load %arg5[%c0_5, %c0_6] : memref<8x16xf32, #tpu.memory_space<vmem>>, vector<8x16xf32>
    %cst_7 = arith.constant dense<0.000000e+00> : vector<512x16xf32>
    %5 = tpu.matmul %3, %4, %cst_7 {dimension_numbers = #tpu.dot_dimension_numbers<[1], [0], [0], [1], [0, 0, 1, 1], [], []>} : vector<512x8xf32>, vector<8x16xf32>, vector<512x16xf32> -> vector<512x16xf32>
    %6 = arith.addf %2, %5 : vector<512x16xf32>
    %c0_8 = arith.constant 0 : index
    %c0_9 = arith.constant 0 : index
    %7 = vector.load %arg6[%c0_8, %c0_9] : memref<1x16xf32, #tpu.memory_space<vmem>>, vector<1x16xf32>
    %8 = vector.broadcast %7 : vector<1x16xf32> to vector<512x16xf32>
    %9 = arith.addf %6, %8 : vector<512x16xf32>
    %cst_10 = arith.constant 0.000000e+00 : f32
    %10 = vector.broadcast %cst_10 : f32 to vector<512x16xf32>
    %11 = arith.maximumf %9, %10 : vector<512x16xf32>
    %c0_11 = arith.constant 0 : index
    %c0_12 = arith.constant 0 : index
    %12 = vector.load %arg7[%c0_11, %c0_12] : memref<512x16xf32, #tpu.memory_space<vmem>>, vector<512x16xf32>
    tpu.vector_store %arg7[%c0_11, %c0_12], %11 {strides = array<i32>} : memref<512x16xf32, #tpu.memory_space<vmem>>, vector<512x16xf32>,
    return
  }
  func.func @transform_0(%arg0: i32, %arg1: i32) -> (i32, i32) {
    %c0_i32 = arith.constant 0 : i32
    %c0_i32_0 = arith.constant 0 : i32
    return %arg0, %c0_i32 : i32, i32
  }
  func.func @transform_1(%arg0: i32, %arg1: i32) -> (i32, i32) {
    %c0_i32 = arith.constant 0 : i32
    %c0_i32_0 = arith.constant 0 : i32
    return %c0_i32, %arg1 : i32, i32
  }
  func.func @transform_2(%arg0: i32, %arg1: i32) -> (i32, i32) {
    %c0_i32 = arith.constant 0 : i32
    %c0_i32_0 = arith.constant 0 : i32
    return %arg0, %c0_i32 : i32, i32
  }
  func.func @transform_3(%arg0: i32, %arg1: i32) -> (i32, i32) {
    %c0_i32 = arith.constant 0 : i32
    %c0_i32_0 = arith.constant 0 : i32
    return %c0_i32, %arg1 : i32, i32
  }
  func.func @transform_4(%arg0: i32, %arg1: i32) -> (i32, i32) {
    %c0_i32 = arith.constant 0 : i32
    %c0_i32_0 = arith.constant 0 : i32
    return %c0_i32, %arg1 : i32, i32
  }
  func.func @transform_5(%arg0: i32, %arg1: i32) -> (i32, i32) {
    %c0_i32 = arith.constant 0 : i32
    return %arg0, %arg1 : i32, i32
  }
}

</mosaic_0001>

<llo_original>
// kernel: bottleneck_forward.3
$region0: #{bottleneck_forward.3}
  #allocation0 [shape = 'u32[]', space=smem, size = 0x4, offset = 0x4, fixed_abs, tag = 'smem constant byte address 0x4 - core index']
  #allocation1 [shape = 'u32[144,128]{1,0:T(1,128)}', space=vmem, size = 0x12000, scoped, tag = 'internal scratch']
  %s0 = inlined_call_operand.vmem [shape: f32[512,8], index: 0, kind: input, shape index: {}]
  %s1 = inlined_call_operand.vmem [shape: f32[8,4], index: 1, kind: input, shape index: {}]
  %s2 = inlined_call_operand.vmem [shape: f32[1,4], index: 2, kind: input, shape index: {}]
  %s3 = inlined_call_operand.vmem [shape: f32[512,4], index: 3, kind: output, shape index: {}]
  %s4 = sld [smem:[#allocation0]]
  $region22: #{bottleneck_forward.3} parent=0
    _
  %s6 = ssub.s32 1, %s4
  %s7 = scalar_select 0, %s6, %s4
  // Predicated region
  $region2: #{bottleneck_forward.3} parent=0 // pred_check
    _
  $region3: #{bottleneck_forward.3} parent=0 // pred_check_branch
    %9 = sbr.rel (0) target = $region5
  $region4: #{bottleneck_forward.3} parent=0 // pred_region
    _
  $region5: #{bottleneck_forward.3} parent=0 // pred_fallthru
    _
  // Predicated region
  $region6: #{bottleneck_forward.3} parent=0 // pred_check
    _
  $region7: #{bottleneck_forward.3} parent=0 // pred_check_branch
    %11 = sbr.rel (0) target = $region9
  $region8: #{bottleneck_forward.3} parent=0 // pred_region
    _
  $region9: #{bottleneck_forward.3} parent=0 // pred_fallthru
    _
  // Predicated region
  $region10: #{bottleneck_forward.3} parent=0 // pred_check
    _
  $region11: #{bottleneck_forward.3} parent=0 // pred_check_branch
    %13 = sbr.rel (0) target = $region13
  $region12: #{bottleneck_forward.3} parent=0 // pred_region
    _
  $region13: #{bottleneck_forward.3} parent=0 // pred_fallthru
    _
  %v14 = vld [vmem:[%s0] sm:$0xff]
  %v15 = vld [vmem:[%s0 + $0x8] sm:$0xff]
  %v16 = vld [vmem:[%s0 + $0x10] sm:$0xff]
  %v17 = vld [vmem:[%s0 + $0x18] sm:$0xff]
  %v18 = vld [vmem:[%s0 + $0x20] sm:$0xff]
  %v19 = vld [vmem:[%s0 + $0x28] sm:$0xff]
  %v20 = vld [vmem:[%s0 + $0x30] sm:$0xff]
  %v21 = vld [vmem:[%s0 + $0x38] sm:$0xff]
  %v22 = vld [vmem:[%s0 + $0x40] sm:$0xff]
  %v23 = vld [vmem:[%s0 + $0x48] sm:$0xff]
  %v24 = vld [vmem:[%s0 + $0x50] sm:$0xff]
  %v25 = vld [vmem:[%s0 + $0x58] sm:$0xff]
  %v26 = vld [vmem:[%s0 + $0x60] sm:$0xff]
  %v27 = vld [vmem:[%s0 + $0x68] sm:$0xff]
  %v28 = vld [vmem:[%s0 + $0x70] sm:$0xff]
  %v29 = vld [vmem:[%s0 + $0x78] sm:$0xff]
  %v30 = vld [vmem:[%s0 + $0x80] sm:$0xff]
  %v31 = vld [vmem:[%s0 + $0x88] sm:$0xff]
  %v32 = vld [vmem:[%s0 + $0x90] sm:$0xff]
  %v33 = vld [vmem:[%s0 + $0x98] sm:$0xff]
  %v34 = vld [vmem:[%s0 + $0xa0] sm:$0xff]
  %v35 = vld [vmem:[%s0 + $0xa8] sm:$0xff]
  %v36 = vld [vmem:[%s0 + $0xb0] sm:$0xff]
  %v37 = vld [vmem:[%s0 + $0xb8] sm:$0xff]
  %v38 = vld [vmem:[%s0 + $0xc0] sm:$0xff]
  %v39 = vld [vmem:[%s0 + $0xc8] sm:$0xff]
  %v40 = vld [vmem:[%s0 + $0xd0] sm:$0xff]
  %v41 = vld [vmem:[%s0 + $0xd8] sm:$0xff]
  %v42 = vld [vmem:[%s0 + $0xe0] sm:$0xff]
  %v43 = vld [vmem:[%s0 + $0xe8] sm:$0xff]
  %v44 = vld [vmem:[%s0 + $0xf0] sm:$0xff]
  %v45 = vld [vmem:[%s0 + $0xf8] sm:$0xff]
  %v46 = vld [vmem:[%s0 + $0x100] sm:$0xff]
  %v47 = vld [vmem:[%s0 + $0x108] sm:$0xff]
  %v48 = vld [vmem:[%s0 + $0x110] sm:$0xff]
  %v49 = vld [vmem:[%s0 + $0x118] sm:$0xff]
  %v50 = vld [vmem:[%s0 + $0x120] sm:$0xff]
  %v51 = vld [vmem:[%s0 + $0x128] sm:$0xff]
  %v52 = vld [vmem:[%s0 + $0x130] sm:$0xff]
  %v53 = vld [vmem:[%s0 + $0x138] sm:$0xff]
  %v54 = vld [vmem:[%s0 + $0x140] sm:$0xff]
  %v55 = vld [vmem:[%s0 + $0x148] sm:$0xff]
  %v56 = vld [vmem:[%s0 + $0x150] sm:$0xff]
  %v57 = vld [vmem:[%s0 + $0x158] sm:$0xff]
  %v58 = vld [vmem:[%s0 + $0x160] sm:$0xff]
  %v59 = vld [vmem:[%s0 + $0x168] sm:$0xff]
  %v60 = vld [vmem:[%s0 + $0x170] sm:$0xff]
  %v61 = vld [vmem:[%s0 + $0x178] sm:$0xff]
  %v62 = vld [vmem:[%s0 + $0x180] sm:$0xff]
  %v63 = vld [vmem:[%s0 + $0x188] sm:$0xff]
  %v64 = vld [vmem:[%s0 + $0x190] sm:$0xff]
  %v65 = vld [vmem:[%s0 + $0x198] sm:$0xff]
  %v66 = vld [vmem:[%s0 + $0x1a0] sm:$0xff]
  %v67 = vld [vmem:[%s0 + $0x1a8] sm:$0xff]
  %v68 = vld [vmem:[%s0 + $0x1b0] sm:$0xff]
  %v69 = vld [vmem:[%s0 + $0x1b8] sm:$0xff]
  %v70 = vld [vmem:[%s0 + $0x1c0] sm:$0xff]
  %v71 = vld [vmem:[%s0 + $0x1c8] sm:$0xff]
  %v72 = vld [vmem:[%s0 + $0x1d0] sm:$0xff]
  %v73 = vld [vmem:[%s0 + $0x1d8] sm:$0xff]
  %v74 = vld [vmem:[%s0 + $0x1e0] sm:$0xff]
  %v75 = vld [vmem:[%s0 + $0x1e8] sm:$0xff]
  %v76 = vld [vmem:[%s0 + $0x1f0] sm:$0xff]
  %v77 = vld [vmem:[%s0 + $0x1f8] sm:$0xff]
  %v78 = vld [vmem:[%s1] sm:$0xff]
  %v79 = vld [vmem:[%s2] sm:$0x1]
  %v81 = vlaneseq
  %v82 = vshrl.u32 %v81, 7
  %v83 = vsub.s32 0, %v82
  %v84 = vrot.slane %v79, %v83
  %vm86 = vcmask 64512
  %v88 = vsel %vm86, %v14, 0
  %v91 = vsel %vm86, %v15, 0
  %v94 = vsel %vm86, %v16, 0
  %v97 = vsel %vm86, %v17, 0
  %v100 = vsel %vm86, %v18, 0
  %v103 = vsel %vm86, %v19, 0
  %v106 = vsel %vm86, %v20, 0
  %v109 = vsel %vm86, %v21, 0
  %v112 = vsel %vm86, %v22, 0
  %v115 = vsel %vm86, %v23, 0
  %v118 = vsel %vm86, %v24, 0
  %v121 = vsel %vm86, %v25, 0
  %v124 = vsel %vm86, %v26, 0
  %v127 = vsel %vm86, %v27, 0
  %v130 = vsel %vm86, %v28, 0
  %v133 = vsel %vm86, %v29, 0
  %v136 = vsel %vm86, %v30, 0
  %v139 = vsel %vm86, %v31, 0
  %v142 = vsel %vm86, %v32, 0
  %v145 = vsel %vm86, %v33, 0
  %v148 = vsel %vm86, %v34, 0
  %v151 = vsel %vm86, %v35, 0
  %v154 = vsel %vm86, %v36, 0
  %v157 = vsel %vm86, %v37, 0
  %v160 = vsel %vm86, %v38, 0
  %v163 = vsel %vm86, %v39, 0
  %v166 = vsel %vm86, %v40, 0
  %v169 = vsel %vm86, %v41, 0
  %v172 = vsel %vm86, %v42, 0
  %v175 = vsel %vm86, %v43, 0
  %v178 = vsel %vm86, %v44, 0
  %v181 = vsel %vm86, %v45, 0
  %v184 = vsel %vm86, %v46, 0
  %v187 = vsel %vm86, %v47, 0
  %v190 = vsel %vm86, %v48, 0
  %v193 = vsel %vm86, %v49, 0
  %v196 = vsel %vm86, %v50, 0
  %v199 = vsel %vm86, %v51, 0
  %v202 = vsel %vm86, %v52, 0
  %v205 = vsel %vm86, %v53, 0
  %v208 = vsel %vm86, %v54, 0
  %v211 = vsel %vm86, %v55, 0
  %v214 = vsel %vm86, %v56, 0
  %v217 = vsel %vm86, %v57, 0
  %v220 = vsel %vm86, %v58, 0
  %v223 = vsel %vm86, %v59, 0
  %v226 = vsel %vm86, %v60, 0
  %v229 = vsel %vm86, %v61, 0
  %v232 = vsel %vm86, %v62, 0
  %v235 = vsel %vm86, %v63, 0
  %v238 = vsel %vm86, %v64, 0
  %v241 = vsel %vm86, %v65, 0
  %v244 = vsel %vm86, %v66, 0
  %v247 = vsel %vm86, %v67, 0
  %v250 = vsel %vm86, %v68, 0
  %v253 = vsel %vm86, %v69, 0
  %v256 = vsel %vm86, %v70, 0
  %v259 = vsel %vm86, %v71, 0
  %v262 = vsel %vm86, %v72, 0
  %v265 = vsel %vm86, %v73, 0
  %v268 = vsel %vm86, %v74, 0
  %v271 = vsel %vm86, %v75, 0
  %v274 = vsel %vm86, %v76, 0
  %v277 = vsel %vm86, %v77, 0
  %279 = vmatprep.subr.mxu0 0.0
  %280 = vmatpush1.msra.mxu0 %v78
  %281 = vmatprep.subr.mxu0 0.0
  %282 = vmatpush1.msra.mxu0 0.0
  %283 = vmatprep.subr.mxu0 0.0
  %284 = vmatpush1.msra.mxu0 0.0
  %285 = vmatprep.subr.mxu0 0.0
  %286 = vmatpush1.msra.mxu0 0.0
  %287 = vmatprep.subr.mxu0 0.0
  %288 = vmatpush1.msra.mxu0 0.0
  %289 = vmatprep.subr.mxu0 0.0
  %290 = vmatpush1.msra.mxu0 0.0
  %291 = vmatprep.subr.mxu0 0.0
  %292 = vmatpush1.msra.mxu0 0.0
  %293 = vmatprep.subr.mxu0 0.0
  %294 = vmatpush1.msra.mxu0 0.0
  %295 = vmatprep.subr.mxu0 0.0
  %296 = vmatpush1.msra.mxu0 0.0
  %297 = vmatprep.subr.mxu0 0.0
  %298 = vmatpush1.msra.mxu0 0.0
  %299 = vmatprep.subr.mxu0 0.0
  %300 = vmatpush1.msra.mxu0 0.0
  %301 = vmatprep.subr.mxu0 0.0
  %302 = vmatpush1.msra.mxu0 0.0
  %303 = vmatprep.subr.mxu0 0.0
  %304 = vmatpush1.msra.mxu0 0.0
  %305 = vmatprep.subr.mxu0 0.0
  %306 = vmatpush1.msra.mxu0 0.0
  %307 = vmatprep.subr.mxu0 0.0
  %308 = vmatpush1.msra.mxu0 0.0
  %309 = vmatprep.subr.mxu0 0.0
  %310 = vmatpush1.msra.mxu0 0.0
  %311 = vmatprep.subr.mxu0 0.0
  %312 = vmatpush1.msra.mxu0 0.0
  %313 = vmatprep.subr.mxu0 0.0
  %314 = vmatpush1.msra.mxu0 0.0
  %315 = vmatprep.subr.mxu0 0.0
  %316 = vmatpush1.msra.mxu0 0.0
  %317 = vmatprep.subr.mxu0 0.0
  %318 = vmatpush1.msra.mxu0 0.0
  %319 = vmatprep.subr.mxu0 0.0
  %320 = vmatpush1.msra.mxu0 0.0
  %321 = vmatprep.subr.mxu0 0.0
  %322 = vmatpush1.msra.mxu0 0.0
  %323 = vmatprep.subr.mxu0 0.0
  %324 = vmatpush1.msra.mxu0 0.0
  %325 = vmatprep.subr.mxu0 0.0
  %326 = vmatpush1.msra.mxu0 0.0
  %327 = vmatprep.subr.mxu0 0.0
  %328 = vmatpush1.msra.mxu0 0.0
  %329 = vmatprep.subr.mxu0 0.0
  %330 = vmatpush1.msra.mxu0 0.0
  %331 = vmatprep.subr.mxu0 0.0
  %332 = vmatpush1.msra.mxu0 0.0
  %333 = vmatprep.subr.mxu0 0.0
  %334 = vmatpush1.msra.mxu0 0.0
  %335 = vmatprep.subr.mxu0 0.0
  %336 = vmatpush1.msra.mxu0 0.0
  %337 = vmatprep.subr.mxu0 0.0
  %338 = vmatpush1.msra.mxu0 0.0
  %339 = vmatprep.subr.mxu0 0.0
  %340 = vmatpush1.msra.mxu0 0.0
  %341 = vmatprep.subr.mxu0 0.0
  %342 = vmatpush1.msra.mxu0 0.0
  %343 = vmatprep.mubr.f32.mxu0 0.0
  %344 = vmatmul.mubr.f32.gmra.mrb[0].mxu0 %v88
  %v345 = vpop.f32.mrb[0].mxu0
  %v346 = vadd.f32 %v84, %v345
  %v347 = vpop.f32.mrb[0].mxu0
  %348 = vmatprep.mubr.f32.mxu0 0.0
  %349 = vmatmul.mubr.f32.gmra.mrb[0].mxu0 %v91
  %v350 = vpop.f32.mrb[0].mxu0
  %v351 = vadd.f32 %v84, %v350
  %v352 = vpop.f32.mrb[0].mxu0
  %353 = vmatprep.mubr.f32.mxu0 0.0
  %354 = vmatmul.mubr.f32.gmra.mrb[0].mxu0 %v94
  %v355 = vpop.f32.mrb[0].mxu0
  %v356 = vadd.f32 %v84, %v355
  %v357 = vpop.f32.mrb[0].mxu0
  %358 = vmatprep.mubr.f32.mxu0 0.0
  %359 = vmatmul.mubr.f32.gmra.mrb[0].mxu0 %v97
  %v360 = vpop.f32.mrb[0].mxu0
  %v361 = vadd.f32 %v84, %v360
  %v362 = vpop.f32.mrb[0].mxu0
  %363 = vmatprep.mubr.f32.mxu0 0.0
  %364 = vmatmul.mubr.f32.gmra.mrb[0].mxu0 %v100
  %v365 = vpop.f32.mrb[0].mxu0
  %v366 = vadd.f32 %v84, %v365
  %v367 = vpop.f32.mrb[0].mxu0
  %368 = vmatprep.mubr.f32.mxu0 0.0
  %369 = vmatmul.mubr.f32.gmra.mrb[0].mxu0 %v103
  %v370 = vpop.f32.mrb[0].mxu0
  %v371 = vadd.f32 %v84, %v370
  %v372 = vpop.f32.mrb[0].mxu0
  %373 = vmatprep.mubr.f32.mxu0 0.0
  %374 = vmatmul.mubr.f32.gmra.mrb[0].mxu0 %v106
  %v375 = vpop.f32.mrb[0].mxu0
  %v376 = vadd.f32 %v84, %v375
  %v377 = vpop.f32.mrb[0].mxu0
  %378 = vmatprep.mubr.f32.mxu0 0.0
  %379 = vmatmul.mubr.f32.gmra.mrb[0].mxu0 %v109
  %v380 = vpop.f32.mrb[0].mxu0
  %v381 = vadd.f32 %v84, %v380
  %v382 = vpop.f32.mrb[0].mxu0
  %383 = vmatprep.mubr.f32.mxu0 0.0
  %384 = vmatmul.mubr.f32.gmra.mrb[0].mxu0 %v112
  %v385 = vpop.f32.mrb[0].mxu0
  %v386 = vadd.f32 %v84, %v385
  %v387 = vpop.f32.mrb[0].mxu0
  %388 = vmatprep.mubr.f32.mxu0 0.0
  %389 = vmatmul.mubr.f32.gmra.mrb[0].mxu0 %v115
  %v390 = vpop.f32.mrb[0].mxu0
  %v391 = vadd.f32 %v84, %v390
  %v392 = vpop.f32.mrb[0].mxu0
  %393 = vmatprep.mubr.f32.mxu0 0.0
  %394 = vmatmul.mubr.f32.gmra.mrb[0].mxu0 %v118
  %v395 = vpop.f32.mrb[0].mxu0
  %v396 = vadd.f32 %v84, %v395
  %v397 = vpop.f32.mrb[0].mxu0
  %398 = vmatprep.mubr.f32.mxu0 0.0
  %399 = vmatmul.mubr.f32.gmra.mrb[0].mxu0 %v121
  %v400 = vpop.f32.mrb[0].mxu0
  %v401 = vadd.f32 %v84, %v400
  %v402 = vpop.f32.mrb[0].mxu0
  %403 = vmatprep.mubr.f32.mxu0 0.0
  %404 = vmatmul.mubr.f32.gmra.mrb[0].mxu0 %v124
  %v405 = vpop.f32.mrb[0].mxu0
  %v406 = vadd.f32 %v84, %v405
  %v407 = vpop.f32.mrb[0].mxu0
  %408 = vmatprep.mubr.f32.mxu0 0.0
  %409 = vmatmul.mubr.f32.gmra.mrb[0].mxu0 %v127
  %v410 = vpop.f32.mrb[0].mxu0
  %v411 = vadd.f32 %v84, %v410
  %v412 = vpop.f32.mrb[0].mxu0
  %413 = vmatprep.mubr.f32.mxu0 0.0
  %414 = vmatmul.mubr.f32.gmra.mrb[0].mxu0 %v130
  %v415 = vpop.f32.mrb[0].mxu0
  %v416 = vadd.f32 %v84, %v415
  %v417 = vpop.f32.mrb[0].mxu0
  %418 = vmatprep.mubr.f32.mxu0 0.0
  %419 = vmatmul.mubr.f32.gmra.mrb[0].mxu0 %v133
  %v420 = vpop.f32.mrb[0].mxu0
  %v421 = vadd.f32 %v84, %v420
  %v422 = vpop.f32.mrb[0].mxu0
  %423 = vmatprep.mubr.f32.mxu0 0.0
  %424 = vmatmul.mubr.f32.gmra.mrb[0].mxu0 %v136
  %v425 = vpop.f32.mrb[0].mxu0
  %v426 = vadd.f32 %v84, %v425
  %v427 = vpop.f32.mrb[0].mxu0
  %428 = vmatprep.mubr.f32.mxu0 0.0
  %429 = vmatmul.mubr.f32.gmra.mrb[0].mxu0 %v139
  %v430 = vpop.f32.mrb[0].mxu0
  %v431 = vadd.f32 %v84, %v430
  %v432 = vpop.f32.mrb[0].mxu0
  %433 = vmatprep.mubr.f32.mxu0 0.0
  %434 = vmatmul.mubr.f32.gmra.mrb[0].mxu0 %v142
  %v435 = vpop.f32.mrb[0].mxu0
  %v436 = vadd.f32 %v84, %v435
  %v437 = vpop.f32.mrb[0].mxu0
  %438 = vmatprep.mubr.f32.mxu0 0.0
  %439 = vmatmul.mubr.f32.gmra.mrb[0].mxu0 %v145
  %v440 = vpop.f32.mrb[0].mxu0
  %v441 = vadd.f32 %v84, %v440
  %v442 = vpop.f32.mrb[0].mxu0
  %443 = vmatprep.mubr.f32.mxu0 0.0
  %444 = vmatmul.mubr.f32.gmra.mrb[0].mxu0 %v148
  %v445 = vpop.f32.mrb[0].mxu0
  %v446 = vadd.f32 %v84, %v445
  %v447 = vpop.f32.mrb[0].mxu0
  %448 = vmatprep.mubr.f32.mxu0 0.0
  %449 = vmatmul.mubr.f32.gmra.mrb[0].mxu0 %v151
  %v450 = vpop.f32.mrb[0].mxu0
  %v451 = vadd.f32 %v84, %v450
  %v452 = vpop.f32.mrb[0].mxu0
  %453 = vmatprep.mubr.f32.mxu0 0.0
  %454 = vmatmul.mubr.f32.gmra.mrb[0].mxu0 %v154
  %v455 = vpop.f32.mrb[0].mxu0
  %v456 = vadd.f32 %v84, %v455
  %v457 = vpop.f32.mrb[0].mxu0
  %458 = vmatprep.mubr.f32.mxu0 0.0
  %459 = vmatmul.mubr.f32.gmra.mrb[0].mxu0 %v157
  %v460 = vpop.f32.mrb[0].mxu0
  %v461 = vadd.f32 %v84, %v460
  %v462 = vpop.f32.mrb[0].mxu0
  %463 = vmatprep.mubr.f32.mxu0 0.0
  %464 = vmatmul.mubr.f32.gmra.mrb[0].mxu0 %v160
  %v465 = vpop.f32.mrb[0].mxu0
  %v466 = vadd.f32 %v84, %v465
  %v467 = vpop.f32.mrb[0].mxu0
  %468 = vmatprep.mubr.f32.mxu0 0.0
  %469 = vmatmul.mubr.f32.gmra.mrb[0].mxu0 %v163
  %v470 = vpop.f32.mrb[0].mxu0
  %v471 = vadd.f32 %v84, %v470
  %v472 = vpop.f32.mrb[0].mxu0
  %473 = vmatprep.mubr.f32.mxu0 0.0
  %474 = vmatmul.mubr.f32.gmra.mrb[0].mxu0 %v166
  %v475 = vpop.f32.mrb[0].mxu0
  %v476 = vadd.f32 %v84, %v475
  %v477 = vpop.f32.mrb[0].mxu0
  %478 = vmatprep.mubr.f32.mxu0 0.0
  %479 = vmatmul.mubr.f32.gmra.mrb[0].mxu0 %v169
  %v480 = vpop.f32.mrb[0].mxu0
  %v481 = vadd.f32 %v84, %v480
  %v482 = vpop.f32.mrb[0].mxu0
  %483 = vmatprep.mubr.f32.mxu0 0.0
  %484 = vmatmul.mubr.f32.gmra.mrb[0].mxu0 %v172
  %v485 = vpop.f32.mrb[0].mxu0
  %v486 = vadd.f32 %v84, %v485
  %v487 = vpop.f32.mrb[0].mxu0
  %488 = vmatprep.mubr.f32.mxu0 0.0
  %489 = vmatmul.mubr.f32.gmra.mrb[0].mxu0 %v175
  %v490 = vpop.f32.mrb[0].mxu0
  %v491 = vadd.f32 %v84, %v490
  %v492 = vpop.f32.mrb[0].mxu0
  %493 = vmatprep.mubr.f32.mxu0 0.0
  %494 = vmatmul.mubr.f32.gmra.mrb[0].mxu0 %v178
  %v495 = vpop.f32.mrb[0].mxu0
  %v496 = vadd.f32 %v84, %v495
  %v497 = vpop.f32.mrb[0].mxu0
  %498 = vmatprep.mubr.f32.mxu0 0.0
  %499 = vmatmul.mubr.f32.gmra.mrb[0].mxu0 %v181
  %v500 = vpop.f32.mrb[0].mxu0
  %v501 = vadd.f32 %v84, %v500
  %v502 = vpop.f32.mrb[0].mxu0
  %503 = vmatprep.mubr.f32.mxu0 0.0
  %504 = vmatmul.mubr.f32.gmra.mrb[0].mxu0 %v184
  %v505 = vpop.f32.mrb[0].mxu0
  %v506 = vadd.f32 %v84, %v505
  %v507 = vpop.f32.mrb[0].mxu0
  %508 = vmatprep.mubr.f32.mxu0 0.0
  %509 = vmatmul.mubr.f32.gmra.mrb[0].mxu0 %v187
  %v510 = vpop.f32.mrb[0].mxu0
  %v511 = vadd.f32 %v84, %v510
  %v512 = vpop.f32.mrb[0].mxu0
  %513 = vmatprep.mubr.f32.mxu0 0.0
  %514 = vmatmul.mubr.f32.gmra.mrb[0].mxu0 %v190
  %v515 = vpop.f32.mrb[0].mxu0
  %v516 = vadd.f32 %v84, %v515
  %v517 = vpop.f32.mrb[0].mxu0
  %518 = vmatprep.mubr.f32.mxu0 0.0
  %519 = vmatmul.mubr.f32.gmra.mrb[0].mxu0 %v193
  %v520 = vpop.f32.mrb[0].mxu0
  %v521 = vadd.f32 %v84, %v520
  %v522 = vpop.f32.mrb[0].mxu0
  %523 = vmatprep.mubr.f32.mxu0 0.0
  %524 = vmatmul.mubr.f32.gmra.mrb[0].mxu0 %v196
  %v525 = vpop.f32.mrb[0].mxu0
  %v526 = vadd.f32 %v84, %v525
  %v527 = vpop.f32.mrb[0].mxu0
  %528 = vmatprep.mubr.f32.mxu0 0.0
  %529 = vmatmul.mubr.f32.gmra.mrb[0].mxu0 %v199
  %v530 = vpop.f32.mrb[0].mxu0
  %v531 = vadd.f32 %v84, %v530
  %v532 = vpop.f32.mrb[0].mxu0
  %533 = vmatprep.mubr.f32.mxu0 0.0
  %534 = vmatmul.mubr.f32.gmra.mrb[0].mxu0 %v202
  %v535 = vpop.f32.mrb[0].mxu0
  %v536 = vadd.f32 %v84, %v535
  %v537 = vpop.f32.mrb[0].mxu0
  %538 = vmatprep.mubr.f32.mxu0 0.0
  %539 = vmatmul.mubr.f32.gmra.mrb[0].mxu0 %v205
  %v540 = vpop.f32.mrb[0].mxu0
  %v541 = vadd.f32 %v84, %v540
  %v542 = vpop.f32.mrb[0].mxu0
  %543 = vmatprep.mubr.f32.mxu0 0.0
  %544 = vmatmul.mubr.f32.gmra.mrb[0].mxu0 %v208
  %v545 = vpop.f32.mrb[0].mxu0
  %v546 = vadd.f32 %v84, %v545
  %v547 = vpop.f32.mrb[0].mxu0
  %548 = vmatprep.mubr.f32.mxu0 0.0
  %549 = vmatmul.mubr.f32.gmra.mrb[0].mxu0 %v211
  %v550 = vpop.f32.mrb[0].mxu0
  %v551 = vadd.f32 %v84, %v550
  %v552 = vpop.f32.mrb[0].mxu0
  %553 = vmatprep.mubr.f32.mxu0 0.0
  %554 = vmatmul.mubr.f32.gmra.mrb[0].mxu0 %v214
  %v555 = vpop.f32.mrb[0].mxu0
  %v556 = vadd.f32 %v84, %v555
  %v557 = vpop.f32.mrb[0].mxu0
  %558 = vmatprep.mubr.f32.mxu0 0.0
  %559 = vmatmul.mubr.f32.gmra.mrb[0].mxu0 %v217
  %v560 = vpop.f32.mrb[0].mxu0
  %v561 = vadd.f32 %v84, %v560
  %v562 = vpop.f32.mrb[0].mxu0
  %563 = vmatprep.mubr.f32.mxu0 0.0
  %564 = vmatmul.mubr.f32.gmra.mrb[0].mxu0 %v220
  %v565 = vpop.f32.mrb[0].mxu0
  %v566 = vadd.f32 %v84, %v565
  %v567 = vpop.f32.mrb[0].mxu0
  %568 = vmatprep.mubr.f32.mxu0 0.0
  %569 = vmatmul.mubr.f32.gmra.mrb[0].mxu0 %v223
  %v570 = vpop.f32.mrb[0].mxu0
  %v571 = vadd.f32 %v84, %v570
  %v572 = vpop.f32.mrb[0].mxu0
  %573 = vmatprep.mubr.f32.mxu0 0.0
  %574 = vmatmul.mubr.f32.gmra.mrb[0].mxu0 %v226
  %v575 = vpop.f32.mrb[0].mxu0
  %v576 = vadd.f32 %v84, %v575
  %v577 = vpop.f32.mrb[0].mxu0
  %578 = vmatprep.mubr.f32.mxu0 0.0
  %579 = vmatmul.mubr.f32.gmra.mrb[0].mxu0 %v229
  %v580 = vpop.f32.mrb[0].mxu0
  %v581 = vadd.f32 %v84, %v580
  %v582 = vpop.f32.mrb[0].mxu0
  %583 = vmatprep.mubr.f32.mxu0 0.0
  %584 = vmatmul.mubr.f32.gmra.mrb[0].mxu0 %v232
  %v585 = vpop.f32.mrb[0].mxu0
  %v586 = vadd.f32 %v84, %v585
  %v587 = vpop.f32.mrb[0].mxu0
  %588 = vmatprep.mubr.f32.mxu0 0.0
  %589 = vmatmul.mubr.f32.gmra.mrb[0].mxu0 %v235
  %v590 = vpop.f32.mrb[0].mxu0
  %v591 = vadd.f32 %v84, %v590
  %v592 = vpop.f32.mrb[0].mxu0
  %593 = vmatprep.mubr.f32.mxu0 0.0
  %594 = vmatmul.mubr.f32.gmra.mrb[0].mxu0 %v238
  %v595 = vpop.f32.mrb[0].mxu0
  %v596 = vadd.f32 %v84, %v595
  %v597 = vpop.f32.mrb[0].mxu0
  %598 = vmatprep.mubr.f32.mxu0 0.0
  %599 = vmatmul.mubr.f32.gmra.mrb[0].mxu0 %v241
  %v600 = vpop.f32.mrb[0].mxu0
  %v601 = vadd.f32 %v84, %v600
  %v602 = vpop.f32.mrb[0].mxu0
  %603 = vmatprep.mubr.f32.mxu0 0.0
  %604 = vmatmul.mubr.f32.gmra.mrb[0].mxu0 %v244
  %v605 = vpop.f32.mrb[0].mxu0
  %v606 = vadd.f32 %v84, %v605
  %v607 = vpop.f32.mrb[0].mxu0
  %608 = vmatprep.mubr.f32.mxu0 0.0
  %609 = vmatmul.mubr.f32.gmra.mrb[0].mxu0 %v247
  %v610 = vpop.f32.mrb[0].mxu0
  %v611 = vadd.f32 %v84, %v610
  %v612 = vpop.f32.mrb[0].mxu0
  %613 = vmatprep.mubr.f32.mxu0 0.0
  %614 = vmatmul.mubr.f32.gmra.mrb[0].mxu0 %v250
  %v615 = vpop.f32.mrb[0].mxu0
  %v616 = vadd.f32 %v84, %v615
  %v617 = vpop.f32.mrb[0].mxu0
  %618 = vmatprep.mubr.f32.mxu0 0.0
  %619 = vmatmul.mubr.f32.gmra.mrb[0].mxu0 %v253
  %v620 = vpop.f32.mrb[0].mxu0
  %v621 = vadd.f32 %v84, %v620
  %v622 = vpop.f32.mrb[0].mxu0
  %623 = vmatprep.mubr.f32.mxu0 0.0
  %624 = vmatmul.mubr.f32.gmra.mrb[0].mxu0 %v256
  %v625 = vpop.f32.mrb[0].mxu0
  %v626 = vadd.f32 %v84, %v625
  %v627 = vpop.f32.mrb[0].mxu0
  %628 = vmatprep.mubr.f32.mxu0 0.0
  %629 = vmatmul.mubr.f32.gmra.mrb[0].mxu0 %v259
  %v630 = vpop.f32.mrb[0].mxu0
  %v631 = vadd.f32 %v84, %v630
  %v632 = vpop.f32.mrb[0].mxu0
  %633 = vmatprep.mubr.f32.mxu0 0.0
  %634 = vmatmul.mubr.f32.gmra.mrb[0].mxu0 %v262
  %v635 = vpop.f32.mrb[0].mxu0
  %v636 = vadd.f32 %v84, %v635
  %v637 = vpop.f32.mrb[0].mxu0
  %638 = vmatprep.mubr.f32.mxu0 0.0
  %639 = vmatmul.mubr.f32.gmra.mrb[0].mxu0 %v265
  %v640 = vpop.f32.mrb[0].mxu0
  %v641 = vadd.f32 %v84, %v640
  %v642 = vpop.f32.mrb[0].mxu0
  %643 = vmatprep.mubr.f32.mxu0 0.0
  %644 = vmatmul.mubr.f32.gmra.mrb[0].mxu0 %v268
  %v645 = vpop.f32.mrb[0].mxu0
  %v646 = vadd.f32 %v84, %v645
  %v647 = vpop.f32.mrb[0].mxu0
  %648 = vmatprep.mubr.f32.mxu0 0.0
  %649 = vmatmul.mubr.f32.gmra.mrb[0].mxu0 %v271
  %v650 = vpop.f32.mrb[0].mxu0
  %v651 = vadd.f32 %v84, %v650
  %v652 = vpop.f32.mrb[0].mxu0
  %653 = vmatprep.mubr.f32.mxu0 0.0
  %654 = vmatmul.mubr.f32.gmra.mrb[0].mxu0 %v274
  %v655 = vpop.f32.mrb[0].mxu0
  %v656 = vadd.f32 %v84, %v655
  %v657 = vpop.f32.mrb[0].mxu0
  %658 = vmatprep.mubr.f32.mxu0 0.0
  %659 = vmatmul.mubr.f32.gmra.mrb[0].mxu0 %v277
  %v660 = vpop.f32.mrb[0].mxu0
  %v661 = vadd.f32 %v84, %v660
  %v662 = vpop.f32.mrb[0].mxu0
  %663 = vdwg.mxu0
  %v664 = vmax.f32 %v346, 0.0
  %v665 = vmax.f32 %v351, 0.0
  %v666 = vmax.f32 %v356, 0.0
  %v667 = vmax.f32 %v361, 0.0
  %v668 = vmax.f32 %v366, 0.0
  %v669 = vmax.f32 %v371, 0.0
  %v670 = vmax.f32 %v376, 0.0
  %v671 = vmax.f32 %v381, 0.0
  %v672 = vmax.f32 %v386, 0.0
  %v673 = vmax.f32 %v391, 0.0
  %v674 = vmax.f32 %v396, 0.0
  %v675 = vmax.f32 %v401, 0.0
  %v676 = vmax.f32 %v406, 0.0
  %v677 = vmax.f32 %v411, 0.0
  %v678 = vmax.f32 %v416, 0.0
  %v679 = vmax.f32 %v421, 0.0
  %v680 = vmax.f32 %v426, 0.0
  %v681 = vmax.f32 %v431, 0.0
  %v682 = vmax.f32 %v436, 0.0
  %v683 = vmax.f32 %v441, 0.0
  %v684 = vmax.f32 %v446, 0.0
  %v685 = vmax.f32 %v451, 0.0
  %v686 = vmax.f32 %v456, 0.0
  %v687 = vmax.f32 %v461, 0.0
  %v688 = vmax.f32 %v466, 0.0
  %v689 = vmax.f32 %v471, 0.0
  %v690 = vmax.f32 %v476, 0.0
  %v691 = vmax.f32 %v481, 0.0
  %v692 = vmax.f32 %v486, 0.0
  %v693 = vmax.f32 %v491, 0.0
  %v694 = vmax.f32 %v496, 0.0
  %v695 = vmax.f32 %v501, 0.0
  %v696 = vmax.f32 %v506, 0.0
  %v697 = vmax.f32 %v511, 0.0
  %v698 = vmax.f32 %v516, 0.0
  %v699 = vmax.f32 %v521, 0.0
  %v700 = vmax.f32 %v526, 0.0
  %v701 = vmax.f32 %v531, 0.0
  %v702 = vmax.f32 %v536, 0.0
  %v703 = vmax.f32 %v541, 0.0
  %v704 = vmax.f32 %v546, 0.0
  %v705 = vmax.f32 %v551, 0.0
  %v706 = vmax.f32 %v556, 0.0
  %v707 = vmax.f32 %v561, 0.0
  %v708 = vmax.f32 %v566, 0.0
  %v709 = vmax.f32 %v571, 0.0
  %v710 = vmax.f32 %v576, 0.0
  %v711 = vmax.f32 %v581, 0.0
  %v712 = vmax.f32 %v586, 0.0
  %v713 = vmax.f32 %v591, 0.0
  %v714 = vmax.f32 %v596, 0.0
  %v715 = vmax.f32 %v601, 0.0
  %v716 = vmax.f32 %v606, 0.0
  %v717 = vmax.f32 %v611, 0.0
  %v718 = vmax.f32 %v616, 0.0
  %v719 = vmax.f32 %v621, 0.0
  %v720 = vmax.f32 %v626, 0.0
  %v721 = vmax.f32 %v631, 0.0
  %v722 = vmax.f32 %v636, 0.0
  %v723 = vmax.f32 %v641, 0.0
  %v724 = vmax.f32 %v646, 0.0
  %v725 = vmax.f32 %v651, 0.0
  %v726 = vmax.f32 %v656, 0.0
  %v727 = vmax.f32 %v661, 0.0
  %vm728 = vcmask 31744
  %729 = vst.msk [vmem:[%s3] sm:$0xff] %vm728, %v664
  %730 = vst.msk [vmem:[%s3 + $0x8] sm:$0xff] %vm728, %v665
  %731 = vst.msk [vmem:[%s3 + $0x10] sm:$0xff] %vm728, %v666
  %732 = vst.msk [vmem:[%s3 + $0x18] sm:$0xff] %vm728, %v667
  %733 = vst.msk [vmem:[%s3 + $0x20] sm:$0xff] %vm728, %v668
  %734 = vst.msk [vmem:[%s3 + $0x28] sm:$0xff] %vm728, %v669
  %735 = vst.msk [vmem:[%s3 + $0x30] sm:$0xff] %vm728, %v670
  %736 = vst.msk [vmem:[%s3 + $0x38] sm:$0xff] %vm728, %v671
  %737 = vst.msk [vmem:[%s3 + $0x40] sm:$0xff] %vm728, %v672
  %738 = vst.msk [vmem:[%s3 + $0x48] sm:$0xff] %vm728, %v673
  %739 = vst.msk [vmem:[%s3 + $0x50] sm:$0xff] %vm728, %v674
  %740 = vst.msk [vmem:[%s3 + $0x58] sm:$0xff] %vm728, %v675
  %741 = vst.msk [vmem:[%s3 + $0x60] sm:$0xff] %vm728, %v676
  %742 = vst.msk [vmem:[%s3 + $0x68] sm:$0xff] %vm728, %v677
  %743 = vst.msk [vmem:[%s3 + $0x70] sm:$0xff] %vm728, %v678
  %744 = vst.msk [vmem:[%s3 + $0x78] sm:$0xff] %vm728, %v679
  %745 = vst.msk [vmem:[%s3 + $0x80] sm:$0xff] %vm728, %v680
  %746 = vst.msk [vmem:[%s3 + $0x88] sm:$0xff] %vm728, %v681
  %747 = vst.msk [vmem:[%s3 + $0x90] sm:$0xff] %vm728, %v682
  %748 = vst.msk [vmem:[%s3 + $0x98] sm:$0xff] %vm728, %v683
  %749 = vst.msk [vmem:[%s3 + $0xa0] sm:$0xff] %vm728, %v684
  %750 = vst.msk [vmem:[%s3 + $0xa8] sm:$0xff] %vm728, %v685
  %751 = vst.msk [vmem:[%s3 + $0xb0] sm:$0xff] %vm728, %v686
  %752 = vst.msk [vmem:[%s3 + $0xb8] sm:$0xff] %vm728, %v687
  %753 = vst.msk [vmem:[%s3 + $0xc0] sm:$0xff] %vm728, %v688
  %754 = vst.msk [vmem:[%s3 + $0xc8] sm:$0xff] %vm728, %v689
  %755 = vst.msk [vmem:[%s3 + $0xd0] sm:$0xff] %vm728, %v690
  %756 = vst.msk [vmem:[%s3 + $0xd8] sm:$0xff] %vm728, %v691
  %757 = vst.msk [vmem:[%s3 + $0xe0] sm:$0xff] %vm728, %v692
  %758 = vst.msk [vmem:[%s3 + $0xe8] sm:$0xff] %vm728, %v693
  %759 = vst.msk [vmem:[%s3 + $0xf0] sm:$0xff] %vm728, %v694
  %760 = vst.msk [vmem:[%s3 + $0xf8] sm:$0xff] %vm728, %v695
  %761 = vst.msk [vmem:[%s3 + $0x100] sm:$0xff] %vm728, %v696
  %762 = vst.msk [vmem:[%s3 + $0x108] sm:$0xff] %vm728, %v697
  %763 = vst.msk [vmem:[%s3 + $0x110] sm:$0xff] %vm728, %v698
  %764 = vst.msk [vmem:[%s3 + $0x118] sm:$0xff] %vm728, %v699
  %765 = vst.msk [vmem:[%s3 + $0x120] sm:$0xff] %vm728, %v700
  %766 = vst.msk [vmem:[%s3 + $0x128] sm:$0xff] %vm728, %v701
  %767 = vst.msk [vmem:[%s3 + $0x130] sm:$0xff] %vm728, %v702
  %768 = vst.msk [vmem:[%s3 + $0x138] sm:$0xff] %vm728, %v703
  %769 = vst.msk [vmem:[%s3 + $0x140] sm:$0xff] %vm728, %v704
  %770 = vst.msk [vmem:[%s3 + $0x148] sm:$0xff] %vm728, %v705
  %771 = vst.msk [vmem:[%s3 + $0x150] sm:$0xff] %vm728, %v706
  %772 = vst.msk [vmem:[%s3 + $0x158] sm:$0xff] %vm728, %v707
  %773 = vst.msk [vmem:[%s3 + $0x160] sm:$0xff] %vm728, %v708
  %774 = vst.msk [vmem:[%s3 + $0x168] sm:$0xff] %vm728, %v709
  %775 = vst.msk [vmem:[%s3 + $0x170] sm:$0xff] %vm728, %v710
  %776 = vst.msk [vmem:[%s3 + $0x178] sm:$0xff] %vm728, %v711
  %777 = vst.msk [vmem:[%s3 + $0x180] sm:$0xff] %vm728, %v712
  %778 = vst.msk [vmem:[%s3 + $0x188] sm:$0xff] %vm728, %v713
  %779 = vst.msk [vmem:[%s3 + $0x190] sm:$0xff] %vm728, %v714
  %780 = vst.msk [vmem:[%s3 + $0x198] sm:$0xff] %vm728, %v715
  %781 = vst.msk [vmem:[%s3 + $0x1a0] sm:$0xff] %vm728, %v716
  %782 = vst.msk [vmem:[%s3 + $0x1a8] sm:$0xff] %vm728, %v717
  %783 = vst.msk [vmem:[%s3 + $0x1b0] sm:$0xff] %vm728, %v718
  %784 = vst.msk [vmem:[%s3 + $0x1b8] sm:$0xff] %vm728, %v719
  %785 = vst.msk [vmem:[%s3 + $0x1c0] sm:$0xff] %vm728, %v720
  %786 = vst.msk [vmem:[%s3 + $0x1c8] sm:$0xff] %vm728, %v721
  %787 = vst.msk [vmem:[%s3 + $0x1d0] sm:$0xff] %vm728, %v722
  %788 = vst.msk [vmem:[%s3 + $0x1d8] sm:$0xff] %vm728, %v723
  %789 = vst.msk [vmem:[%s3 + $0x1e0] sm:$0xff] %vm728, %v724
  %790 = vst.msk [vmem:[%s3 + $0x1e8] sm:$0xff] %vm728, %v725
  %791 = vst.msk [vmem:[%s3 + $0x1f0] sm:$0xff] %vm728, %v726
  %792 = vst.msk [vmem:[%s3 + $0x1f8] sm:$0xff] %vm728, %v727
  // Predicated region
  $region14: #{bottleneck_forward.3} parent=0 // pred_check
    _
  $region15: #{bottleneck_forward.3} parent=0 // pred_check_branch
    %794 = sbr.rel (0) target = $region17
  $region16: #{bottleneck_forward.3} parent=0 // pred_region
    _
  $region17: #{bottleneck_forward.3} parent=0 // pred_fallthru
    _
  // Predicated region
  $region18: #{bottleneck_forward.3} parent=0 // pred_check
    _
  $region19: #{bottleneck_forward.3} parent=0 // pred_check_branch
    %796 = sbr.rel (0) target = $region21
  $region20: #{bottleneck_forward.3} parent=0 // pred_region
    _
  $region21: #{bottleneck_forward.3} parent=0 // pred_fallthru
    _

// kernel: bottleneck_forward.5
$region0: #{bottleneck_forward.5}
  #allocation0 [shape = 'u32[]', space=smem, size = 0x4, offset = 0x4, fixed_abs, tag = 'smem constant byte address 0x4 - core index']
  #allocation1 [shape = 'u32[144,128]{1,0:T(1,128)}', space=vmem, size = 0x12000, scoped, tag = 'internal scratch']
  %s0 = inlined_call_operand.vmem [shape: f32[512,4], index: 0, kind: input, shape index: {}]
  %s1 = inlined_call_operand.vmem [shape: f32[4,16], index: 1, kind: input, shape index: {}]
  %s2 = inlined_call_operand.vmem [shape: f32[512,8], index: 2, kind: input, shape index: {}]
  %s3 = inlined_call_operand.vmem [shape: f32[8,16], index: 3, kind: input, shape index: {}]
  %s4 = inlined_call_operand.vmem [shape: f32[1,16], index: 4, kind: input, shape index: {}]
  %s5 = inlined_call_operand.vmem [shape: f32[512,16], index: 5, kind: output, shape index: {}]
  %s6 = sld [smem:[#allocation0]]
  $region30: #{bottleneck_forward.5} parent=0
    _
  %s8 = ssub.s32 1, %s6
  %s9 = scalar_select 0, %s8, %s6
  // Predicated region
  $region2: #{bottleneck_forward.5} parent=0 // pred_check
    _
  $region3: #{bottleneck_forward.5} parent=0 // pred_check_branch
    %11 = sbr.rel (0) target = $region5
  $region4: #{bottleneck_forward.5} parent=0 // pred_region
    _
  $region5: #{bottleneck_forward.5} parent=0 // pred_fallthru
    _
  // Predicated region
  $region6: #{bottleneck_forward.5} parent=0 // pred_check
    _
  $region7: #{bottleneck_forward.5} parent=0 // pred_check_branch
    %13 = sbr.rel (0) target = $region9
  $region8: #{bottleneck_forward.5} parent=0 // pred_region
    _
  $region9: #{bottleneck_forward.5} parent=0 // pred_fallthru
    _
  // Predicated region
  $region10: #{bottleneck_forward.5} parent=0 // pred_check
    _
  $region11: #{bottleneck_forward.5} parent=0 // pred_check_branch
    %15 = sbr.rel (0) target = $region13
  $region12: #{bottleneck_forward.5} parent=0 // pred_region
    _
  $region13: #{bottleneck_forward.5} parent=0 // pred_fallthru
    _
  // Predicated region
  $region14: #{bottleneck_forward.5} parent=0 // pred_check
    _
  $region15: #{bottleneck_forward.5} parent=0 // pred_check_branch
    %17 = sbr.rel (0) target = $region17
  $region16: #{bottleneck_forward.5} parent=0 // pred_region
    _
  $region17: #{bottleneck_forward.5} parent=0 // pred_fallthru
    _
  // Predicated region
  $region18: #{bottleneck_forward.5} parent=0 // pred_check
    _
  $region19: #{bottleneck_forward.5} parent=0 // pred_check_branch
    %19 = sbr.rel (0) target = $region21
  $region20: #{bottleneck_forward.5} parent=0 // pred_region
    _
  $region21: #{bottleneck_forward.5} parent=0 // pred_fallthru
    _
  %v20 = vld [vmem:[%s0] sm:$0xff]
  %v21 = vld [vmem:[%s0 + $0x8] sm:$0xff]
  %v22 = vld [vmem:[%s0 + $0x10] sm:$0xff]
  %v23 = vld [vmem:[%s0 + $0x18] sm:$0xff]
  %v24 = vld [vmem:[%s0 + $0x20] sm:$0xff]
  %v25 = vld [vmem:[%s0 + $0x28] sm:$0xff]
  %v26 = vld [vmem:[%s0 + $0x30] sm:$0xff]
  %v27 = vld [vmem:[%s0 + $0x38] sm:$0xff]
  %v28 = vld [vmem:[%s0 + $0x40] sm:$0xff]
  %v29 = vld [vmem:[%s0 + $0x48] sm:$0xff]
  %v30 = vld [vmem:[%s0 + $0x50] sm:$0xff]
  %v31 = vld [vmem:[%s0 + $0x58] sm:$0xff]
  %v32 = vld [vmem:[%s0 + $0x60] sm:$0xff]
  %v33 = vld [vmem:[%s0 + $0x68] sm:$0xff]
  %v34 = vld [vmem:[%s0 + $0x70] sm:$0xff]
  %v35 = vld [vmem:[%s0 + $0x78] sm:$0xff]
  %v36 = vld [vmem:[%s0 + $0x80] sm:$0xff]
  %v37 = vld [vmem:[%s0 + $0x88] sm:$0xff]
  %v38 = vld [vmem:[%s0 + $0x90] sm:$0xff]
  %v39 = vld [vmem:[%s0 + $0x98] sm:$0xff]
  %v40 = vld [vmem:[%s0 + $0xa0] sm:$0xff]
  %v41 = vld [vmem:[%s0 + $0xa8] sm:$0xff]
  %v42 = vld [vmem:[%s0 + $0xb0] sm:$0xff]
  %v43 = vld [vmem:[%s0 + $0xb8] sm:$0xff]
  %v44 = vld [vmem:[%s0 + $0xc0] sm:$0xff]
  %v45 = vld [vmem:[%s0 + $0xc8] sm:$0xff]
  %v46 = vld [vmem:[%s0 + $0xd0] sm:$0xff]
  %v47 = vld [vmem:[%s0 + $0xd8] sm:$0xff]
  %v48 = vld [vmem:[%s0 + $0xe0] sm:$0xff]
  %v49 = vld [vmem:[%s0 + $0xe8] sm:$0xff]
  %v50 = vld [vmem:[%s0 + $0xf0] sm:$0xff]
  %v51 = vld [vmem:[%s0 + $0xf8] sm:$0xff]
  %v52 = vld [vmem:[%s0 + $0x100] sm:$0xff]
  %v53 = vld [vmem:[%s0 + $0x108] sm:$0xff]
  %v54 = vld [vmem:[%s0 + $0x110] sm:$0xff]
  %v55 = vld [vmem:[%s0 + $0x118] sm:$0xff]
  %v56 = vld [vmem:[%s0 + $0x120] sm:$0xff]
  %v57 = vld [vmem:[%s0 + $0x128] sm:$0xff]
  %v58 = vld [vmem:[%s0 + $0x130] sm:$0xff]
  %v59 = vld [vmem:[%s0 + $0x138] sm:$0xff]
  %v60 = vld [vmem:[%s0 + $0x140] sm:$0xff]
  %v61 = vld [vmem:[%s0 + $0x148] sm:$0xff]
  %v62 = vld [vmem:[%s0 + $0x150] sm:$0xff]
  %v63 = vld [vmem:[%s0 + $0x158] sm:$0xff]
  %v64 = vld [vmem:[%s0 + $0x160] sm:$0xff]
  %v65 = vld [vmem:[%s0 + $0x168] sm:$0xff]
  %v66 = vld [vmem:[%s0 + $0x170] sm:$0xff]
  %v67 = vld [vmem:[%s0 + $0x178] sm:$0xff]
  %v68 = vld [vmem:[%s0 + $0x180] sm:$0xff]
  %v69 = vld [vmem:[%s0 + $0x188] sm:$0xff]
  %v70 = vld [vmem:[%s0 + $0x190] sm:$0xff]
  %v71 = vld [vmem:[%s0 + $0x198] sm:$0xff]
  %v72 = vld [vmem:[%s0 + $0x1a0] sm:$0xff]
  %v73 = vld [vmem:[%s0 + $0x1a8] sm:$0xff]
  %v74 = vld [vmem:[%s0 + $0x1b0] sm:$0xff]
  %v75 = vld [vmem:[%s0 + $0x1b8] sm:$0xff]
  %v76 = vld [vmem:[%s0 + $0x1c0] sm:$0xff]
  %v77 = vld [vmem:[%s0 + $0x1c8] sm:$0xff]
  %v78 = vld [vmem:[%s0 + $0x1d0] sm:$0xff]
  %v79 = vld [vmem:[%s0 + $0x1d8] sm:$0xff]
  %v80 = vld [vmem:[%s0 + $0x1e0] sm:$0xff]
  %v81 = vld [vmem:[%s0 + $0x1e8] sm:$0xff]
  %v82 = vld [vmem:[%s0 + $0x1f0] sm:$0xff]
  %v83 = vld [vmem:[%s0 + $0x1f8] sm:$0xff]
  %v84 = vld [vmem:[%s1] sm:$0xf]
  %v85 = vld [vmem:[%s2] sm:$0xff]
  %v86 = vld [vmem:[%s2 + $0x8] sm:$0xff]
  %v87 = vld [vmem:[%s2 + $0x10] sm:$0xff]
  %v88 = vld [vmem:[%s2 + $0x18] sm:$0xff]
  %v89 = vld [vmem:[%s2 + $0x20] sm:$0xff]
  %v90 = vld [vmem:[%s2 + $0x28] sm:$0xff]
  %v91 = vld [vmem:[%s2 + $0x30] sm:$0xff]
  %v92 = vld [vmem:[%s2 + $0x38] sm:$0xff]
  %v93 = vld [vmem:[%s2 + $0x40] sm:$0xff]
  %v94 = vld [vmem:[%s2 + $0x48] sm:$0xff]
  %v95 = vld [vmem:[%s2 + $0x50] sm:$0xff]
  %v96 = vld [vmem:[%s2 + $0x58] sm:$0xff]
  %v97 = vld [vmem:[%s2 + $0x60] sm:$0xff]
  %v98 = vld [vmem:[%s2 + $0x68] sm:$0xff]
  %v99 = vld [vmem:[%s2 + $0x70] sm:$0xff]
  %v100 = vld [vmem:[%s2 + $0x78] sm:$0xff]
  %v101 = vld [vmem:[%s2 + $0x80] sm:$0xff]
  %v102 = vld [vmem:[%s2 + $0x88] sm:$0xff]
  %v103 = vld [vmem:[%s2 + $0x90] sm:$0xff]
  %v104 = vld [vmem:[%s2 + $0x98] sm:$0xff]
  %v105 = vld [vmem:[%s2 + $0xa0] sm:$0xff]
  %v106 = vld [vmem:[%s2 + $0xa8] sm:$0xff]
  %v107 = vld [vmem:[%s2 + $0xb0] sm:$0xff]
  %v108 = vld [vmem:[%s2 + $0xb8] sm:$0xff]
  %v109 = vld [vmem:[%s2 + $0xc0] sm:$0xff]
  %v110 = vld [vmem:[%s2 + $0xc8] sm:$0xff]
  %v111 = vld [vmem:[%s2 + $0xd0] sm:$0xff]
  %v112 = vld [vmem:[%s2 + $0xd8] sm:$0xff]
  %v113 = vld [vmem:[%s2 + $0xe0] sm:$0xff]
  %v114 = vld [vmem:[%s2 + $0xe8] sm:$0xff]
  %v115 = vld [vmem:[%s2 + $0xf0] sm:$0xff]
  %v116 = vld [vmem:[%s2 + $0xf8] sm:$0xff]
  %v117 = vld [vmem:[%s2 + $0x100] sm:$0xff]
  %v118 = vld [vmem:[%s2 + $0x108] sm:$0xff]
  %v119 = vld [vmem:[%s2 + $0x110] sm:$0xff]
  %v120 = vld [vmem:[%s2 + $0x118] sm:$0xff]
  %v121 = vld [vmem:[%s2 + $0x120] sm:$0xff]
  %v122 = vld [vmem:[%s2 + $0x128] sm:$0xff]
  %v123 = vld [vmem:[%s2 + $0x130] sm:$0xff]
  %v124 = vld [vmem:[%s2 + $0x138] sm:$0xff]
  %v125 = vld [vmem:[%s2 + $0x140] sm:$0xff]
  %v126 = vld [vmem:[%s2 + $0x148] sm:$0xff]
  %v127 = vld [vmem:[%s2 + $0x150] sm:$0xff]
  %v128 = vld [vmem:[%s2 + $0x158] sm:$0xff]
  %v129 = vld [vmem:[%s2 + $0x160] sm:$0xff]
  %v130 = vld [vmem:[%s2 + $0x168] sm:$0xff]
  %v131 = vld [vmem:[%s2 + $0x170] sm:$0xff]
  %v132 = vld [vmem:[%s2 + $0x178] sm:$0xff]
  %v133 = vld [vmem:[%s2 + $0x180] sm:$0xff]
  %v134 = vld [vmem:[%s2 + $0x188] sm:$0xff]
  %v135 = vld [vmem:[%s2 + $0x190] sm:$0xff]
  %v136 = vld [vmem:[%s2 + $0x198] sm:$0xff]
  %v137 = vld [vmem:[%s2 + $0x1a0] sm:$0xff]
  %v138 = vld [vmem:[%s2 + $0x1a8] sm:$0xff]
  %v139 = vld [vmem:[%s2 + $0x1b0] sm:$0xff]
  %v140 = vld [vmem:[%s2 + $0x1b8] sm:$0xff]
  %v141 = vld [vmem:[%s2 + $0x1c0] sm:$0xff]
  %v142 = vld [vmem:[%s2 + $0x1c8] sm:$0xff]
  %v143 = vld [vmem:[%s2 + $0x1d0] sm:$0xff]
  %v144 = vld [vmem:[%s2 + $0x1d8] sm:$0xff]
  %v145 = vld [vmem:[%s2 + $0x1e0] sm:$0xff]
  %v146 = vld [vmem:[%s2 + $0x1e8] sm:$0xff]
  %v147 = vld [vmem:[%s2 + $0x1f0] sm:$0xff]
  %v148 = vld [vmem:[%s2 + $0x1f8] sm:$0xff]
  %v149 = vld [vmem:[%s3] sm:$0xff]
  %vm150 = vcmask 64512
  %v152 = vsel %vm150, %v85, 0
  %v155 = vsel %vm150, %v86, 0
  %v158 = vsel %vm150, %v87, 0
  %v161 = vsel %vm150, %v88, 0
  %v164 = vsel %vm150, %v89, 0
  %v167 = vsel %vm150, %v90, 0
  %v170 = vsel %vm150, %v91, 0
  %v173 = vsel %vm150, %v92, 0
  %v176 = vsel %vm150, %v93, 0
  %v179 = vsel %vm150, %v94, 0
  %v182 = vsel %vm150, %v95, 0
  %v185 = vsel %vm150, %v96, 0
  %v188 = vsel %vm150, %v97, 0
  %v191 = vsel %vm150, %v98, 0
  %v194 = vsel %vm150, %v99, 0
  %v197 = vsel %vm150, %v100, 0
  %v200 = vsel %vm150, %v101, 0
  %v203 = vsel %vm150, %v102, 0
  %v206 = vsel %vm150, %v103, 0
  %v209 = vsel %vm150, %v104, 0
  %v212 = vsel %vm150, %v105, 0
  %v215 = vsel %vm150, %v106, 0
  %v218 = vsel %vm150, %v107, 0
  %v221 = vsel %vm150, %v108, 0
  %v224 = vsel %vm150, %v109, 0
  %v227 = vsel %vm150, %v110, 0
  %v230 = vsel %vm150, %v111, 0
  %v233 = vsel %vm150, %v112, 0
  %v236 = vsel %vm150, %v113, 0
  %v239 = vsel %vm150, %v114, 0
  %v242 = vsel %vm150, %v115, 0
  %v245 = vsel %vm150, %v116, 0
  %v248 = vsel %vm150, %v117, 0
  %v251 = vsel %vm150, %v118, 0
  %v254 = vsel %vm150, %v119, 0
  %v257 = vsel %vm150, %v120, 0
  %v260 = vsel %vm150, %v121, 0
  %v263 = vsel %vm150, %v122, 0
  %v266 = vsel %vm150, %v123, 0
  %v269 = vsel %vm150, %v124, 0
  %v272 = vsel %vm150, %v125, 0
  %v275 = vsel %vm150, %v126, 0
  %v278 = vsel %vm150, %v127, 0
  %v281 = vsel %vm150, %v128, 0
  %v284 = vsel %vm150, %v129, 0
  %v287 = vsel %vm150, %v130, 0
  %v290 = vsel %vm150, %v131, 0
  %v293 = vsel %vm150, %v132, 0
  %v296 = vsel %vm150, %v133, 0
  %v299 = vsel %vm150, %v134, 0
  %v302 = vsel %vm150, %v135, 0
  %v305 = vsel %vm150, %v136, 0
  %v308 = vsel %vm150, %v137, 0
  %v311 = vsel %vm150, %v138, 0
  %v314 = vsel %vm150, %v139, 0
  %v317 = vsel %vm150, %v140, 0
  %v320 = vsel %vm150, %v141, 0
  %v323 = vsel %vm150, %v142, 0
  %v326 = vsel %vm150, %v143, 0
  %v329 = vsel %vm150, %v144, 0
  %v332 = vsel %vm150, %v145, 0
  %v335 = vsel %vm150, %v146, 0
  %v338 = vsel %vm150, %v147, 0
  %v341 = vsel %vm150, %v148, 0
  %343 = vmatprep.subr.mxu0 0.0
  %344 = vmatpush1.msra.mxu0 %v149
  %345 = vmatprep.subr.mxu0 0.0
  %346 = vmatpush1.msra.mxu0 0.0
  %347 = vmatprep.subr.mxu0 0.0
  %348 = vmatpush1.msra.mxu0 0.0
  %349 = vmatprep.subr.mxu0 0.0
  %350 = vmatpush1.msra.mxu0 0.0
  %351 = vmatprep.subr.mxu0 0.0
  %352 = vmatpush1.msra.mxu0 0.0
  %353 = vmatprep.subr.mxu0 0.0
  %354 = vmatpush1.msra.mxu0 0.0
  %355 = vmatprep.subr.mxu0 0.0
  %356 = vmatpush1.msra.mxu0 0.0
  %357 = vmatprep.subr.mxu0 0.0
  %358 = vmatpush1.msra.mxu0 0.0
  %359 = vmatprep.subr.mxu0 0.0
  %360 = vmatpush1.msra.mxu0 0.0
  %361 = vmatprep.subr.mxu0 0.0
  %362 = vmatpush1.msra.mxu0 0.0
  %363 = vmatprep.subr.mxu0 0.0
  %364 = vmatpush1.msra.mxu0 0.0
  %365 = vmatprep.subr.mxu0 0.0
  %366 = vmatpush1.msra.mxu0 0.0
  %367 = vmatprep.subr.mxu0 0.0
  %368 = vmatpush1.msra.mxu0 0.0
  %369 = vmatprep.subr.mxu0 0.0
  %370 = vmatpush1.msra.mxu0 0.0
  %371 = vmatprep.subr.mxu0 0.0
  %372 = vmatpush1.msra.mxu0 0.0
  %373 = vmatprep.subr.mxu0 0.0
  %374 = vmatpush1.msra.mxu0 0.0
  %375 = vmatprep.subr.mxu0 0.0
  %376 = vmatpush1.msra.mxu0 0.0
  %377 = vmatprep.subr.mxu0 0.0
  %378 = vmatpush1.msra.mxu0 0.0
  %379 = vmatprep.subr.mxu0 0.0
  %380 = vmatpush1.msra.mxu0 0.0
  %381 = vmatprep.subr.mxu0 0.0
  %382 = vmatpush1.msra.mxu0 0.0
  %383 = vmatprep.subr.mxu0 0.0
  %384 = vmatpush1.msra.mxu0 0.0
  %385 = vmatprep.subr.mxu0 0.0
  %386 = vmatpush1.msra.mxu0 0.0
  %387 = vmatprep.subr.mxu0 0.0
  %388 = vmatpush1.msra.mxu0 0.0
  %389 = vmatprep.subr.mxu0 0.0
  %390 = vmatpush1.msra.mxu0 0.0
  %391 = vmatprep.subr.mxu0 0.0
  %392 = vmatpush1.msra.mxu0 0.0
  %393 = vmatprep.subr.mxu0 0.0
  %394 = vmatpush1.msra.mxu0 0.0
  %395 = vmatprep.subr.mxu0 0.0
  %396 = vmatpush1.msra.mxu0 0.0
  %397 = vmatprep.subr.mxu0 0.0
  %398 = vmatpush1.msra.mxu0 0.0
  %399 = vmatprep.subr.mxu0 0.0
  %400 = vmatpush1.msra.mxu0 0.0
  %401 = vmatprep.subr.mxu0 0.0
  %402 = vmatpush1.msra.mxu0 0.0
  %403 = vmatprep.subr.mxu0 0.0
  %404 = vmatpush1.msra.mxu0 0.0
  %405 = vmatprep.subr.mxu0 0.0
  %406 = vmatpush1.msra.mxu0 0.0
  %407 = vmatprep.mubr.f32.mxu0 0.0
  %408 = vmatmul.mubr.f32.gmra.mrb[0].mxu0 %v152
  %v409 = vpop.f32.mrb[0].mxu0
  %v410 = vadd.f32 0.0, %v409
  %v411 = vpop.f32.mrb[0].mxu0
  %412 = vmatprep.mubr.f32.mxu0 0.0
  %413 = vmatmul.mubr.f32.gmra.mrb[0].mxu0 %v155
  %v414 = vpop.f32.mrb[0].mxu0
  %v415 = vadd.f32 0.0, %v414
  %v416 = vpop.f32.mrb[0].mxu0
  %417 = vmatprep.mubr.f32.mxu0 0.0
  %418 = vmatmul.mubr.f32.gmra.mrb[0].mxu0 %v158
  %v419 = vpop.f32.mrb[0].mxu0
  %v420 = vadd.f32 0.0, %v419
  %v421 = vpop.f32.mrb[0].mxu0
  %422 = vmatprep.mubr.f32.mxu0 0.0
  %423 = vmatmul.mubr.f32.gmra.mrb[0].mxu0 %v161
  %v424 = vpop.f32.mrb[0].mxu0
  %v425 = vadd.f32 0.0, %v424
  %v426 = vpop.f32.mrb[0].mxu0
  %427 = vmatprep.mubr.f32.mxu0 0.0
  %428 = vmatmul.mubr.f32.gmra.mrb[0].mxu0 %v164
  %v429 = vpop.f32.mrb[0].mxu0
  %v430 = vadd.f32 0.0, %v429
  %v431 = vpop.f32.mrb[0].mxu0
  %432 = vmatprep.mubr.f32.mxu0 0.0
  %433 = vmatmul.mubr.f32.gmra.mrb[0].mxu0 %v167
  %v434 = vpop.f32.mrb[0].mxu0
  %v435 = vadd.f32 0.0, %v434
  %v436 = vpop.f32.mrb[0].mxu0
  %437 = vmatprep.mubr.f32.mxu0 0.0
  %438 = vmatmul.mubr.f32.gmra.mrb[0].mxu0 %v170
  %v439 = vpop.f32.mrb[0].mxu0
  %v440 = vadd.f32 0.0, %v439
  %v441 = vpop.f32.mrb[0].mxu0
  %442 = vmatprep.mubr.f32.mxu0 0.0
  %443 = vmatmul.mubr.f32.gmra.mrb[0].mxu0 %v173
  %v444 = vpop.f32.mrb[0].mxu0
  %v445 = vadd.f32 0.0, %v444
  %v446 = vpop.f32.mrb[0].mxu0
  %447 = vmatprep.mubr.f32.mxu0 0.0
  %448 = vmatmul.mubr.f32.gmra.mrb[0].mxu0 %v176
  %v449 = vpop.f32.mrb[0].mxu0
  %v450 = vadd.f32 0.0, %v449
  %v451 = vpop.f32.mrb[0].mxu0
  %452 = vmatprep.mubr.f32.mxu0 0.0
  %453 = vmatmul.mubr.f32.gmra.mrb[0].mxu0 %v179
  %v454 = vpop.f32.mrb[0].mxu0
  %v455 = vadd.f32 0.0, %v454
  %v456 = vpop.f32.mrb[0].mxu0
  %457 = vmatprep.mubr.f32.mxu0 0.0
  %458 = vmatmul.mubr.f32.gmra.mrb[0].mxu0 %v182
  %v459 = vpop.f32.mrb[0].mxu0
  %v460 = vadd.f32 0.0, %v459
  %v461 = vpop.f32.mrb[0].mxu0
  %462 = vmatprep.mubr.f32.mxu0 0.0
  %463 = vmatmul.mubr.f32.gmra.mrb[0].mxu0 %v185
  %v464 = vpop.f32.mrb[0].mxu0
  %v465 = vadd.f32 0.0, %v464
  %v466 = vpop.f32.mrb[0].mxu0
  %467 = vmatprep.mubr.f32.mxu0 0.0
  %468 = vmatmul.mubr.f32.gmra.mrb[0].mxu0 %v188
  %v469 = vpop.f32.mrb[0].mxu0
  %v470 = vadd.f32 0.0, %v469
  %v471 = vpop.f32.mrb[0].mxu0
  %472 = vmatprep.mubr.f32.mxu0 0.0
  %473 = vmatmul.mubr.f32.gmra.mrb[0].mxu0 %v191
  %v474 = vpop.f32.mrb[0].mxu0
  %v475 = vadd.f32 0.0, %v474
  %v476 = vpop.f32.mrb[0].mxu0
  %477 = vmatprep.mubr.f32.mxu0 0.0
  %478 = vmatmul.mubr.f32.gmra.mrb[0].mxu0 %v194
  %v479 = vpop.f32.mrb[0].mxu0
  %v480 = vadd.f32 0.0, %v479
  %v481 = vpop.f32.mrb[0].mxu0
  %482 = vmatprep.mubr.f32.mxu0 0.0
  %483 = vmatmul.mubr.f32.gmra.mrb[0].mxu0 %v197
  %v484 = vpop.f32.mrb[0].mxu0
  %v485 = vadd.f32 0.0, %v484
  %v486 = vpop.f32.mrb[0].mxu0
  %487 = vmatprep.mubr.f32.mxu0 0.0
  %488 = vmatmul.mubr.f32.gmra.mrb[0].mxu0 %v200
  %v489 = vpop.f32.mrb[0].mxu0
  %v490 = vadd.f32 0.0, %v489
  %v491 = vpop.f32.mrb[0].mxu0
  %492 = vmatprep.mubr.f32.mxu0 0.0
  %493 = vmatmul.mubr.f32.gmra.mrb[0].mxu0 %v203
  %v494 = vpop.f32.mrb[0].mxu0
  %v495 = vadd.f32 0.0, %v494
  %v496 = vpop.f32.mrb[0].mxu0
  %497 = vmatprep.mubr.f32.mxu0 0.0
  %498 = vmatmul.mubr.f32.gmra.mrb[0].mxu0 %v206
  %v499 = vpop.f32.mrb[0].mxu0
  %v500 = vadd.f32 0.0, %v499
  %v501 = vpop.f32.mrb[0].mxu0
  %502 = vmatprep.mubr.f32.mxu0 0.0
  %503 = vmatmul.mubr.f32.gmra.mrb[0].mxu0 %v209
  %v504 = vpop.f32.mrb[0].mxu0
  %v505 = vadd.f32 0.0, %v504
  %v506 = vpop.f32.mrb[0].mxu0
  %507 = vmatprep.mubr.f32.mxu0 0.0
  %508 = vmatmul.mubr.f32.gmra.mrb[0].mxu0 %v212
  %v509 = vpop.f32.mrb[0].mxu0
  %v510 = vadd.f32 0.0, %v509
  %v511 = vpop.f32.mrb[0].mxu0
  %512 = vmatprep.mubr.f32.mxu0 0.0
  %513 = vmatmul.mubr.f32.gmra.mrb[0].mxu0 %v215
  %v514 = vpop.f32.mrb[0].mxu0
  %v515 = vadd.f32 0.0, %v514
  %v516 = vpop.f32.mrb[0].mxu0
  %517 = vmatprep.mubr.f32.mxu0 0.0
  %518 = vmatmul.mubr.f32.gmra.mrb[0].mxu0 %v218
  %v519 = vpop.f32.mrb[0].mxu0
  %v520 = vadd.f32 0.0, %v519
  %v521 = vpop.f32.mrb[0].mxu0
  %522 = vmatprep.mubr.f32.mxu0 0.0
  %523 = vmatmul.mubr.f32.gmra.mrb[0].mxu0 %v221
  %v524 = vpop.f32.mrb[0].mxu0
  %v525 = vadd.f32 0.0, %v524
  %v526 = vpop.f32.mrb[0].mxu0
  %527 = vmatprep.mubr.f32.mxu0 0.0
  %528 = vmatmul.mubr.f32.gmra.mrb[0].mxu0 %v224
  %v529 = vpop.f32.mrb[0].mxu0
  %v530 = vadd.f32 0.0, %v529
  %v531 = vpop.f32.mrb[0].mxu0
  %532 = vmatprep.mubr.f32.mxu0 0.0
  %533 = vmatmul.mubr.f32.gmra.mrb[0].mxu0 %v227
  %v534 = vpop.f32.mrb[0].mxu0
  %v535 = vadd.f32 0.0, %v534
  %v536 = vpop.f32.mrb[0].mxu0
  %537 = vmatprep.mubr.f32.mxu0 0.0
  %538 = vmatmul.mubr.f32.gmra.mrb[0].mxu0 %v230
  %v539 = vpop.f32.mrb[0].mxu0
  %v540 = vadd.f32 0.0, %v539
  %v541 = vpop.f32.mrb[0].mxu0
  %542 = vmatprep.mubr.f32.mxu0 0.0
  %543 = vmatmul.mubr.f32.gmra.mrb[0].mxu0 %v233
  %v544 = vpop.f32.mrb[0].mxu0
  %v545 = vadd.f32 0.0, %v544
  %v546 = vpop.f32.mrb[0].mxu0
  %547 = vmatprep.mubr.f32.mxu0 0.0
  %548 = vmatmul.mubr.f32.gmra.mrb[0].mxu0 %v236
  %v549 = vpop.f32.mrb[0].mxu0
  %v550 = vadd.f32 0.0, %v549
  %v551 = vpop.f32.mrb[0].mxu0
  %552 = vmatprep.mubr.f32.mxu0 0.0
  %553 = vmatmul.mubr.f32.gmra.mrb[0].mxu0 %v239
  %v554 = vpop.f32.mrb[0].mxu0
  %v555 = vadd.f32 0.0, %v554
  %v556 = vpop.f32.mrb[0].mxu0
  %557 = vmatprep.mubr.f32.mxu0 0.0
  %558 = vmatmul.mubr.f32.gmra.mrb[0].mxu0 %v242
  %v559 = vpop.f32.mrb[0].mxu0
  %v560 = vadd.f32 0.0, %v559
  %v561 = vpop.f32.mrb[0].mxu0
  %562 = vmatprep.mubr.f32.mxu0 0.0
  %563 = vmatmul.mubr.f32.gmra.mrb[0].mxu0 %v245
  %v564 = vpop.f32.mrb[0].mxu0
  %v565 = vadd.f32 0.0, %v564
  %v566 = vpop.f32.mrb[0].mxu0
  %567 = vmatprep.mubr.f32.mxu0 0.0
  %568 = vmatmul.mubr.f32.gmra.mrb[0].mxu0 %v248
  %v569 = vpop.f32.mrb[0].mxu0
  %v570 = vadd.f32 0.0, %v569
  %v571 = vpop.f32.mrb[0].mxu0
  %572 = vmatprep.mubr.f32.mxu0 0.0
  %573 = vmatmul.mubr.f32.gmra.mrb[0].mxu0 %v251
  %v574 = vpop.f32.mrb[0].mxu0
  %v575 = vadd.f32 0.0, %v574
  %v576 = vpop.f32.mrb[0].mxu0
  %577 = vmatprep.mubr.f32.mxu0 0.0
  %578 = vmatmul.mubr.f32.gmra.mrb[0].mxu0 %v254
  %v579 = vpop.f32.mrb[0].mxu0
  %v580 = vadd.f32 0.0, %v579
  %v581 = vpop.f32.mrb[0].mxu0
  %582 = vmatprep.mubr.f32.mxu0 0.0
  %583 = vmatmul.mubr.f32.gmra.mrb[0].mxu0 %v257
  %v584 = vpop.f32.mrb[0].mxu0
  %v585 = vadd.f32 0.0, %v584
  %v586 = vpop.f32.mrb[0].mxu0
  %587 = vmatprep.mubr.f32.mxu0 0.0
  %588 = vmatmul.mubr.f32.gmra.mrb[0].mxu0 %v260
  %v589 = vpop.f32.mrb[0].mxu0
  %v590 = vadd.f32 0.0, %v589
  %v591 = vpop.f32.mrb[0].mxu0
  %592 = vmatprep.mubr.f32.mxu0 0.0
  %593 = vmatmul.mubr.f32.gmra.mrb[0].mxu0 %v263
  %v594 = vpop.f32.mrb[0].mxu0
  %v595 = vadd.f32 0.0, %v594
  %v596 = vpop.f32.mrb[0].mxu0
  %597 = vmatprep.mubr.f32.mxu0 0.0
  %598 = vmatmul.mubr.f32.gmra.mrb[0].mxu0 %v266
  %v599 = vpop.f32.mrb[0].mxu0
  %v600 = vadd.f32 0.0, %v599
  %v601 = vpop.f32.mrb[0].mxu0
  %602 = vmatprep.mubr.f32.mxu0 0.0
  %603 = vmatmul.mubr.f32.gmra.mrb[0].mxu0 %v269
  %v604 = vpop.f32.mrb[0].mxu0
  %v605 = vadd.f32 0.0, %v604
  %v606 = vpop.f32.mrb[0].mxu0
  %607 = vmatprep.mubr.f32.mxu0 0.0
  %608 = vmatmul.mubr.f32.gmra.mrb[0].mxu0 %v272
  %v609 = vpop.f32.mrb[0].mxu0
  %v610 = vadd.f32 0.0, %v609
  %v611 = vpop.f32.mrb[0].mxu0
  %612 = vmatprep.mubr.f32.mxu0 0.0
  %613 = vmatmul.mubr.f32.gmra.mrb[0].mxu0 %v275
  %v614 = vpop.f32.mrb[0].mxu0
  %v615 = vadd.f32 0.0, %v614
  %v616 = vpop.f32.mrb[0].mxu0
  %617 = vmatprep.mubr.f32.mxu0 0.0
  %618 = vmatmul.mubr.f32.gmra.mrb[0].mxu0 %v278
  %v619 = vpop.f32.mrb[0].mxu0
  %v620 = vadd.f32 0.0, %v619
  %v621 = vpop.f32.mrb[0].mxu0
  %622 = vmatprep.mubr.f32.mxu0 0.0
  %623 = vmatmul.mubr.f32.gmra.mrb[0].mxu0 %v281
  %v624 = vpop.f32.mrb[0].mxu0
  %v625 = vadd.f32 0.0, %v624
  %v626 = vpop.f32.mrb[0].mxu0
  %627 = vmatprep.mubr.f32.mxu0 0.0
  %628 = vmatmul.mubr.f32.gmra.mrb[0].mxu0 %v284
  %v629 = vpop.f32.mrb[0].mxu0
  %v630 = vadd.f32 0.0, %v629
  %v631 = vpop.f32.mrb[0].mxu0
  %632 = vmatprep.mubr.f32.mxu0 0.0
  %633 = vmatmul.mubr.f32.gmra.mrb[0].mxu0 %v287
  %v634 = vpop.f32.mrb[0].mxu0
  %v635 = vadd.f32 0.0, %v634
  %v636 = vpop.f32.mrb[0].mxu0
  %637 = vmatprep.mubr.f32.mxu0 0.0
  %638 = vmatmul.mubr.f32.gmra.mrb[0].mxu0 %v290
  %v639 = vpop.f32.mrb[0].mxu0
  %v640 = vadd.f32 0.0, %v639
  %v641 = vpop.f32.mrb[0].mxu0
  %642 = vmatprep.mubr.f32.mxu0 0.0
  %643 = vmatmul.mubr.f32.gmra.mrb[0].mxu0 %v293
  %v644 = vpop.f32.mrb[0].mxu0
  %v645 = vadd.f32 0.0, %v644
  %v646 = vpop.f32.mrb[0].mxu0
  %647 = vmatprep.mubr.f32.mxu0 0.0
  %648 = vmatmul.mubr.f32.gmra.mrb[0].mxu0 %v296
  %v649 = vpop.f32.mrb[0].mxu0
  %v650 = vadd.f32 0.0, %v649
  %v651 = vpop.f32.mrb[0].mxu0
  %652 = vmatprep.mubr.f32.mxu0 0.0
  %653 = vmatmul.mubr.f32.gmra.mrb[0].mxu0 %v299
  %v654 = vpop.f32.mrb[0].mxu0
  %v655 = vadd.f32 0.0, %v654
  %v656 = vpop.f32.mrb[0].mxu0
  %657 = vmatprep.mubr.f32.mxu0 0.0
  %658 = vmatmul.mubr.f32.gmra.mrb[0].mxu0 %v302
  %v659 = vpop.f32.mrb[0].mxu0
  %v660 = vadd.f32 0.0, %v659
  %v661 = vpop.f32.mrb[0].mxu0
  %662 = vmatprep.mubr.f32.mxu0 0.0
  %663 = vmatmul.mubr.f32.gmra.mrb[0].mxu0 %v305
  %v664 = vpop.f32.mrb[0].mxu0
  %v665 = vadd.f32 0.0, %v664
  %v666 = vpop.f32.mrb[0].mxu0
  %667 = vmatprep.mubr.f32.mxu0 0.0
  %668 = vmatmul.mubr.f32.gmra.mrb[0].mxu0 %v308
  %v669 = vpop.f32.mrb[0].mxu0
  %v670 = vadd.f32 0.0, %v669
  %v671 = vpop.f32.mrb[0].mxu0
  %672 = vmatprep.mubr.f32.mxu0 0.0
  %673 = vmatmul.mubr.f32.gmra.mrb[0].mxu0 %v311
  %v674 = vpop.f32.mrb[0].mxu0
  %v675 = vadd.f32 0.0, %v674
  %v676 = vpop.f32.mrb[0].mxu0
  %677 = vmatprep.mubr.f32.mxu0 0.0
  %678 = vmatmul.mubr.f32.gmra.mrb[0].mxu0 %v314
  %v679 = vpop.f32.mrb[0].mxu0
  %v680 = vadd.f32 0.0, %v679
  %v681 = vpop.f32.mrb[0].mxu0
  %682 = vmatprep.mubr.f32.mxu0 0.0
  %683 = vmatmul.mubr.f32.gmra.mrb[0].mxu0 %v317
  %v684 = vpop.f32.mrb[0].mxu0
  %v685 = vadd.f32 0.0, %v684
  %v686 = vpop.f32.mrb[0].mxu0
  %687 = vmatprep.mubr.f32.mxu0 0.0
  %688 = vmatmul.mubr.f32.gmra.mrb[0].mxu0 %v320
  %v689 = vpop.f32.mrb[0].mxu0
  %v690 = vadd.f32 0.0, %v689
  %v691 = vpop.f32.mrb[0].mxu0
  %692 = vmatprep.mubr.f32.mxu0 0.0
  %693 = vmatmul.mubr.f32.gmra.mrb[0].mxu0 %v323
  %v694 = vpop.f32.mrb[0].mxu0
  %v695 = vadd.f32 0.0, %v694
  %v696 = vpop.f32.mrb[0].mxu0
  %697 = vmatprep.mubr.f32.mxu0 0.0
  %698 = vmatmul.mubr.f32.gmra.mrb[0].mxu0 %v326
  %v699 = vpop.f32.mrb[0].mxu0
  %v700 = vadd.f32 0.0, %v699
  %v701 = vpop.f32.mrb[0].mxu0
  %702 = vmatprep.mubr.f32.mxu0 0.0
  %703 = vmatmul.mubr.f32.gmra.mrb[0].mxu0 %v329
  %v704 = vpop.f32.mrb[0].mxu0
  %v705 = vadd.f32 0.0, %v704
  %v706 = vpop.f32.mrb[0].mxu0
  %707 = vmatprep.mubr.f32.mxu0 0.0
  %708 = vmatmul.mubr.f32.gmra.mrb[0].mxu0 %v332
  %v709 = vpop.f32.mrb[0].mxu0
  %v710 = vadd.f32 0.0, %v709
  %v711 = vpop.f32.mrb[0].mxu0
  %712 = vmatprep.mubr.f32.mxu0 0.0
  %713 = vmatmul.mubr.f32.gmra.mrb[0].mxu0 %v335
  %v714 = vpop.f32.mrb[0].mxu0
  %v715 = vadd.f32 0.0, %v714
  %v716 = vpop.f32.mrb[0].mxu0
  %717 = vmatprep.mubr.f32.mxu0 0.0
  %718 = vmatmul.mubr.f32.gmra.mrb[0].mxu0 %v338
  %v719 = vpop.f32.mrb[0].mxu0
  %v720 = vadd.f32 0.0, %v719
  %v721 = vpop.f32.mrb[0].mxu0
  %722 = vmatprep.mubr.f32.mxu0 0.0
  %723 = vmatmul.mubr.f32.gmra.mrb[0].mxu0 %v341
  %v724 = vpop.f32.mrb[0].mxu0
  %v725 = vadd.f32 0.0, %v724
  %v726 = vpop.f32.mrb[0].mxu0
  %727 = vdwg.mxu0
  %vm728 = vcmask 31744
  %v730 = vsel %vm728, %v20, 0
  %v733 = vsel %vm728, %v21, 0
  %v736 = vsel %vm728, %v22, 0
  %v739 = vsel %vm728, %v23, 0
  %v742 = vsel %vm728, %v24, 0
  %v745 = vsel %vm728, %v25, 0
  %v748 = vsel %vm728, %v26, 0
  %v751 = vsel %vm728, %v27, 0
  %v754 = vsel %vm728, %v28, 0
  %v757 = vsel %vm728, %v29, 0
  %v760 = vsel %vm728, %v30, 0
  %v763 = vsel %vm728, %v31, 0
  %v766 = vsel %vm728, %v32, 0
  %v769 = vsel %vm728, %v33, 0
  %v772 = vsel %vm728, %v34, 0
  %v775 = vsel %vm728, %v35, 0
  %v778 = vsel %vm728, %v36, 0
  %v781 = vsel %vm728, %v37, 0
  %v784 = vsel %vm728, %v38, 0
  %v787 = vsel %vm728, %v39, 0
  %v790 = vsel %vm728, %v40, 0
  %v793 = vsel %vm728, %v41, 0
  %v796 = vsel %vm728, %v42, 0
  %v799 = vsel %vm728, %v43, 0
  %v802 = vsel %vm728, %v44, 0
  %v805 = vsel %vm728, %v45, 0
  %v808 = vsel %vm728, %v46, 0
  %v811 = vsel %vm728, %v47, 0
  %v814 = vsel %vm728, %v48, 0
  %v817 = vsel %vm728, %v49, 0
  %v820 = vsel %vm728, %v50, 0
  %v823 = vsel %vm728, %v51, 0
  %v826 = vsel %vm728, %v52, 0
  %v829 = vsel %vm728, %v53, 0
  %v832 = vsel %vm728, %v54, 0
  %v835 = vsel %vm728, %v55, 0
  %v838 = vsel %vm728, %v56, 0
  %v841 = vsel %vm728, %v57, 0
  %v844 = vsel %vm728, %v58, 0
  %v847 = vsel %vm728, %v59, 0
  %v850 = vsel %vm728, %v60, 0
  %v853 = vsel %vm728, %v61, 0
  %v856 = vsel %vm728, %v62, 0
  %v859 = vsel %vm728, %v63, 0
  %v862 = vsel %vm728, %v64, 0
  %v865 = vsel %vm728, %v65, 0
  %v868 = vsel %vm728, %v66, 0
  %v871 = vsel %vm728, %v67, 0
  %v874 = vsel %vm728, %v68, 0
  %v877 = vsel %vm728, %v69, 0
  %v880 = vsel %vm728, %v70, 0
  %v883 = vsel %vm728, %v71, 0
  %v886 = vsel %vm728, %v72, 0
  %v889 = vsel %vm728, %v73, 0
  %v892 = vsel %vm728, %v74, 0
  %v895 = vsel %vm728, %v75, 0
  %v898 = vsel %vm728, %v76, 0
  %v901 = vsel %vm728, %v77, 0
  %v904 = vsel %vm728, %v78, 0
  %v907 = vsel %vm728, %v79, 0
  %v910 = vsel %vm728, %v80, 0
  %v913 = vsel %vm728, %v81, 0
  %v916 = vsel %vm728, %v82, 0
  %v919 = vsel %vm728, %v83, 0
  %vm921 = vcmask 1043456
  %v923 = vsel %vm921, %v84, 0
  %925 = vmatprep.subr.mxu0 0.0
  %926 = vmatpush1.msra.mxu0 %v923
  %927 = vmatprep.subr.mxu0 0.0
  %928 = vmatpush1.msra.mxu0 0.0
  %929 = vmatprep.subr.mxu0 0.0
  %930 = vmatpush1.msra.mxu0 0.0
  %931 = vmatprep.subr.mxu0 0.0
  %932 = vmatpush1.msra.mxu0 0.0
  %933 = vmatprep.subr.mxu0 0.0
  %934 = vmatpush1.msra.mxu0 0.0
  %935 = vmatprep.subr.mxu0 0.0
  %936 = vmatpush1.msra.mxu0 0.0
  %937 = vmatprep.subr.mxu0 0.0
  %938 = vmatpush1.msra.mxu0 0.0
  %939 = vmatprep.subr.mxu0 0.0
  %940 = vmatpush1.msra.mxu0 0.0
  %941 = vmatprep.subr.mxu0 0.0
  %942 = vmatpush1.msra.mxu0 0.0
  %943 = vmatprep.subr.mxu0 0.0
  %944 = vmatpush1.msra.mxu0 0.0
  %945 = vmatprep.subr.mxu0 0.0
  %946 = vmatpush1.msra.mxu0 0.0
  %947 = vmatprep.subr.mxu0 0.0
  %948 = vmatpush1.msra.mxu0 0.0
  %949 = vmatprep.subr.mxu0 0.0
  %950 = vmatpush1.msra.mxu0 0.0
  %951 = vmatprep.subr.mxu0 0.0
  %952 = vmatpush1.msra.mxu0 0.0
  %953 = vmatprep.subr.mxu0 0.0
  %954 = vmatpush1.msra.mxu0 0.0
  %955 = vmatprep.subr.mxu0 0.0
  %956 = vmatpush1.msra.mxu0 0.0
  %957 = vmatprep.subr.mxu0 0.0
  %958 = vmatpush1.msra.mxu0 0.0
  %959 = vmatprep.subr.mxu0 0.0
  %960 = vmatpush1.msra.mxu0 0.0
  %961 = vmatprep.subr.mxu0 0.0
  %962 = vmatpush1.msra.mxu0 0.0
  %963 = vmatprep.subr.mxu0 0.0
  %964 = vmatpush1.msra.mxu0 0.0
  %965 = vmatprep.subr.mxu0 0.0
  %966 = vmatpush1.msra.mxu0 0.0
  %967 = vmatprep.subr.mxu0 0.0
  %968 = vmatpush1.msra.mxu0 0.0
  %969 = vmatprep.subr.mxu0 0.0
  %970 = vmatpush1.msra.mxu0 0.0
  %971 = vmatprep.subr.mxu0 0.0
  %972 = vmatpush1.msra.mxu0 0.0
  %973 = vmatprep.subr.mxu0 0.0
  %974 = vmatpush1.msra.mxu0 0.0
  %975 = vmatprep.subr.mxu0 0.0
  %976 = vmatpush1.msra.mxu0 0.0
  %977 = vmatprep.subr.mxu0 0.0
  %978 = vmatpush1.msra.mxu0 0.0
  %979 = vmatprep.subr.mxu0 0.0
  %980 = vmatpush1.msra.mxu0 0.0
  %981 = vmatprep.subr.mxu0 0.0
  %982 = vmatpush1.msra.mxu0 0.0
  %983 = vmatprep.subr.mxu0 0.0
  %984 = vmatpush1.msra.mxu0 0.0
  %985 = vmatprep.subr.mxu0 0.0
  %986 = vmatpush1.msra.mxu0 0.0
  %987 = vmatprep.subr.mxu0 0.0
  %988 = vmatpush1.msra.mxu0 0.0
  %989 = vmatprep.mubr.f32.mxu0 0.0
  %990 = vmatmul.mubr.f32.gmra.mrb[0].mxu0 %v730
  %v991 = vpop.f32.mrb[0].mxu0
  %v992 = vadd.f32 %v410, %v991
  %v993 = vpop.f32.mrb[0].mxu0
  %994 = vmatprep.mubr.f32.mxu0 0.0
  %995 = vmatmul.mubr.f32.gmra.mrb[0].mxu0 %v733
  %v996 = vpop.f32.mrb[0].mxu0
  %v997 = vadd.f32 %v415, %v996
  %v998 = vpop.f32.mrb[0].mxu0
  %999 = vmatprep.mubr.f32.mxu0 0.0
  %1000 = vmatmul.mubr.f32.gmra.mrb[0].mxu0 %v736
  %v1001 = vpop.f32.mrb[0].mxu0
  %v1002 = vadd.f32 %v420, %v1001
  %v1003 = vpop.f32.mrb[0].mxu0
  %1004 = vmatprep.mubr.f32.mxu0 0.0
  %1005 = vmatmul.mubr.f32.gmra.mrb[0].mxu0 %v739
  %v1006 = vpop.f32.mrb[0].mxu0
  %v1007 = vadd.f32 %v425, %v1006
  %v1008 = vpop.f32.mrb[0].mxu0
  %1009 = vmatprep.mubr.f32.mxu0 0.0
  %1010 = vmatmul.mubr.f32.gmra.mrb[0].mxu0 %v742
  %v1011 = vpop.f32.mrb[0].mxu0
  %v1012 = vadd.f32 %v430, %v1011
  %v1013 = vpop.f32.mrb[0].mxu0
  %1014 = vmatprep.mubr.f32.mxu0 0.0
  %1015 = vmatmul.mubr.f32.gmra.mrb[0].mxu0 %v745
  %v1016 = vpop.f32.mrb[0].mxu0
  %v1017 = vadd.f32 %v435, %v1016
  %v1018 = vpop.f32.mrb[0].mxu0
  %1019 = vmatprep.mubr.f32.mxu0 0.0
  %1020 = vmatmul.mubr.f32.gmra.mrb[0].mxu0 %v748
  %v1021 = vpop.f32.mrb[0].mxu0
  %v1022 = vadd.f32 %v440, %v1021
  %v1023 = vpop.f32.mrb[0].mxu0
  %1024 = vmatprep.mubr.f32.mxu0 0.0
  %1025 = vmatmul.mubr.f32.gmra.mrb[0].mxu0 %v751
  %v1026 = vpop.f32.mrb[0].mxu0
  %v1027 = vadd.f32 %v445, %v1026
  %v1028 = vpop.f32.mrb[0].mxu0
  %1029 = vmatprep.mubr.f32.mxu0 0.0
  %1030 = vmatmul.mubr.f32.gmra.mrb[0].mxu0 %v754
  %v1031 = vpop.f32.mrb[0].mxu0
  %v1032 = vadd.f32 %v450, %v1031
  %v1033 = vpop.f32.mrb[0].mxu0
  %1034 = vmatprep.mubr.f32.mxu0 0.0
  %1035 = vmatmul.mubr.f32.gmra.mrb[0].mxu0 %v757
  %v1036 = vpop.f32.mrb[0].mxu0
  %v1037 = vadd.f32 %v455, %v1036
  %v1038 = vpop.f32.mrb[0].mxu0
  %1039 = vmatprep.mubr.f32.mxu0 0.0
  %1040 = vmatmul.mubr.f32.gmra.mrb[0].mxu0 %v760
  %v1041 = vpop.f32.mrb[0].mxu0
  %v1042 = vadd.f32 %v460, %v1041
  %v1043 = vpop.f32.mrb[0].mxu0
  %1044 = vmatprep.mubr.f32.mxu0 0.0
  %1045 = vmatmul.mubr.f32.gmra.mrb[0].mxu0 %v763
  %v1046 = vpop.f32.mrb[0].mxu0
  %v1047 = vadd.f32 %v465, %v1046
  %v1048 = vpop.f32.mrb[0].mxu0
  %1049 = vmatprep.mubr.f32.mxu0 0.0
  %1050 = vmatmul.mubr.f32.gmra.mrb[0].mxu0 %v766
  %v1051 = vpop.f32.mrb[0].mxu0
  %v1052 = vadd.f32 %v470, %v1051
  %v1053 = vpop.f32.mrb[0].mxu0
  %1054 = vmatprep.mubr.f32.mxu0 0.0
  %1055 = vmatmul.mubr.f32.gmra.mrb[0].mxu0 %v769
  %v1056 = vpop.f32.mrb[0].mxu0
  %v1057 = vadd.f32 %v475, %v1056
  %v1058 = vpop.f32.mrb[0].mxu0
  %1059 = vmatprep.mubr.f32.mxu0 0.0
  %1060 = vmatmul.mubr.f32.gmra.mrb[0].mxu0 %v772
  %v1061 = vpop.f32.mrb[0].mxu0
  %v1062 = vadd.f32 %v480, %v1061
  %v1063 = vpop.f32.mrb[0].mxu0
  %1064 = vmatprep.mubr.f32.mxu0 0.0
  %1065 = vmatmul.mubr.f32.gmra.mrb[0].mxu0 %v775
  %v1066 = vpop.f32.mrb[0].mxu0
  %v1067 = vadd.f32 %v485, %v1066
  %v1068 = vpop.f32.mrb[0].mxu0
  %1069 = vmatprep.mubr.f32.mxu0 0.0
  %1070 = vmatmul.mubr.f32.gmra.mrb[0].mxu0 %v778
  %v1071 = vpop.f32.mrb[0].mxu0
  %v1072 = vadd.f32 %v490, %v1071
  %v1073 = vpop.f32.mrb[0].mxu0
  %1074 = vmatprep.mubr.f32.mxu0 0.0
  %1075 = vmatmul.mubr.f32.gmra.mrb[0].mxu0 %v781
  %v1076 = vpop.f32.mrb[0].mxu0
  %v1077 = vadd.f32 %v495, %v1076
  %v1078 = vpop.f32.mrb[0].mxu0
  %1079 = vmatprep.mubr.f32.mxu0 0.0
  %1080 = vmatmul.mubr.f32.gmra.mrb[0].mxu0 %v784
  %v1081 = vpop.f32.mrb[0].mxu0
  %v1082 = vadd.f32 %v500, %v1081
  %v1083 = vpop.f32.mrb[0].mxu0
  %1084 = vmatprep.mubr.f32.mxu0 0.0
  %1085 = vmatmul.mubr.f32.gmra.mrb[0].mxu0 %v787
  %v1086 = vpop.f32.mrb[0].mxu0
  %v1087 = vadd.f32 %v505, %v1086
  %v1088 = vpop.f32.mrb[0].mxu0
  %1089 = vmatprep.mubr.f32.mxu0 0.0
  %1090 = vmatmul.mubr.f32.gmra.mrb[0].mxu0 %v790
  %v1091 = vpop.f32.mrb[0].mxu0
  %v1092 = vadd.f32 %v510, %v1091
  %v1093 = vpop.f32.mrb[0].mxu0
  %1094 = vmatprep.mubr.f32.mxu0 0.0
  %1095 = vmatmul.mubr.f32.gmra.mrb[0].mxu0 %v793
  %v1096 = vpop.f32.mrb[0].mxu0
  %v1097 = vadd.f32 %v515, %v1096
  %v1098 = vpop.f32.mrb[0].mxu0
  %1099 = vmatprep.mubr.f32.mxu0 0.0
  %1100 = vmatmul.mubr.f32.gmra.mrb[0].mxu0 %v796
  %v1101 = vpop.f32.mrb[0].mxu0
  %v1102 = vadd.f32 %v520, %v1101
  %v1103 = vpop.f32.mrb[0].mxu0
  %1104 = vmatprep.mubr.f32.mxu0 0.0
  %1105 = vmatmul.mubr.f32.gmra.mrb[0].mxu0 %v799
  %v1106 = vpop.f32.mrb[0].mxu0
  %v1107 = vadd.f32 %v525, %v1106
  %v1108 = vpop.f32.mrb[0].mxu0
  %1109 = vmatprep.mubr.f32.mxu0 0.0
  %1110 = vmatmul.mubr.f32.gmra.mrb[0].mxu0 %v802
  %v1111 = vpop.f32.mrb[0].mxu0
  %v1112 = vadd.f32 %v530, %v1111
  %v1113 = vpop.f32.mrb[0].mxu0
  %1114 = vmatprep.mubr.f32.mxu0 0.0
  %1115 = vmatmul.mubr.f32.gmra.mrb[0].mxu0 %v805
  %v1116 = vpop.f32.mrb[0].mxu0
  %v1117 = vadd.f32 %v535, %v1116
  %v1118 = vpop.f32.mrb[0].mxu0
  %1119 = vmatprep.mubr.f32.mxu0 0.0
  %1120 = vmatmul.mubr.f32.gmra.mrb[0].mxu0 %v808
  %v1121 = vpop.f32.mrb[0].mxu0
  %v1122 = vadd.f32 %v540, %v1121
  %v1123 = vpop.f32.mrb[0].mxu0
  %1124 = vmatprep.mubr.f32.mxu0 0.0
  %1125 = vmatmul.mubr.f32.gmra.mrb[0].mxu0 %v811
  %v1126 = vpop.f32.mrb[0].mxu0
  %v1127 = vadd.f32 %v545, %v1126
  %v1128 = vpop.f32.mrb[0].mxu0
  %1129 = vmatprep.mubr.f32.mxu0 0.0
  %1130 = vmatmul.mubr.f32.gmra.mrb[0].mxu0 %v814
  %v1131 = vpop.f32.mrb[0].mxu0
  %v1132 = vadd.f32 %v550, %v1131
  %v1133 = vpop.f32.mrb[0].mxu0
  %1134 = vmatprep.mubr.f32.mxu0 0.0
  %1135 = vmatmul.mubr.f32.gmra.mrb[0].mxu0 %v817
  %v1136 = vpop.f32.mrb[0].mxu0
  %v1137 = vadd.f32 %v555, %v1136
  %v1138 = vpop.f32.mrb[0].mxu0
  %1139 = vmatprep.mubr.f32.mxu0 0.0
  %1140 = vmatmul.mubr.f32.gmra.mrb[0].mxu0 %v820
  %v1141 = vpop.f32.mrb[0].mxu0
  %v1142 = vadd.f32 %v560, %v1141
  %v1143 = vpop.f32.mrb[0].mxu0
  %1144 = vmatprep.mubr.f32.mxu0 0.0
  %1145 = vmatmul.mubr.f32.gmra.mrb[0].mxu0 %v823
  %v1146 = vpop.f32.mrb[0].mxu0
  %v1147 = vadd.f32 %v565, %v1146
  %v1148 = vpop.f32.mrb[0].mxu0
  %1149 = vmatprep.mubr.f32.mxu0 0.0
  %1150 = vmatmul.mubr.f32.gmra.mrb[0].mxu0 %v826
  %v1151 = vpop.f32.mrb[0].mxu0
  %v1152 = vadd.f32 %v570, %v1151
  %v1153 = vpop.f32.mrb[0].mxu0
  %1154 = vmatprep.mubr.f32.mxu0 0.0
  %1155 = vmatmul.mubr.f32.gmra.mrb[0].mxu0 %v829
  %v1156 = vpop.f32.mrb[0].mxu0
  %v1157 = vadd.f32 %v575, %v1156
  %v1158 = vpop.f32.mrb[0].mxu0
  %1159 = vmatprep.mubr.f32.mxu0 0.0
  %1160 = vmatmul.mubr.f32.gmra.mrb[0].mxu0 %v832
  %v1161 = vpop.f32.mrb[0].mxu0
  %v1162 = vadd.f32 %v580, %v1161
  %v1163 = vpop.f32.mrb[0].mxu0
  %1164 = vmatprep.mubr.f32.mxu0 0.0
  %1165 = vmatmul.mubr.f32.gmra.mrb[0].mxu0 %v835
  %v1166 = vpop.f32.mrb[0].mxu0
  %v1167 = vadd.f32 %v585, %v1166
  %v1168 = vpop.f32.mrb[0].mxu0
  %1169 = vmatprep.mubr.f32.mxu0 0.0
  %1170 = vmatmul.mubr.f32.gmra.mrb[0].mxu0 %v838
  %v1171 = vpop.f32.mrb[0].mxu0
  %v1172 = vadd.f32 %v590, %v1171
  %v1173 = vpop.f32.mrb[0].mxu0
  %1174 = vmatprep.mubr.f32.mxu0 0.0
  %1175 = vmatmul.mubr.f32.gmra.mrb[0].mxu0 %v841
  %v1176 = vpop.f32.mrb[0].mxu0
  %v1177 = vadd.f32 %v595, %v1176
  %v1178 = vpop.f32.mrb[0].mxu0
  %1179 = vmatprep.mubr.f32.mxu0 0.0
  %1180 = vmatmul.mubr.f32.gmra.mrb[0].mxu0 %v844
  %v1181 = vpop.f32.mrb[0].mxu0
  %v1182 = vadd.f32 %v600, %v1181
  %v1183 = vpop.f32.mrb[0].mxu0
  %1184 = vmatprep.mubr.f32.mxu0 0.0
  %1185 = vmatmul.mubr.f32.gmra.mrb[0].mxu0 %v847
  %v1186 = vpop.f32.mrb[0].mxu0
  %v1187 = vadd.f32 %v605, %v1186
  %v1188 = vpop.f32.mrb[0].mxu0
  %1189 = vmatprep.mubr.f32.mxu0 0.0
  %1190 = vmatmul.mubr.f32.gmra.mrb[0].mxu0 %v850
  %v1191 = vpop.f32.mrb[0].mxu0
  %v1192 = vadd.f32 %v610, %v1191
  %v1193 = vpop.f32.mrb[0].mxu0
  %1194 = vmatprep.mubr.f32.mxu0 0.0
  %1195 = vmatmul.mubr.f32.gmra.mrb[0].mxu0 %v853
  %v1196 = vpop.f32.mrb[0].mxu0
  %v1197 = vadd.f32 %v615, %v1196
  %v1198 = vpop.f32.mrb[0].mxu0
  %1199 = vmatprep.mubr.f32.mxu0 0.0
  %1200 = vmatmul.mubr.f32.gmra.mrb[0].mxu0 %v856
  %v1201 = vpop.f32.mrb[0].mxu0
  %v1202 = vadd.f32 %v620, %v1201
  %v1203 = vpop.f32.mrb[0].mxu0
  %1204 = vmatprep.mubr.f32.mxu0 0.0
  %1205 = vmatmul.mubr.f32.gmra.mrb[0].mxu0 %v859
  %v1206 = vpop.f32.mrb[0].mxu0
  %v1207 = vadd.f32 %v625, %v1206
  %v1208 = vpop.f32.mrb[0].mxu0
  %1209 = vmatprep.mubr.f32.mxu0 0.0
  %1210 = vmatmul.mubr.f32.gmra.mrb[0].mxu0 %v862
  %v1211 = vpop.f32.mrb[0].mxu0
  %v1212 = vadd.f32 %v630, %v1211
  %v1213 = vpop.f32.mrb[0].mxu0
  %1214 = vmatprep.mubr.f32.mxu0 0.0
  %1215 = vmatmul.mubr.f32.gmra.mrb[0].mxu0 %v865
  %v1216 = vpop.f32.mrb[0].mxu0
  %v1217 = vadd.f32 %v635, %v1216
  %v1218 = vpop.f32.mrb[0].mxu0
  %1219 = vmatprep.mubr.f32.mxu0 0.0
  %1220 = vmatmul.mubr.f32.gmra.mrb[0].mxu0 %v868
  %v1221 = vpop.f32.mrb[0].mxu0
  %v1222 = vadd.f32 %v640, %v1221
  %v1223 = vpop.f32.mrb[0].mxu0
  %1224 = vmatprep.mubr.f32.mxu0 0.0
  %1225 = vmatmul.mubr.f32.gmra.mrb[0].mxu0 %v871
  %v1226 = vpop.f32.mrb[0].mxu0
  %v1227 = vadd.f32 %v645, %v1226
  %v1228 = vpop.f32.mrb[0].mxu0
  %1229 = vmatprep.mubr.f32.mxu0 0.0
  %1230 = vmatmul.mubr.f32.gmra.mrb[0].mxu0 %v874
  %v1231 = vpop.f32.mrb[0].mxu0
  %v1232 = vadd.f32 %v650, %v1231
  %v1233 = vpop.f32.mrb[0].mxu0
  %1234 = vmatprep.mubr.f32.mxu0 0.0
  %1235 = vmatmul.mubr.f32.gmra.mrb[0].mxu0 %v877
  %v1236 = vpop.f32.mrb[0].mxu0
  %v1237 = vadd.f32 %v655, %v1236
  %v1238 = vpop.f32.mrb[0].mxu0
  %1239 = vmatprep.mubr.f32.mxu0 0.0
  %1240 = vmatmul.mubr.f32.gmra.mrb[0].mxu0 %v880
  %v1241 = vpop.f32.mrb[0].mxu0
  %v1242 = vadd.f32 %v660, %v1241
  %v1243 = vpop.f32.mrb[0].mxu0
  %1244 = vmatprep.mubr.f32.mxu0 0.0
  %1245 = vmatmul.mubr.f32.gmra.mrb[0].mxu0 %v883
  %v1246 = vpop.f32.mrb[0].mxu0
  %v1247 = vadd.f32 %v665, %v1246
  %v1248 = vpop.f32.mrb[0].mxu0
  %1249 = vmatprep.mubr.f32.mxu0 0.0
  %1250 = vmatmul.mubr.f32.gmra.mrb[0].mxu0 %v886
  %v1251 = vpop.f32.mrb[0].mxu0
  %v1252 = vadd.f32 %v670, %v1251
  %v1253 = vpop.f32.mrb[0].mxu0
  %1254 = vmatprep.mubr.f32.mxu0 0.0
  %1255 = vmatmul.mubr.f32.gmra.mrb[0].mxu0 %v889
  %v1256 = vpop.f32.mrb[0].mxu0
  %v1257 = vadd.f32 %v675, %v1256
  %v1258 = vpop.f32.mrb[0].mxu0
  %1259 = vmatprep.mubr.f32.mxu0 0.0
  %1260 = vmatmul.mubr.f32.gmra.mrb[0].mxu0 %v892
  %v1261 = vpop.f32.mrb[0].mxu0
  %v1262 = vadd.f32 %v680, %v1261
  %v1263 = vpop.f32.mrb[0].mxu0
  %1264 = vmatprep.mubr.f32.mxu0 0.0
  %1265 = vmatmul.mubr.f32.gmra.mrb[0].mxu0 %v895
  %v1266 = vpop.f32.mrb[0].mxu0
  %v1267 = vadd.f32 %v685, %v1266
  %v1268 = vpop.f32.mrb[0].mxu0
  %1269 = vmatprep.mubr.f32.mxu0 0.0
  %1270 = vmatmul.mubr.f32.gmra.mrb[0].mxu0 %v898
  %v1271 = vpop.f32.mrb[0].mxu0
  %v1272 = vadd.f32 %v690, %v1271
  %v1273 = vpop.f32.mrb[0].mxu0
  %1274 = vmatprep.mubr.f32.mxu0 0.0
  %1275 = vmatmul.mubr.f32.gmra.mrb[0].mxu0 %v901
  %v1276 = vpop.f32.mrb[0].mxu0
  %v1277 = vadd.f32 %v695, %v1276
  %v1278 = vpop.f32.mrb[0].mxu0
  %1279 = vmatprep.mubr.f32.mxu0 0.0
  %1280 = vmatmul.mubr.f32.gmra.mrb[0].mxu0 %v904
  %v1281 = vpop.f32.mrb[0].mxu0
  %v1282 = vadd.f32 %v700, %v1281
  %v1283 = vpop.f32.mrb[0].mxu0
  %1284 = vmatprep.mubr.f32.mxu0 0.0
  %1285 = vmatmul.mubr.f32.gmra.mrb[0].mxu0 %v907
  %v1286 = vpop.f32.mrb[0].mxu0
  %v1287 = vadd.f32 %v705, %v1286
  %v1288 = vpop.f32.mrb[0].mxu0
  %1289 = vmatprep.mubr.f32.mxu0 0.0
  %1290 = vmatmul.mubr.f32.gmra.mrb[0].mxu0 %v910
  %v1291 = vpop.f32.mrb[0].mxu0
  %v1292 = vadd.f32 %v710, %v1291
  %v1293 = vpop.f32.mrb[0].mxu0
  %1294 = vmatprep.mubr.f32.mxu0 0.0
  %1295 = vmatmul.mubr.f32.gmra.mrb[0].mxu0 %v913
  %v1296 = vpop.f32.mrb[0].mxu0
  %v1297 = vadd.f32 %v715, %v1296
  %v1298 = vpop.f32.mrb[0].mxu0
  %1299 = vmatprep.mubr.f32.mxu0 0.0
  %1300 = vmatmul.mubr.f32.gmra.mrb[0].mxu0 %v916
  %v1301 = vpop.f32.mrb[0].mxu0
  %v1302 = vadd.f32 %v720, %v1301
  %v1303 = vpop.f32.mrb[0].mxu0
  %1304 = vmatprep.mubr.f32.mxu0 0.0
  %1305 = vmatmul.mubr.f32.gmra.mrb[0].mxu0 %v919
  %v1306 = vpop.f32.mrb[0].mxu0
  %v1307 = vadd.f32 %v725, %v1306
  %v1308 = vpop.f32.mrb[0].mxu0
  %1309 = vdwg.mxu0
  %v1310 = vld [vmem:[%s4] sm:$0x1]
  %v1312 = vlaneseq
  %v1313 = vshrl.u32 %v1312, 7
  %v1314 = vsub.s32 0, %v1313
  %v1315 = vrot.slane %v1310, %v1314
  %v1317 = vadd.f32 %v992, %v1315
  %v1318 = vadd.f32 %v997, %v1315
  %v1319 = vadd.f32 %v1002, %v1315
  %v1320 = vadd.f32 %v1007, %v1315
  %v1321 = vadd.f32 %v1012, %v1315
  %v1322 = vadd.f32 %v1017, %v1315
  %v1323 = vadd.f32 %v1022, %v1315
  %v1324 = vadd.f32 %v1027, %v1315
  %v1325 = vadd.f32 %v1032, %v1315
  %v1326 = vadd.f32 %v1037, %v1315
  %v1327 = vadd.f32 %v1042, %v1315
  %v1328 = vadd.f32 %v1047, %v1315
  %v1329 = vadd.f32 %v1052, %v1315
  %v1330 = vadd.f32 %v1057, %v1315
  %v1331 = vadd.f32 %v1062, %v1315
  %v1332 = vadd.f32 %v1067, %v1315
  %v1333 = vadd.f32 %v1072, %v1315
  %v1334 = vadd.f32 %v1077, %v1315
  %v1335 = vadd.f32 %v1082, %v1315
  %v1336 = vadd.f32 %v1087, %v1315
  %v1337 = vadd.f32 %v1092, %v1315
  %v1338 = vadd.f32 %v1097, %v1315
  %v1339 = vadd.f32 %v1102, %v1315
  %v1340 = vadd.f32 %v1107, %v1315
  %v1341 = vadd.f32 %v1112, %v1315
  %v1342 = vadd.f32 %v1117, %v1315
  %v1343 = vadd.f32 %v1122, %v1315
  %v1344 = vadd.f32 %v1127, %v1315
  %v1345 = vadd.f32 %v1132, %v1315
  %v1346 = vadd.f32 %v1137, %v1315
  %v1347 = vadd.f32 %v1142, %v1315
  %v1348 = vadd.f32 %v1147, %v1315
  %v1349 = vadd.f32 %v1152, %v1315
  %v1350 = vadd.f32 %v1157, %v1315
  %v1351 = vadd.f32 %v1162, %v1315
  %v1352 = vadd.f32 %v1167, %v1315
  %v1353 = vadd.f32 %v1172, %v1315
  %v1354 = vadd.f32 %v1177, %v1315
  %v1355 = vadd.f32 %v1182, %v1315
  %v1356 = vadd.f32 %v1187, %v1315
  %v1357 = vadd.f32 %v1192, %v1315
  %v1358 = vadd.f32 %v1197, %v1315
  %v1359 = vadd.f32 %v1202, %v1315
  %v1360 = vadd.f32 %v1207, %v1315
  %v1361 = vadd.f32 %v1212, %v1315
  %v1362 = vadd.f32 %v1217, %v1315
  %v1363 = vadd.f32 %v1222, %v1315
  %v1364 = vadd.f32 %v1227, %v1315
  %v1365 = vadd.f32 %v1232, %v1315
  %v1366 = vadd.f32 %v1237, %v1315
  %v1367 = vadd.f32 %v1242, %v1315
  %v1368 = vadd.f32 %v1247, %v1315
  %v1369 = vadd.f32 %v1252, %v1315
  %v1370 = vadd.f32 %v1257, %v1315
  %v1371 = vadd.f32 %v1262, %v1315
  %v1372 = vadd.f32 %v1267, %v1315
  %v1373 = vadd.f32 %v1272, %v1315
  %v1374 = vadd.f32 %v1277, %v1315
  %v1375 = vadd.f32 %v1282, %v1315
  %v1376 = vadd.f32 %v1287, %v1315
  %v1377 = vadd.f32 %v1292, %v1315
  %v1378 = vadd.f32 %v1297, %v1315
  %v1379 = vadd.f32 %v1302, %v1315
  %v1380 = vadd.f32 %v1307, %v1315
  %v1381 = vmax.f32 %v1317, 0.0
  %v1382 = vmax.f32 %v1318, 0.0
  %v1383 = vmax.f32 %v1319, 0.0
  %v1384 = vmax.f32 %v1320, 0.0
  %v1385 = vmax.f32 %v1321, 0.0
  %v1386 = vmax.f32 %v1322, 0.0
  %v1387 = vmax.f32 %v1323, 0.0
  %v1388 = vmax.f32 %v1324, 0.0
  %v1389 = vmax.f32 %v1325, 0.0
  %v1390 = vmax.f32 %v1326, 0.0
  %v1391 = vmax.f32 %v1327, 0.0
  %v1392 = vmax.f32 %v1328, 0.0
  %v1393 = vmax.f32 %v1329, 0.0
  %v1394 = vmax.f32 %v1330, 0.0
  %v1395 = vmax.f32 %v1331, 0.0
  %v1396 = vmax.f32 %v1332, 0.0
  %v1397 = vmax.f32 %v1333, 0.0
  %v1398 = vmax.f32 %v1334, 0.0
  %v1399 = vmax.f32 %v1335, 0.0
  %v1400 = vmax.f32 %v1336, 0.0
  %v1401 = vmax.f32 %v1337, 0.0
  %v1402 = vmax.f32 %v1338, 0.0
  %v1403 = vmax.f32 %v1339, 0.0
  %v1404 = vmax.f32 %v1340, 0.0
  %v1405 = vmax.f32 %v1341, 0.0
  %v1406 = vmax.f32 %v1342, 0.0
  %v1407 = vmax.f32 %v1343, 0.0
  %v1408 = vmax.f32 %v1344, 0.0
  %v1409 = vmax.f32 %v1345, 0.0
  %v1410 = vmax.f32 %v1346, 0.0
  %v1411 = vmax.f32 %v1347, 0.0
  %v1412 = vmax.f32 %v1348, 0.0
  %v1413 = vmax.f32 %v1349, 0.0
  %v1414 = vmax.f32 %v1350, 0.0
  %v1415 = vmax.f32 %v1351, 0.0
  %v1416 = vmax.f32 %v1352, 0.0
  %v1417 = vmax.f32 %v1353, 0.0
  %v1418 = vmax.f32 %v1354, 0.0
  %v1419 = vmax.f32 %v1355, 0.0
  %v1420 = vmax.f32 %v1356, 0.0
  %v1421 = vmax.f32 %v1357, 0.0
  %v1422 = vmax.f32 %v1358, 0.0
  %v1423 = vmax.f32 %v1359, 0.0
  %v1424 = vmax.f32 %v1360, 0.0
  %v1425 = vmax.f32 %v1361, 0.0
  %v1426 = vmax.f32 %v1362, 0.0
  %v1427 = vmax.f32 %v1363, 0.0
  %v1428 = vmax.f32 %v1364, 0.0
  %v1429 = vmax.f32 %v1365, 0.0
  %v1430 = vmax.f32 %v1366, 0.0
  %v1431 = vmax.f32 %v1367, 0.0
  %v1432 = vmax.f32 %v1368, 0.0
  %v1433 = vmax.f32 %v1369, 0.0
  %v1434 = vmax.f32 %v1370, 0.0
  %v1435 = vmax.f32 %v1371, 0.0
  %v1436 = vmax.f32 %v1372, 0.0
  %v1437 = vmax.f32 %v1373, 0.0
  %v1438 = vmax.f32 %v1374, 0.0
  %v1439 = vmax.f32 %v1375, 0.0
  %v1440 = vmax.f32 %v1376, 0.0
  %v1441 = vmax.f32 %v1377, 0.0
  %v1442 = vmax.f32 %v1378, 0.0
  %v1443 = vmax.f32 %v1379, 0.0
  %v1444 = vmax.f32 %v1380, 0.0
  %vm1445 = vcmask 130048
  %1446 = vst.msk [vmem:[%s5] sm:$0xff] %vm1445, %v1381
  %1447 = vst.msk [vmem:[%s5 + $0x8] sm:$0xff] %vm1445, %v1382
  %1448 = vst.msk [vmem:[%s5 + $0x10] sm:$0xff] %vm1445, %v1383
  %1449 = vst.msk [vmem:[%s5 + $0x18] sm:$0xff] %vm1445, %v1384
  %1450 = vst.msk [vmem:[%s5 + $0x20] sm:$0xff] %vm1445, %v1385
  %1451 = vst.msk [vmem:[%s5 + $0x28] sm:$0xff] %vm1445, %v1386
  %1452 = vst.msk [vmem:[%s5 + $0x30] sm:$0xff] %vm1445, %v1387
  %1453 = vst.msk [vmem:[%s5 + $0x38] sm:$0xff] %vm1445, %v1388
  %1454 = vst.msk [vmem:[%s5 + $0x40] sm:$0xff] %vm1445, %v1389
  %1455 = vst.msk [vmem:[%s5 + $0x48] sm:$0xff] %vm1445, %v1390
  %1456 = vst.msk [vmem:[%s5 + $0x50] sm:$0xff] %vm1445, %v1391
  %1457 = vst.msk [vmem:[%s5 + $0x58] sm:$0xff] %vm1445, %v1392
  %1458 = vst.msk [vmem:[%s5 + $0x60] sm:$0xff] %vm1445, %v1393
  %1459 = vst.msk [vmem:[%s5 + $0x68] sm:$0xff] %vm1445, %v1394
  %1460 = vst.msk [vmem:[%s5 + $0x70] sm:$0xff] %vm1445, %v1395
  %1461 = vst.msk [vmem:[%s5 + $0x78] sm:$0xff] %vm1445, %v1396
  %1462 = vst.msk [vmem:[%s5 + $0x80] sm:$0xff] %vm1445, %v1397
  %1463 = vst.msk [vmem:[%s5 + $0x88] sm:$0xff] %vm1445, %v1398
  %1464 = vst.msk [vmem:[%s5 + $0x90] sm:$0xff] %vm1445, %v1399
  %1465 = vst.msk [vmem:[%s5 + $0x98] sm:$0xff] %vm1445, %v1400
  %1466 = vst.msk [vmem:[%s5 + $0xa0] sm:$0xff] %vm1445, %v1401
  %1467 = vst.msk [vmem:[%s5 + $0xa8] sm:$0xff] %vm1445, %v1402
  %1468 = vst.msk [vmem:[%s5 + $0xb0] sm:$0xff] %vm1445, %v1403
  %1469 = vst.msk [vmem:[%s5 + $0xb8] sm:$0xff] %vm1445, %v1404
  %1470 = vst.msk [vmem:[%s5 + $0xc0] sm:$0xff] %vm1445, %v1405
  %1471 = vst.msk [vmem:[%s5 + $0xc8] sm:$0xff] %vm1445, %v1406
  %1472 = vst.msk [vmem:[%s5 + $0xd0] sm:$0xff] %vm1445, %v1407
  %1473 = vst.msk [vmem:[%s5 + $0xd8] sm:$0xff] %vm1445, %v1408
  %1474 = vst.msk [vmem:[%s5 + $0xe0] sm:$0xff] %vm1445, %v1409
  %1475 = vst.msk [vmem:[%s5 + $0xe8] sm:$0xff] %vm1445, %v1410
  %1476 = vst.msk [vmem:[%s5 + $0xf0] sm:$0xff] %vm1445, %v1411
  %1477 = vst.msk [vmem:[%s5 + $0xf8] sm:$0xff] %vm1445, %v1412
  %1478 = vst.msk [vmem:[%s5 + $0x100] sm:$0xff] %vm1445, %v1413
  %1479 = vst.msk [vmem:[%s5 + $0x108] sm:$0xff] %vm1445, %v1414
  %1480 = vst.msk [vmem:[%s5 + $0x110] sm:$0xff] %vm1445, %v1415
  %1481 = vst.msk [vmem:[%s5 + $0x118] sm:$0xff] %vm1445, %v1416
  %1482 = vst.msk [vmem:[%s5 + $0x120] sm:$0xff] %vm1445, %v1417
  %1483 = vst.msk [vmem:[%s5 + $0x128] sm:$0xff] %vm1445, %v1418
  %1484 = vst.msk [vmem:[%s5 + $0x130] sm:$0xff] %vm1445, %v1419
  %1485 = vst.msk [vmem:[%s5 + $0x138] sm:$0xff] %vm1445, %v1420
  %1486 = vst.msk [vmem:[%s5 + $0x140] sm:$0xff] %vm1445, %v1421
  %1487 = vst.msk [vmem:[%s5 + $0x148] sm:$0xff] %vm1445, %v1422
  %1488 = vst.msk [vmem:[%s5 + $0x150] sm:$0xff] %vm1445, %v1423
  %1489 = vst.msk [vmem:[%s5 + $0x158] sm:$0xff] %vm1445, %v1424
  %1490 = vst.msk [vmem:[%s5 + $0x160] sm:$0xff] %vm1445, %v1425
  %1491 = vst.msk [vmem:[%s5 + $0x168] sm:$0xff] %vm1445, %v1426
  %1492 = vst.msk [vmem:[%s5 + $0x170] sm:$0xff] %vm1445, %v1427
  %1493 = vst.msk [vmem:[%s5 + $0x178] sm:$0xff] %vm1445, %v1428
  %1494 = vst.msk [vmem:[%s5 + $0x180] sm:$0xff] %vm1445, %v1429
  %1495 = vst.msk [vmem:[%s5 + $0x188] sm:$0xff] %vm1445, %v1430
  %1496 = vst.msk [vmem:[%s5 + $0x190] sm:$0xff] %vm1445, %v1431
  %1497 = vst.msk [vmem:[%s5 + $0x198] sm:$0xff] %vm1445, %v1432
  %1498 = vst.msk [vmem:[%s5 + $0x1a0] sm:$0xff] %vm1445, %v1433
  %1499 = vst.msk [vmem:[%s5 + $0x1a8] sm:$0xff] %vm1445, %v1434
  %1500 = vst.msk [vmem:[%s5 + $0x1b0] sm:$0xff] %vm1445, %v1435
  %1501 = vst.msk [vmem:[%s5 + $0x1b8] sm:$0xff] %vm1445, %v1436
  %1502 = vst.msk [vmem:[%s5 + $0x1c0] sm:$0xff] %vm1445, %v1437
  %1503 = vst.msk [vmem:[%s5 + $0x1c8] sm:$0xff] %vm1445, %v1438
  %1504 = vst.msk [vmem:[%s5 + $0x1d0] sm:$0xff] %vm1445, %v1439
  %1505 = vst.msk [vmem:[%s5 + $0x1d8] sm:$0xff] %vm1445, %v1440
  %1506 = vst.msk [vmem:[%s5 + $0x1e0] sm:$0xff] %vm1445, %v1441
  %1507 = vst.msk [vmem:[%s5 + $0x1e8] sm:$0xff] %vm1445, %v1442
  %1508 = vst.msk [vmem:[%s5 + $0x1f0] sm:$0xff] %vm1445, %v1443
  %1509 = vst.msk [vmem:[%s5 + $0x1f8] sm:$0xff] %vm1445, %v1444
  // Predicated region
  $region22: #{bottleneck_forward.5} parent=0 // pred_check
    _
  $region23: #{bottleneck_forward.5} parent=0 // pred_check_branch
    %1511 = sbr.rel (0) target = $region25
  $region24: #{bottleneck_forward.5} parent=0 // pred_region
    _
  $region25: #{bottleneck_forward.5} parent=0 // pred_fallthru
    _
  // Predicated region
  $region26: #{bottleneck_forward.5} parent=0 // pred_check
    _
  $region27: #{bottleneck_forward.5} parent=0 // pred_check_branch
    %1513 = sbr.rel (0) target = $region29
  $region28: #{bottleneck_forward.5} parent=0 // pred_region
    _
  $region29: #{bottleneck_forward.5} parent=0 // pred_fallthru
    _

// kernel: bottleneck_forward.4
$region0: #{bottleneck_forward.4}
  #allocation0 [shape = 'u32[]', space=smem, size = 0x4, offset = 0x4, fixed_abs, tag = 'smem constant byte address 0x4 - core index']
  #allocation1 [shape = 'u32[144,128]{1,0:T(1,128)}', space=vmem, size = 0x12000, scoped, tag = 'internal scratch']
  %s0 = inlined_call_operand.vmem [shape: f32[2,18,18,4], index: 0, kind: input, shape index: {}]
  %s1 = inlined_call_operand.vmem [shape: f32[36,4], index: 1, kind: input, shape index: {}]
  %s2 = inlined_call_operand.vmem [shape: f32[1,4], index: 2, kind: input, shape index: {}]
  %s3 = inlined_call_operand.vmem [shape: f32[2,256,4], index: 3, kind: output, shape index: {}]
  %s4 = sld [smem:[#allocation0]]
  $region45: #{bottleneck_forward.4} parent=0
    _
  %s6 = ssub.s32 1, %s4
  %s7 = scalar_select 0, %s6, %s4
  loop: start=0, step=1, limit=4
  $region2: #{bottleneck_forward.4} parent=0 // loop_pre_header
    _
  $region3: #{bottleneck_forward.4} parent=0 // loop_header
    %s9 = sphi 0, %s13
    %p10 = scmp.ge.s32.totalorder %s9, 4
    %s19 = sphi 0, %s21
    %s22 = sphi 0, %s19
    %s23 = sphi 0, %s22
    %s39 = sphi 0, %s23
    %s43 = sphi 0, %s43
    %s45 = sphi 0, %s43
    %s46 = sphi 0, %s45
    %s60 = sphi 0, %s46
    %s64 = sphi 0, %s64
    %s66 = sphi 0, %s64
    %s67 = sphi 0, %s66
    %s81 = sphi 0, %s67
    %s87 = sphi 0, %s89
    %s90 = sphi 0, %s87
    %s91 = sphi 0, %s90
    %s107 = sphi 0, %s91
  $region4: #{bottleneck_forward.4} parent=0 // loop_header_branch
    %12 = sbr.rel (%p10) target = $region8
  $region5: #{bottleneck_forward.4} parent=0 // loop_body
    %s14 = ssub.s32 %s9, 1
    %s15 = ssub.s32 %s9, 2
    %s16 = sadd.s32 %s9, 1
    %s17 = ssub.s32 %s9, %s16
    %p18 = scmp.eq.s32.totalorder %s17, 0
    %s20 = sadd.s32 %s19, 1
    %s21 = scalar_select %p18, %s19, %s20
    %p24 = pneg %p18
    %p25 = scmp.eq.s32.totalorder %s9, 1
    %p26 = por %p24, %p25
    %p27 = scmp.ne.s32.totalorder %s19, %s22
    %p28 = scmp.eq.s32.totalorder %s9, 0
    %p29 = por %p27, %p28
    %p30 = scmp.ne.s32.totalorder %s19, %s22
    %p31 = scmp.eq.s32.totalorder %s14, 1
    %p32 = por %p30, %p31
    %p33 = scmp.ne.s32.totalorder %s22, %s23
    %p34 = scmp.eq.s32.totalorder %s14, 0
    %p35 = por %p33, %p34
    %p36 = scmp.ne.s32.totalorder %s22, %s23
    %p37 = scmp.eq.s32.totalorder %s15, 1
    %p38 = por %p36, %p37
    %p40 = scmp.ne.s32.totalorder %s23, %s39
    %p41 = scmp.eq.s32.totalorder %s15, 0
    %p42 = por %p40, %p41
    %s44 = sadd.s32 %s43, 1
    %p47 = scmp.eq.s32.totalorder %s9, 1
    %p48 = scmp.ne.s32.totalorder %s43, %s45
    %p49 = scmp.eq.s32.totalorder %s9, 0
    %p50 = por %p48, %p49
    %p51 = scmp.ne.s32.totalorder %s43, %s45
    %p52 = scmp.eq.s32.totalorder %s14, 1
    %p53 = por %p51, %p52
    %p54 = scmp.ne.s32.totalorder %s45, %s46
    %p55 = scmp.eq.s32.totalorder %s14, 0
    %p56 = por %p54, %p55
    %p57 = scmp.ne.s32.totalorder %s45, %s46
    %p58 = scmp.eq.s32.totalorder %s15, 1
    %p59 = por %p57, %p58
    %p61 = scmp.ne.s32.totalorder %s46, %s60
    %p62 = scmp.eq.s32.totalorder %s15, 0
    %p63 = por %p61, %p62
    %s65 = sadd.s32 %s64, 1
    %p68 = scmp.eq.s32.totalorder %s9, 1
    %p69 = scmp.ne.s32.totalorder %s64, %s66
    %p70 = scmp.eq.s32.totalorder %s9, 0
    %p71 = por %p69, %p70
    %p72 = scmp.ne.s32.totalorder %s64, %s66
    %p73 = scmp.eq.s32.totalorder %s14, 1
    %p74 = por %p72, %p73
    %p75 = scmp.ne.s32.totalorder %s66, %s67
    %p76 = scmp.eq.s32.totalorder %s14, 0
    %p77 = por %p75, %p76
    %p78 = scmp.ne.s32.totalorder %s66, %s67
    %p79 = scmp.eq.s32.totalorder %s15, 1
    %p80 = por %p78, %p79
    %p82 = scmp.ne.s32.totalorder %s67, %s81
    %p83 = scmp.eq.s32.totalorder %s15, 0
    %p84 = por %p82, %p83
    %s85 = ssub.s32 %s9, %s16
    %p86 = scmp.eq.s32.totalorder %s85, 0
    %s88 = sadd.s32 %s87, 1
    %s89 = scalar_select %p86, %s87, %s88
    %p92 = pneg %p86
    %p93 = scmp.eq.s32.totalorder %s9, 1
    %p94 = por %p92, %p93
    %p95 = scmp.ne.s32.totalorder %s87, %s90
    %p96 = scmp.eq.s32.totalorder %s9, 0
    %p97 = por %p95, %p96
    %p98 = scmp.ne.s32.totalorder %s87, %s90
    %p99 = scmp.eq.s32.totalorder %s14, 1
    %p100 = por %p98, %p99
    %p101 = scmp.ne.s32.totalorder %s90, %s91
    %p102 = scmp.eq.s32.totalorder %s14, 0
    %p103 = por %p101, %p102
    %p104 = scmp.ne.s32.totalorder %s90, %s91
    %p105 = scmp.eq.s32.totalorder %s15, 1
    %p106 = por %p104, %p105
    %p108 = scmp.ne.s32.totalorder %s91, %s107
    %p109 = scmp.eq.s32.totalorder %s15, 0
    %p110 = por %p108, %p109
    %p111 = scmp.le.s32.totalorder 1, %s9
    %p112 = scmp.lt.s32.totalorder %s9, 3
    %p113 = pnand %p111, %p112
    %p114 = pneg %p113
    // Predicated region
    $region9: #{bottleneck_forward.4} parent=5 // pred_check
      _
    $region10: #{bottleneck_forward.4} parent=5 // pred_check_branch
      %116 = sbr.rel (%p113) target = $region12
    $region11: #{bottleneck_forward.4} parent=5 // pred_region
      %s117 = ssub.s32 %s9, 1
      // Predicated region
      $region13: #{bottleneck_forward.4} parent=11 // pred_check
        %p118 = pneg %p56
      $region14: #{bottleneck_forward.4} parent=11 // pred_check_branch
        %120 = sbr.rel (%p118) target = $region16
      $region15: #{bottleneck_forward.4} parent=11 // pred_region
        _
      $region16: #{bottleneck_forward.4} parent=11 // pred_fallthru
        _
      // Predicated region
      $region17: #{bottleneck_forward.4} parent=11 // pred_check
        %p121 = pneg %p77
      $region18: #{bottleneck_forward.4} parent=11 // pred_check_branch
        %123 = sbr.rel (%p121) target = $region20
      $region19: #{bottleneck_forward.4} parent=11 // pred_region
        _
      $region20: #{bottleneck_forward.4} parent=11 // pred_fallthru
        _
    $region12: #{bottleneck_forward.4} parent=5 // pred_fallthru
      _
    %p124 = scmp.lt.s32.totalorder %s9, 2
    // Predicated region
    $region21: #{bottleneck_forward.4} parent=5 // pred_check
      %p125 = pneg %p124
    $region22: #{bottleneck_forward.4} parent=5 // pred_check_branch
      %127 = sbr.rel (%p125) target = $region24
    $region23: #{bottleneck_forward.4} parent=5 // pred_region
      // Predicated region
      $region25: #{bottleneck_forward.4} parent=23 // pred_check
        %p128 = pneg %p29
      $region26: #{bottleneck_forward.4} parent=23 // pred_check_branch
        %130 = sbr.rel (%p128) target = $region28
      $region27: #{bottleneck_forward.4} parent=23 // pred_region
        %p131 = scmp.lt.s32.totalorder %s9, 1
        %s132 = scalar_select %p131, %s9, 1
        %s133 = smul.addr %s132, 54
        %s134 = smul.addr %s133, 8
        %s135 = scalar_lea.vmem %s0, %s134
      $region28: #{bottleneck_forward.4} parent=23 // pred_fallthru
        _
    $region24: #{bottleneck_forward.4} parent=5 // pred_fallthru
      _
    %p136 = scmp.le.s32.totalorder 1, %s9
    %p137 = scmp.lt.s32.totalorder %s9, 3
    %p138 = pnand %p136, %p137
    %p139 = pneg %p138
    // Predicated region
    $region29: #{bottleneck_forward.4} parent=5 // pred_check
      _
    $region30: #{bottleneck_forward.4} parent=5 // pred_check_branch
      %141 = sbr.rel (%p138) target = $region32
    $region31: #{bottleneck_forward.4} parent=5 // pred_region
      %s142 = ssub.s32 %s9, 1
      %p143 = scmp.lt.s32.totalorder %s14, 1
      %s144 = scalar_select %p143, %s14, 1
      %s145 = smul.addr %s144, 54
      %s146 = smul.addr %s145, 8
      %s147 = scalar_lea.vmem %s0, %s146
      %p148 = pneg %p35
      %p149 = pneg %p32
      %p150 = pneg %p56
      %p151 = pneg %p53
      %p152 = pneg %p77
      %p153 = pneg %p74
      %p154 = pneg %p103
      %p155 = pneg %p100
      %p156 = scmp.lt.s32.totalorder %s14, 1
      %s157 = scalar_select %p156, %s14, 1
      %s158 = smul.addr %s157, 32
      %s159 = smul.addr %s158, 8
      %s160 = scalar_lea.vmem %s3, %s159
      %p161 = scmp.lt.s32.totalorder %s14, 1
      %s162 = scalar_select %p161, %s14, 1
      %s163 = smul.addr %s162, 54
      %s164 = smul.addr %s163, 8
      %s165 = scalar_lea.vmem %s0, %s164
      %p166 = scmp.lt.s32.totalorder %s14, 1
      %s167 = scalar_select %p166, %s14, 1
      %s168 = smul.addr %s167, 32
      %s169 = smul.addr %s168, 8
      %s170 = scalar_lea.vmem %s3, %s169
      %v171 = vld [vmem:[%s165] sm:$0xff]
      %v172 = vld [vmem:[%s165 + $0x8] sm:$0xff]
      %v173 = vld [vmem:[%s165 + $0x18] sm:$0xff]
      %v174 = vld [vmem:[%s165 + $0x20] sm:$0xff]
      %v175 = vld [vmem:[%s165 + $0x30] sm:$0xff]
      %v176 = vld [vmem:[%s165 + $0x38] sm:$0xff]
      %v177 = vld [vmem:[%s165 + $0x48] sm:$0xff]
      %v178 = vld [vmem:[%s165 + $0x50] sm:$0xff]
      %v179 = vld [vmem:[%s165 + $0x60] sm:$0xff]
      %v180 = vld [vmem:[%s165 + $0x68] sm:$0xff]
      %v181 = vld [vmem:[%s165 + $0x78] sm:$0xff]
      %v182 = vld [vmem:[%s165 + $0x80] sm:$0xff]
      %v183 = vld [vmem:[%s165 + $0x90] sm:$0xff]
      %v184 = vld [vmem:[%s165 + $0x98] sm:$0xff]
      %v185 = vld [vmem:[%s165 + $0xa8] sm:$0xff]
      %v186 = vld [vmem:[%s165 + $0xb0] sm:$0xff]
      %v187 = vld [vmem:[%s165 + $0xc0] sm:$0xff]
      %v188 = vld [vmem:[%s165 + $0xc8] sm:$0xff]
      %v189 = vld [vmem:[%s165 + $0xd8] sm:$0xff]
      %v190 = vld [vmem:[%s165 + $0xe0] sm:$0xff]
      %v191 = vld [vmem:[%s165 + $0xf0] sm:$0xff]
      %v192 = vld [vmem:[%s165 + $0xf8] sm:$0xff]
      %v193 = vld [vmem:[%s165 + $0x108] sm:$0xff]
      %v194 = vld [vmem:[%s165 + $0x110] sm:$0xff]
      %v195 = vld [vmem:[%s165 + $0x120] sm:$0xff]
      %v196 = vld [vmem:[%s165 + $0x128] sm:$0xff]
      %v197 = vld [vmem:[%s165 + $0x138] sm:$0xff]
      %v198 = vld [vmem:[%s165 + $0x140] sm:$0xff]
      %v199 = vld [vmem:[%s165 + $0x150] sm:$0xff]
      %v200 = vld [vmem:[%s165 + $0x158] sm:$0xff]
      %v201 = vld [vmem:[%s165 + $0x168] sm:$0xff]
      %v202 = vld [vmem:[%s165 + $0x170] sm:$0xff]
      %v203 = vld [vmem:[%s165 + $0x1] sm:$0xff]
      %v204 = vld [vmem:[%s165 + $0x9] sm:$0xff]
      %v205 = vld [vmem:[%s165 + $0x19] sm:$0xff]
      %v206 = vld [vmem:[%s165 + $0x21] sm:$0xff]
      %v207 = vld [vmem:[%s165 + $0x31] sm:$0xff]
      %v208 = vld [vmem:[%s165 + $0x39] sm:$0xff]
      %v209 = vld [vmem:[%s165 + $0x49] sm:$0xff]
      %v210 = vld [vmem:[%s165 + $0x51] sm:$0xff]
      %v211 = vld [vmem:[%s165 + $0x61] sm:$0xff]
      %v212 = vld [vmem:[%s165 + $0x69] sm:$0xff]
      %v213 = vld [vmem:[%s165 + $0x79] sm:$0xff]
      %v214 = vld [vmem:[%s165 + $0x81] sm:$0xff]
      %v215 = vld [vmem:[%s165 + $0x91] sm:$0xff]
      %v216 = vld [vmem:[%s165 + $0x99] sm:$0xff]
      %v217 = vld [vmem:[%s165 + $0xa9] sm:$0xff]
      %v218 = vld [vmem:[%s165 + $0xb1] sm:$0xff]
      %v219 = vld [vmem:[%s165 + $0xc1] sm:$0xff]
      %v220 = vld [vmem:[%s165 + $0xc9] sm:$0xff]
      %v221 = vld [vmem:[%s165 + $0xd9] sm:$0xff]
      %v222 = vld [vmem:[%s165 + $0xe1] sm:$0xff]
      %v223 = vld [vmem:[%s165 + $0xf1] sm:$0xff]
      %v224 = vld [vmem:[%s165 + $0xf9] sm:$0xff]
      %v225 = vld [vmem:[%s165 + $0x109] sm:$0xff]
      %v226 = vld [vmem:[%s165 + $0x111] sm:$0xff]
      %v227 = vld [vmem:[%s165 + $0x121] sm:$0xff]
      %v228 = vld [vmem:[%s165 + $0x129] sm:$0xff]
      %v229 = vld [vmem:[%s165 + $0x139] sm:$0xff]
      %v230 = vld [vmem:[%s165 + $0x141] sm:$0xff]
      %v231 = vld [vmem:[%s165 + $0x151] sm:$0xff]
      %v232 = vld [vmem:[%s165 + $0x159] sm:$0xff]
      %v233 = vld [vmem:[%s165 + $0x169] sm:$0xff]
      %v234 = vld [vmem:[%s165 + $0x171] sm:$0xff]
      %v235 = vld [vmem:[%s165 + $0x2] sm:$0xff]
      %v236 = vld [vmem:[%s165 + $0xa] sm:$0xff]
      %v237 = vld [vmem:[%s165 + $0x1a] sm:$0xff]
      %v238 = vld [vmem:[%s165 + $0x22] sm:$0xff]
      %v239 = vld [vmem:[%s165 + $0x32] sm:$0xff]
      %v240 = vld [vmem:[%s165 + $0x3a] sm:$0xff]
      %v241 = vld [vmem:[%s165 + $0x4a] sm:$0xff]
      %v242 = vld [vmem:[%s165 + $0x52] sm:$0xff]
      %v243 = vld [vmem:[%s165 + $0x62] sm:$0xff]
      %v244 = vld [vmem:[%s165 + $0x6a] sm:$0xff]
      %v245 = vld [vmem:[%s165 + $0x7a] sm:$0xff]
      %v246 = vld [vmem:[%s165 + $0x82] sm:$0xff]
      %v247 = vld [vmem:[%s165 + $0x92] sm:$0xff]
      %v248 = vld [vmem:[%s165 + $0x9a] sm:$0xff]
      %v249 = vld [vmem:[%s165 + $0xaa] sm:$0xff]
      %v250 = vld [vmem:[%s165 + $0xb2] sm:$0xff]
      %v251 = vld [vmem:[%s165 + $0xc2] sm:$0xff]
      %v252 = vld [vmem:[%s165 + $0xca] sm:$0xff]
      %v253 = vld [vmem:[%s165 + $0xda] sm:$0xff]
      %v254 = vld [vmem:[%s165 + $0xe2] sm:$0xff]
      %v255 = vld [vmem:[%s165 + $0xf2] sm:$0xff]
      %v256 = vld [vmem:[%s165 + $0xfa] sm:$0xff]
      %v257 = vld [vmem:[%s165 + $0x10a] sm:$0xff]
      %v258 = vld [vmem:[%s165 + $0x112] sm:$0xff]
      %v259 = vld [vmem:[%s165 + $0x122] sm:$0xff]
      %v260 = vld [vmem:[%s165 + $0x12a] sm:$0xff]
      %v261 = vld [vmem:[%s165 + $0x13a] sm:$0xff]
      %v262 = vld [vmem:[%s165 + $0x142] sm:$0xff]
      %v263 = vld [vmem:[%s165 + $0x152] sm:$0xff]
      %v264 = vld [vmem:[%s165 + $0x15a] sm:$0xff]
      %v265 = vld [vmem:[%s165 + $0x16a] sm:$0xff]
      %v266 = vld [vmem:[%s165 + $0x172] sm:$0xff]
      %s267 = scalar_lea.vmem %s165, 24
      %v268 = vld [vmem:[%s267] sm:$0xff]
      %v269 = vld [vmem:[%s267 + $0x8] sm:$0xff]
      %v270 = vld [vmem:[%s267 + $0x18] sm:$0xff]
      %v271 = vld [vmem:[%s267 + $0x20] sm:$0xff]
      %v272 = vld [vmem:[%s267 + $0x30] sm:$0xff]
      %v273 = vld [vmem:[%s267 + $0x38] sm:$0xff]
      %v274 = vld [vmem:[%s267 + $0x48] sm:$0xff]
      %v275 = vld [vmem:[%s267 + $0x50] sm:$0xff]
      %v276 = vld [vmem:[%s267 + $0x60] sm:$0xff]
      %v277 = vld [vmem:[%s267 + $0x68] sm:$0xff]
      %v278 = vld [vmem:[%s267 + $0x78] sm:$0xff]
      %v279 = vld [vmem:[%s267 + $0x80] sm:$0xff]
      %v280 = vld [vmem:[%s267 + $0x90] sm:$0xff]
      %v281 = vld [vmem:[%s267 + $0x98] sm:$0xff]
      %v282 = vld [vmem:[%s267 + $0xa8] sm:$0xff]
      %v283 = vld [vmem:[%s267 + $0xb0] sm:$0xff]
      %v284 = vld [vmem:[%s267 + $0xc0] sm:$0xff]
      %v285 = vld [vmem:[%s267 + $0xc8] sm:$0xff]
      %v286 = vld [vmem:[%s267 + $0xd8] sm:$0xff]
      %v287 = vld [vmem:[%s267 + $0xe0] sm:$0xff]
      %v288 = vld [vmem:[%s267 + $0xf0] sm:$0xff]
      %v289 = vld [vmem:[%s267 + $0xf8] sm:$0xff]
      %v290 = vld [vmem:[%s267 + $0x108] sm:$0xff]
      %v291 = vld [vmem:[%s267 + $0x110] sm:$0xff]
      %v292 = vld [vmem:[%s267 + $0x120] sm:$0xff]
      %v293 = vld [vmem:[%s267 + $0x128] sm:$0xff]
      %v294 = vld [vmem:[%s267 + $0x138] sm:$0xff]
      %v295 = vld [vmem:[%s267 + $0x140] sm:$0xff]
      %v296 = vld [vmem:[%s267 + $0x150] sm:$0xff]
      %v297 = vld [vmem:[%s267 + $0x158] sm:$0xff]
      %v298 = vld [vmem:[%s267 + $0x168] sm:$0xff]
      %v299 = vld [vmem:[%s267 + $0x170] sm:$0xff]
      %v300 = vld [vmem:[%s267 + $0x1] sm:$0xff]
      %v301 = vld [vmem:[%s267 + $0x9] sm:$0xff]
      %v302 = vld [vmem:[%s267 + $0x19] sm:$0xff]
      %v303 = vld [vmem:[%s267 + $0x21] sm:$0xff]
      %v304 = vld [vmem:[%s267 + $0x31] sm:$0xff]
      %v305 = vld [vmem:[%s267 + $0x39] sm:$0xff]
      %v306 = vld [vmem:[%s267 + $0x49] sm:$0xff]
      %v307 = vld [vmem:[%s267 + $0x51] sm:$0xff]
      %v308 = vld [vmem:[%s267 + $0x61] sm:$0xff]
      %v309 = vld [vmem:[%s267 + $0x69] sm:$0xff]
      %v310 = vld [vmem:[%s267 + $0x79] sm:$0xff]
      %v311 = vld [vmem:[%s267 + $0x81] sm:$0xff]
      %v312 = vld [vmem:[%s267 + $0x91] sm:$0xff]
      %v313 = vld [vmem:[%s267 + $0x99] sm:$0xff]
      %v314 = vld [vmem:[%s267 + $0xa9] sm:$0xff]
      %v315 = vld [vmem:[%s267 + $0xb1] sm:$0xff]
      %v316 = vld [vmem:[%s267 + $0xc1] sm:$0xff]
      %v317 = vld [vmem:[%s267 + $0xc9] sm:$0xff]
      %v318 = vld [vmem:[%s267 + $0xd9] sm:$0xff]
      %v319 = vld [vmem:[%s267 + $0xe1] sm:$0xff]
      %v320 = vld [vmem:[%s267 + $0xf1] sm:$0xff]
      %v321 = vld [vmem:[%s267 + $0xf9] sm:$0xff]
      %v322 = vld [vmem:[%s267 + $0x109] sm:$0xff]
      %v323 = vld [vmem:[%s267 + $0x111] sm:$0xff]
      %v324 = vld [vmem:[%s267 + $0x121] sm:$0xff]
      %v325 = vld [vmem:[%s267 + $0x129] sm:$0xff]
      %v326 = vld [vmem:[%s267 + $0x139] sm:$0xff]
      %v327 = vld [vmem:[%s267 + $0x141] sm:$0xff]
      %v328 = vld [vmem:[%s267 + $0x151] sm:$0xff]
      %v329 = vld [vmem:[%s267 + $0x159] sm:$0xff]
      %v330 = vld [vmem:[%s267 + $0x169] sm:$0xff]
      %v331 = vld [vmem:[%s267 + $0x171] sm:$0xff]
      %v332 = vld [vmem:[%s267 + $0x2] sm:$0xff]
      %v333 = vld [vmem:[%s267 + $0xa] sm:$0xff]
      %v334 = vld [vmem:[%s267 + $0x1a] sm:$0xff]
      %v335 = vld [vmem:[%s267 + $0x22] sm:$0xff]
      %v336 = vld [vmem:[%s267 + $0x32] sm:$0xff]
      %v337 = vld [vmem:[%s267 + $0x3a] sm:$0xff]
      %v338 = vld [vmem:[%s267 + $0x4a] sm:$0xff]
      %v339 = vld [vmem:[%s267 + $0x52] sm:$0xff]
      %v340 = vld [vmem:[%s267 + $0x62] sm:$0xff]
      %v341 = vld [vmem:[%s267 + $0x6a] sm:$0xff]
      %v342 = vld [vmem:[%s267 + $0x7a] sm:$0xff]
      %v343 = vld [vmem:[%s267 + $0x82] sm:$0xff]
      %v344 = vld [vmem:[%s267 + $0x92] sm:$0xff]
      %v345 = vld [vmem:[%s267 + $0x9a] sm:$0xff]
      %v346 = vld [vmem:[%s267 + $0xaa] sm:$0xff]
      %v347 = vld [vmem:[%s267 + $0xb2] sm:$0xff]
      %v348 = vld [vmem:[%s267 + $0xc2] sm:$0xff]
      %v349 = vld [vmem:[%s267 + $0xca] sm:$0xff]
      %v350 = vld [vmem:[%s267 + $0xda] sm:$0xff]
      %v351 = vld [vmem:[%s267 + $0xe2] sm:$0xff]
      %v352 = vld [vmem:[%s267 + $0xf2] sm:$0xff]
      %v353 = vld [vmem:[%s267 + $0xfa] sm:$0xff]
      %v354 = vld [vmem:[%s267 + $0x10a] sm:$0xff]
      %v355 = vld [vmem:[%s267 + $0x112] sm:$0xff]
      %v356 = vld [vmem:[%s267 + $0x122] sm:$0xff]
      %v357 = vld [vmem:[%s267 + $0x12a] sm:$0xff]
      %v358 = vld [vmem:[%s267 + $0x13a] sm:$0xff]
      %v359 = vld [vmem:[%s267 + $0x142] sm:$0xff]
      %v360 = vld [vmem:[%s267 + $0x152] sm:$0xff]
      %v361 = vld [vmem:[%s267 + $0x15a] sm:$0xff]
      %v362 = vld [vmem:[%s267 + $0x16a] sm:$0xff]
      %v363 = vld [vmem:[%s267 + $0x172] sm:$0xff]
      %s364 = scalar_lea.vmem %s165, 48
      %v365 = vld [vmem:[%s364] sm:$0xff]
      %v366 = vld [vmem:[%s364 + $0x8] sm:$0xff]
      %v367 = vld [vmem:[%s364 + $0x18] sm:$0xff]
      %v368 = vld [vmem:[%s364 + $0x20] sm:$0xff]
      %v369 = vld [vmem:[%s364 + $0x30] sm:$0xff]
      %v370 = vld [vmem:[%s364 + $0x38] sm:$0xff]
      %v371 = vld [vmem:[%s364 + $0x48] sm:$0xff]
      %v372 = vld [vmem:[%s364 + $0x50] sm:$0xff]
      %v373 = vld [vmem:[%s364 + $0x60] sm:$0xff]
      %v374 = vld [vmem:[%s364 + $0x68] sm:$0xff]
      %v375 = vld [vmem:[%s364 + $0x78] sm:$0xff]
      %v376 = vld [vmem:[%s364 + $0x80] sm:$0xff]
      %v377 = vld [vmem:[%s364 + $0x90] sm:$0xff]
      %v378 = vld [vmem:[%s364 + $0x98] sm:$0xff]
      %v379 = vld [vmem:[%s364 + $0xa8] sm:$0xff]
      %v380 = vld [vmem:[%s364 + $0xb0] sm:$0xff]
      %v381 = vld [vmem:[%s364 + $0xc0] sm:$0xff]
      %v382 = vld [vmem:[%s364 + $0xc8] sm:$0xff]
      %v383 = vld [vmem:[%s364 + $0xd8] sm:$0xff]
      %v384 = vld [vmem:[%s364 + $0xe0] sm:$0xff]
      %v385 = vld [vmem:[%s364 + $0xf0] sm:$0xff]
      %v386 = vld [vmem:[%s364 + $0xf8] sm:$0xff]
      %v387 = vld [vmem:[%s364 + $0x108] sm:$0xff]
      %v388 = vld [vmem:[%s364 + $0x110] sm:$0xff]
      %v389 = vld [vmem:[%s364 + $0x120] sm:$0xff]
      %v390 = vld [vmem:[%s364 + $0x128] sm:$0xff]
      %v391 = vld [vmem:[%s364 + $0x138] sm:$0xff]
      %v392 = vld [vmem:[%s364 + $0x140] sm:$0xff]
      %v393 = vld [vmem:[%s364 + $0x150] sm:$0xff]
      %v394 = vld [vmem:[%s364 + $0x158] sm:$0xff]
      %v395 = vld [vmem:[%s364 + $0x168] sm:$0xff]
      %v396 = vld [vmem:[%s364 + $0x170] sm:$0xff]
      %v397 = vld [vmem:[%s364 + $0x1] sm:$0xff]
      %v398 = vld [vmem:[%s364 + $0x9] sm:$0xff]
      %v399 = vld [vmem:[%s364 + $0x19] sm:$0xff]
      %v400 = vld [vmem:[%s364 + $0x21] sm:$0xff]
      %v401 = vld [vmem:[%s364 + $0x31] sm:$0xff]
      %v402 = vld [vmem:[%s364 + $0x39] sm:$0xff]
      %v403 = vld [vmem:[%s364 + $0x49] sm:$0xff]
      %v404 = vld [vmem:[%s364 + $0x51] sm:$0xff]
      %v405 = vld [vmem:[%s364 + $0x61] sm:$0xff]
      %v406 = vld [vmem:[%s364 + $0x69] sm:$0xff]
      %v407 = vld [vmem:[%s364 + $0x79] sm:$0xff]
      %v408 = vld [vmem:[%s364 + $0x81] sm:$0xff]
      %v409 = vld [vmem:[%s364 + $0x91] sm:$0xff]
      %v410 = vld [vmem:[%s364 + $0x99] sm:$0xff]
      %v411 = vld [vmem:[%s364 + $0xa9] sm:$0xff]
      %v412 = vld [vmem:[%s364 + $0xb1] sm:$0xff]
      %v413 = vld [vmem:[%s364 + $0xc1] sm:$0xff]
      %v414 = vld [vmem:[%s364 + $0xc9] sm:$0xff]
      %v415 = vld [vmem:[%s364 + $0xd9] sm:$0xff]
      %v416 = vld [vmem:[%s364 + $0xe1] sm:$0xff]
      %v417 = vld [vmem:[%s364 + $0xf1] sm:$0xff]
      %v418 = vld [vmem:[%s364 + $0xf9] sm:$0xff]
      %v419 = vld [vmem:[%s364 + $0x109] sm:$0xff]
      %v420 = vld [vmem:[%s364 + $0x111] sm:$0xff]
      %v421 = vld [vmem:[%s364 + $0x121] sm:$0xff]
      %v422 = vld [vmem:[%s364 + $0x129] sm:$0xff]
      %v423 = vld [vmem:[%s364 + $0x139] sm:$0xff]
      %v424 = vld [vmem:[%s364 + $0x141] sm:$0xff]
      %v425 = vld [vmem:[%s364 + $0x151] sm:$0xff]
      %v426 = vld [vmem:[%s364 + $0x159] sm:$0xff]
      %v427 = vld [vmem:[%s364 + $0x169] sm:$0xff]
      %v428 = vld [vmem:[%s364 + $0x171] sm:$0xff]
      %v429 = vld [vmem:[%s364 + $0x2] sm:$0xff]
      %v430 = vld [vmem:[%s364 + $0xa] sm:$0xff]
      %v431 = vld [vmem:[%s364 + $0x1a] sm:$0xff]
      %v432 = vld [vmem:[%s364 + $0x22] sm:$0xff]
      %v433 = vld [vmem:[%s364 + $0x32] sm:$0xff]
      %v434 = vld [vmem:[%s364 + $0x3a] sm:$0xff]
      %v435 = vld [vmem:[%s364 + $0x4a] sm:$0xff]
      %v436 = vld [vmem:[%s364 + $0x52] sm:$0xff]
      %v437 = vld [vmem:[%s364 + $0x62] sm:$0xff]
      %v438 = vld [vmem:[%s364 + $0x6a] sm:$0xff]
      %v439 = vld [vmem:[%s364 + $0x7a] sm:$0xff]
      %v440 = vld [vmem:[%s364 + $0x82] sm:$0xff]
      %v441 = vld [vmem:[%s364 + $0x92] sm:$0xff]
      %v442 = vld [vmem:[%s364 + $0x9a] sm:$0xff]
      %v443 = vld [vmem:[%s364 + $0xaa] sm:$0xff]
      %v444 = vld [vmem:[%s364 + $0xb2] sm:$0xff]
      %v445 = vld [vmem:[%s364 + $0xc2] sm:$0xff]
      %v446 = vld [vmem:[%s364 + $0xca] sm:$0xff]
      %v447 = vld [vmem:[%s364 + $0xda] sm:$0xff]
      %v448 = vld [vmem:[%s364 + $0xe2] sm:$0xff]
      %v449 = vld [vmem:[%s364 + $0xf2] sm:$0xff]
      %v450 = vld [vmem:[%s364 + $0xfa] sm:$0xff]
      %v451 = vld [vmem:[%s364 + $0x10a] sm:$0xff]
      %v452 = vld [vmem:[%s364 + $0x112] sm:$0xff]
      %v453 = vld [vmem:[%s364 + $0x122] sm:$0xff]
      %v454 = vld [vmem:[%s364 + $0x12a] sm:$0xff]
      %v455 = vld [vmem:[%s364 + $0x13a] sm:$0xff]
      %v456 = vld [vmem:[%s364 + $0x142] sm:$0xff]
      %v457 = vld [vmem:[%s364 + $0x152] sm:$0xff]
      %v458 = vld [vmem:[%s364 + $0x15a] sm:$0xff]
      %v459 = vld [vmem:[%s364 + $0x16a] sm:$0xff]
      %v460 = vld [vmem:[%s364 + $0x172] sm:$0xff]
      %493 = vrot.lane.b32.xlu0 %v203, 4
      %v494 = vpop.permute.xlu0 %493
      %495 = vrot.lane.b32.xlu0 %v204, 4
      %v496 = vpop.permute.xlu0 %495
      %497 = vrot.lane.b32.xlu0 %v205, 4
      %v498 = vpop.permute.xlu0 %497
      %499 = vrot.lane.b32.xlu0 %v206, 4
      %v500 = vpop.permute.xlu0 %499
      %501 = vrot.lane.b32.xlu0 %v207, 4
      %v502 = vpop.permute.xlu0 %501
      %503 = vrot.lane.b32.xlu0 %v208, 4
      %v504 = vpop.permute.xlu0 %503
      %505 = vrot.lane.b32.xlu0 %v209, 4
      %v506 = vpop.permute.xlu0 %505
      %507 = vrot.lane.b32.xlu0 %v210, 4
      %v508 = vpop.permute.xlu0 %507
      %509 = vrot.lane.b32.xlu0 %v211, 4
      %v510 = vpop.permute.xlu0 %509
      %511 = vrot.lane.b32.xlu0 %v212, 4
      %v512 = vpop.permute.xlu0 %511
      %513 = vrot.lane.b32.xlu0 %v213, 4
      %v514 = vpop.permute.xlu0 %513
      %515 = vrot.lane.b32.xlu0 %v214, 4
      %v516 = vpop.permute.xlu0 %515
      %517 = vrot.lane.b32.xlu0 %v215, 4
      %v518 = vpop.permute.xlu0 %517
      %519 = vrot.lane.b32.xlu0 %v216, 4
      %v520 = vpop.permute.xlu0 %519
      %521 = vrot.lane.b32.xlu0 %v217, 4
      %v522 = vpop.permute.xlu0 %521
      %523 = vrot.lane.b32.xlu0 %v218, 4
      %v524 = vpop.permute.xlu0 %523
      %525 = vrot.lane.b32.xlu0 %v219, 4
      %v526 = vpop.permute.xlu0 %525
      %527 = vrot.lane.b32.xlu0 %v220, 4
      %v528 = vpop.permute.xlu0 %527
      %529 = vrot.lane.b32.xlu0 %v221, 4
      %v530 = vpop.permute.xlu0 %529
      %531 = vrot.lane.b32.xlu0 %v222, 4
      %v532 = vpop.permute.xlu0 %531
      %533 = vrot.lane.b32.xlu0 %v223, 4
      %v534 = vpop.permute.xlu0 %533
      %535 = vrot.lane.b32.xlu0 %v224, 4
      %v536 = vpop.permute.xlu0 %535
      %537 = vrot.lane.b32.xlu0 %v225, 4
      %v538 = vpop.permute.xlu0 %537
      %539 = vrot.lane.b32.xlu0 %v226, 4
      %v540 = vpop.permute.xlu0 %539
      %541 = vrot.lane.b32.xlu0 %v227, 4
      %v542 = vpop.permute.xlu0 %541
      %543 = vrot.lane.b32.xlu0 %v228, 4
      %v544 = vpop.permute.xlu0 %543
      %545 = vrot.lane.b32.xlu0 %v229, 4
      %v546 = vpop.permute.xlu0 %545
      %547 = vrot.lane.b32.xlu0 %v230, 4
      %v548 = vpop.permute.xlu0 %547
      %549 = vrot.lane.b32.xlu0 %v231, 4
      %v550 = vpop.permute.xlu0 %549
      %551 = vrot.lane.b32.xlu0 %v232, 4
      %v552 = vpop.permute.xlu0 %551
      %553 = vrot.lane.b32.xlu0 %v233, 4
      %v554 = vpop.permute.xlu0 %553
      %555 = vrot.lane.b32.xlu0 %v234, 4
      %v556 = vpop.permute.xlu0 %555
      %621 = vrot.lane.b32.xlu0 %v235, 8
      %v622 = vpop.permute.xlu0 %621
      %623 = vrot.lane.b32.xlu0 %v236, 8
      %v624 = vpop.permute.xlu0 %623
      %625 = vrot.lane.b32.xlu0 %v237, 8
      %v626 = vpop.permute.xlu0 %625
      %627 = vrot.lane.b32.xlu0 %v238, 8
      %v628 = vpop.permute.xlu0 %627
      %629 = vrot.lane.b32.xlu0 %v239, 8
      %v630 = vpop.permute.xlu0 %629
      %631 = vrot.lane.b32.xlu0 %v240, 8
      %v632 = vpop.permute.xlu0 %631
      %633 = vrot.lane.b32.xlu0 %v241, 8
      %v634 = vpop.permute.xlu0 %633
      %635 = vrot.lane.b32.xlu0 %v242, 8
      %v636 = vpop.permute.xlu0 %635
      %637 = vrot.lane.b32.xlu0 %v243, 8
      %v638 = vpop.permute.xlu0 %637
      %639 = vrot.lane.b32.xlu0 %v244, 8
      %v640 = vpop.permute.xlu0 %639
      %641 = vrot.lane.b32.xlu0 %v245, 8
      %v642 = vpop.permute.xlu0 %641
      %643 = vrot.lane.b32.xlu0 %v246, 8
      %v644 = vpop.permute.xlu0 %643
      %645 = vrot.lane.b32.xlu0 %v247, 8
      %v646 = vpop.permute.xlu0 %645
      %647 = vrot.lane.b32.xlu0 %v248, 8
      %v648 = vpop.permute.xlu0 %647
      %649 = vrot.lane.b32.xlu0 %v249, 8
      %v650 = vpop.permute.xlu0 %649
      %651 = vrot.lane.b32.xlu0 %v250, 8
      %v652 = vpop.permute.xlu0 %651
      %653 = vrot.lane.b32.xlu0 %v251, 8
      %v654 = vpop.permute.xlu0 %653
      %655 = vrot.lane.b32.xlu0 %v252, 8
      %v656 = vpop.permute.xlu0 %655
      %657 = vrot.lane.b32.xlu0 %v253, 8
      %v658 = vpop.permute.xlu0 %657
      %659 = vrot.lane.b32.xlu0 %v254, 8
      %v660 = vpop.permute.xlu0 %659
      %661 = vrot.lane.b32.xlu0 %v255, 8
      %v662 = vpop.permute.xlu0 %661
      %663 = vrot.lane.b32.xlu0 %v256, 8
      %v664 = vpop.permute.xlu0 %663
      %665 = vrot.lane.b32.xlu0 %v257, 8
      %v666 = vpop.permute.xlu0 %665
      %667 = vrot.lane.b32.xlu0 %v258, 8
      %v668 = vpop.permute.xlu0 %667
      %669 = vrot.lane.b32.xlu0 %v259, 8
      %v670 = vpop.permute.xlu0 %669
      %671 = vrot.lane.b32.xlu0 %v260, 8
      %v672 = vpop.permute.xlu0 %671
      %673 = vrot.lane.b32.xlu0 %v261, 8
      %v674 = vpop.permute.xlu0 %673
      %675 = vrot.lane.b32.xlu0 %v262, 8
      %v676 = vpop.permute.xlu0 %675
      %677 = vrot.lane.b32.xlu0 %v263, 8
      %v678 = vpop.permute.xlu0 %677
      %679 = vrot.lane.b32.xlu0 %v264, 8
      %v680 = vpop.permute.xlu0 %679
      %681 = vrot.lane.b32.xlu0 %v265, 8
      %v682 = vpop.permute.xlu0 %681
      %683 = vrot.lane.b32.xlu0 %v266, 8
      %v684 = vpop.permute.xlu0 %683
      %749 = vrot.lane.b32.xlu0 %v268, 12
      %v750 = vpop.permute.xlu0 %749
      %751 = vrot.lane.b32.xlu0 %v269, 12
      %v752 = vpop.permute.xlu0 %751
      %753 = vrot.lane.b32.xlu0 %v270, 12
      %v754 = vpop.permute.xlu0 %753
      %755 = vrot.lane.b32.xlu0 %v271, 12
      %v756 = vpop.permute.xlu0 %755
      %757 = vrot.lane.b32.xlu0 %v272, 12
      %v758 = vpop.permute.xlu0 %757
      %759 = vrot.lane.b32.xlu0 %v273, 12
      %v760 = vpop.permute.xlu0 %759
      %761 = vrot.lane.b32.xlu0 %v274, 12
      %v762 = vpop.permute.xlu0 %761
      %763 = vrot.lane.b32.xlu0 %v275, 12
      %v764 = vpop.permute.xlu0 %763
      %765 = vrot.lane.b32.xlu0 %v276, 12
      %v766 = vpop.permute.xlu0 %765
      %767 = vrot.lane.b32.xlu0 %v277, 12
      %v768 = vpop.permute.xlu0 %767
      %769 = vrot.lane.b32.xlu0 %v278, 12
      %v770 = vpop.permute.xlu0 %769
      %771 = vrot.lane.b32.xlu0 %v279, 12
      %v772 = vpop.permute.xlu0 %771
      %773 = vrot.lane.b32.xlu0 %v280, 12
      %v774 = vpop.permute.xlu0 %773
      %775 = vrot.lane.b32.xlu0 %v281, 12
      %v776 = vpop.permute.xlu0 %775
      %777 = vrot.lane.b32.xlu0 %v282, 12
      %v778 = vpop.permute.xlu0 %777
      %779 = vrot.lane.b32.xlu0 %v283, 12
      %v780 = vpop.permute.xlu0 %779
      %781 = vrot.lane.b32.xlu0 %v284, 12
      %v782 = vpop.permute.xlu0 %781
      %783 = vrot.lane.b32.xlu0 %v285, 12
      %v784 = vpop.permute.xlu0 %783
      %785 = vrot.lane.b32.xlu0 %v286, 12
      %v786 = vpop.permute.xlu0 %785
      %787 = vrot.lane.b32.xlu0 %v287, 12
      %v788 = vpop.permute.xlu0 %787
      %789 = vrot.lane.b32.xlu0 %v288, 12
      %v790 = vpop.permute.xlu0 %789
      %791 = vrot.lane.b32.xlu0 %v289, 12
      %v792 = vpop.permute.xlu0 %791
      %793 = vrot.lane.b32.xlu0 %v290, 12
      %v794 = vpop.permute.xlu0 %793
      %795 = vrot.lane.b32.xlu0 %v291, 12
      %v796 = vpop.permute.xlu0 %795
      %797 = vrot.lane.b32.xlu0 %v292, 12
      %v798 = vpop.permute.xlu0 %797
      %799 = vrot.lane.b32.xlu0 %v293, 12
      %v800 = vpop.permute.xlu0 %799
      %801 = vrot.lane.b32.xlu0 %v294, 12
      %v802 = vpop.permute.xlu0 %801
      %803 = vrot.lane.b32.xlu0 %v295, 12
      %v804 = vpop.permute.xlu0 %803
      %805 = vrot.lane.b32.xlu0 %v296, 12
      %v806 = vpop.permute.xlu0 %805
      %807 = vrot.lane.b32.xlu0 %v297, 12
      %v808 = vpop.permute.xlu0 %807
      %809 = vrot.lane.b32.xlu0 %v298, 12
      %v810 = vpop.permute.xlu0 %809
      %811 = vrot.lane.b32.xlu0 %v299, 12
      %v812 = vpop.permute.xlu0 %811
      %877 = vrot.lane.b32.xlu0 %v300, 16
      %v878 = vpop.permute.xlu0 %877
      %879 = vrot.lane.b32.xlu0 %v301, 16
      %v880 = vpop.permute.xlu0 %879
      %881 = vrot.lane.b32.xlu0 %v302, 16
      %v882 = vpop.permute.xlu0 %881
      %883 = vrot.lane.b32.xlu0 %v303, 16
      %v884 = vpop.permute.xlu0 %883
      %885 = vrot.lane.b32.xlu0 %v304, 16
      %v886 = vpop.permute.xlu0 %885
      %887 = vrot.lane.b32.xlu0 %v305, 16
      %v888 = vpop.permute.xlu0 %887
      %889 = vrot.lane.b32.xlu0 %v306, 16
      %v890 = vpop.permute.xlu0 %889
      %891 = vrot.lane.b32.xlu0 %v307, 16
      %v892 = vpop.permute.xlu0 %891
      %893 = vrot.lane.b32.xlu0 %v308, 16
      %v894 = vpop.permute.xlu0 %893
      %895 = vrot.lane.b32.xlu0 %v309, 16
      %v896 = vpop.permute.xlu0 %895
      %897 = vrot.lane.b32.xlu0 %v310, 16
      %v898 = vpop.permute.xlu0 %897
      %899 = vrot.lane.b32.xlu0 %v311, 16
      %v900 = vpop.permute.xlu0 %899
      %901 = vrot.lane.b32.xlu0 %v312, 16
      %v902 = vpop.permute.xlu0 %901
      %903 = vrot.lane.b32.xlu0 %v313, 16
      %v904 = vpop.permute.xlu0 %903
      %905 = vrot.lane.b32.xlu0 %v314, 16
      %v906 = vpop.permute.xlu0 %905
      %907 = vrot.lane.b32.xlu0 %v315, 16
      %v908 = vpop.permute.xlu0 %907
      %909 = vrot.lane.b32.xlu0 %v316, 16
      %v910 = vpop.permute.xlu0 %909
      %911 = vrot.lane.b32.xlu0 %v317, 16
      %v912 = vpop.permute.xlu0 %911
      %913 = vrot.lane.b32.xlu0 %v318, 16
      %v914 = vpop.permute.xlu0 %913
      %915 = vrot.lane.b32.xlu0 %v319, 16
      %v916 = vpop.permute.xlu0 %915
      %917 = vrot.lane.b32.xlu0 %v320, 16
      %v918 = vpop.permute.xlu0 %917
      %919 = vrot.lane.b32.xlu0 %v321, 16
      %v920 = vpop.permute.xlu0 %919
      %921 = vrot.lane.b32.xlu0 %v322, 16
      %v922 = vpop.permute.xlu0 %921
      %923 = vrot.lane.b32.xlu0 %v323, 16
      %v924 = vpop.permute.xlu0 %923
      %925 = vrot.lane.b32.xlu0 %v324, 16
      %v926 = vpop.permute.xlu0 %925
      %927 = vrot.lane.b32.xlu0 %v325, 16
      %v928 = vpop.permute.xlu0 %927
      %929 = vrot.lane.b32.xlu0 %v326, 16
      %v930 = vpop.permute.xlu0 %929
      %931 = vrot.lane.b32.xlu0 %v327, 16
      %v932 = vpop.permute.xlu0 %931
      %933 = vrot.lane.b32.xlu0 %v328, 16
      %v934 = vpop.permute.xlu0 %933
      %935 = vrot.lane.b32.xlu0 %v329, 16
      %v936 = vpop.permute.xlu0 %935
      %937 = vrot.lane.b32.xlu0 %v330, 16
      %v938 = vpop.permute.xlu0 %937
      %939 = vrot.lane.b32.xlu0 %v331, 16
      %v940 = vpop.permute.xlu0 %939
      %1005 = vrot.lane.b32.xlu0 %v332, 20
      %v1006 = vpop.permute.xlu0 %1005
      %1007 = vrot.lane.b32.xlu0 %v333, 20
      %v1008 = vpop.permute.xlu0 %1007
      %1009 = vrot.lane.b32.xlu0 %v334, 20
      %v1010 = vpop.permute.xlu0 %1009
      %1011 = vrot.lane.b32.xlu0 %v335, 20
      %v1012 = vpop.permute.xlu0 %1011
      %1013 = vrot.lane.b32.xlu0 %v336, 20
      %v1014 = vpop.permute.xlu0 %1013
      %1015 = vrot.lane.b32.xlu0 %v337, 20
      %v1016 = vpop.permute.xlu0 %1015
      %1017 = vrot.lane.b32.xlu0 %v338, 20
      %v1018 = vpop.permute.xlu0 %1017
      %1019 = vrot.lane.b32.xlu0 %v339, 20
      %v1020 = vpop.permute.xlu0 %1019
      %1021 = vrot.lane.b32.xlu0 %v340, 20
      %v1022 = vpop.permute.xlu0 %1021
      %1023 = vrot.lane.b32.xlu0 %v341, 20
      %v1024 = vpop.permute.xlu0 %1023
      %1025 = vrot.lane.b32.xlu0 %v342, 20
      %v1026 = vpop.permute.xlu0 %1025
      %1027 = vrot.lane.b32.xlu0 %v343, 20
      %v1028 = vpop.permute.xlu0 %1027
      %1029 = vrot.lane.b32.xlu0 %v344, 20
      %v1030 = vpop.permute.xlu0 %1029
      %1031 = vrot.lane.b32.xlu0 %v345, 20
      %v1032 = vpop.permute.xlu0 %1031
      %1033 = vrot.lane.b32.xlu0 %v346, 20
      %v1034 = vpop.permute.xlu0 %1033
      %1035 = vrot.lane.b32.xlu0 %v347, 20
      %v1036 = vpop.permute.xlu0 %1035
      %1037 = vrot.lane.b32.xlu0 %v348, 20
      %v1038 = vpop.permute.xlu0 %1037
      %1039 = vrot.lane.b32.xlu0 %v349, 20
      %v1040 = vpop.permute.xlu0 %1039
      %1041 = vrot.lane.b32.xlu0 %v350, 20
      %v1042 = vpop.permute.xlu0 %1041
      %1043 = vrot.lane.b32.xlu0 %v351, 20
      %v1044 = vpop.permute.xlu0 %1043
      %1045 = vrot.lane.b32.xlu0 %v352, 20
      %v1046 = vpop.permute.xlu0 %1045
      %1047 = vrot.lane.b32.xlu0 %v353, 20
      %v1048 = vpop.permute.xlu0 %1047
      %1049 = vrot.lane.b32.xlu0 %v354, 20
      %v1050 = vpop.permute.xlu0 %1049
      %1051 = vrot.lane.b32.xlu0 %v355, 20
      %v1052 = vpop.permute.xlu0 %1051
      %1053 = vrot.lane.b32.xlu0 %v356, 20
      %v1054 = vpop.permute.xlu0 %1053
      %1055 = vrot.lane.b32.xlu0 %v357, 20
      %v1056 = vpop.permute.xlu0 %1055
      %1057 = vrot.lane.b32.xlu0 %v358, 20
      %v1058 = vpop.permute.xlu0 %1057
      %1059 = vrot.lane.b32.xlu0 %v359, 20
      %v1060 = vpop.permute.xlu0 %1059
      %1061 = vrot.lane.b32.xlu0 %v360, 20
      %v1062 = vpop.permute.xlu0 %1061
      %1063 = vrot.lane.b32.xlu0 %v361, 20
      %v1064 = vpop.permute.xlu0 %1063
      %1065 = vrot.lane.b32.xlu0 %v362, 20
      %v1066 = vpop.permute.xlu0 %1065
      %1067 = vrot.lane.b32.xlu0 %v363, 20
      %v1068 = vpop.permute.xlu0 %1067
      %1133 = vrot.lane.b32.xlu0 %v365, 24
      %v1134 = vpop.permute.xlu0 %1133
      %1135 = vrot.lane.b32.xlu0 %v366, 24
      %v1136 = vpop.permute.xlu0 %1135
      %1137 = vrot.lane.b32.xlu0 %v367, 24
      %v1138 = vpop.permute.xlu0 %1137
      %1139 = vrot.lane.b32.xlu0 %v368, 24
      %v1140 = vpop.permute.xlu0 %1139
      %1141 = vrot.lane.b32.xlu0 %v369, 24
      %v1142 = vpop.permute.xlu0 %1141
      %1143 = vrot.lane.b32.xlu0 %v370, 24
      %v1144 = vpop.permute.xlu0 %1143
      %1145 = vrot.lane.b32.xlu0 %v371, 24
      %v1146 = vpop.permute.xlu0 %1145
      %1147 = vrot.lane.b32.xlu0 %v372, 24
      %v1148 = vpop.permute.xlu0 %1147
      %1149 = vrot.lane.b32.xlu0 %v373, 24
      %v1150 = vpop.permute.xlu0 %1149
      %1151 = vrot.lane.b32.xlu0 %v374, 24
      %v1152 = vpop.permute.xlu0 %1151
      %1153 = vrot.lane.b32.xlu0 %v375, 24
      %v1154 = vpop.permute.xlu0 %1153
      %1155 = vrot.lane.b32.xlu0 %v376, 24
      %v1156 = vpop.permute.xlu0 %1155
      %1157 = vrot.lane.b32.xlu0 %v377, 24
      %v1158 = vpop.permute.xlu0 %1157
      %1159 = vrot.lane.b32.xlu0 %v378, 24
      %v1160 = vpop.permute.xlu0 %1159
      %1161 = vrot.lane.b32.xlu0 %v379, 24
      %v1162 = vpop.permute.xlu0 %1161
      %1163 = vrot.lane.b32.xlu0 %v380, 24
      %v1164 = vpop.permute.xlu0 %1163
      %1165 = vrot.lane.b32.xlu0 %v381, 24
      %v1166 = vpop.permute.xlu0 %1165
      %1167 = vrot.lane.b32.xlu0 %v382, 24
      %v1168 = vpop.permute.xlu0 %1167
      %1169 = vrot.lane.b32.xlu0 %v383, 24
      %v1170 = vpop.permute.xlu0 %1169
      %1171 = vrot.lane.b32.xlu0 %v384, 24
      %v1172 = vpop.permute.xlu0 %1171
      %1173 = vrot.lane.b32.xlu0 %v385, 24
      %v1174 = vpop.permute.xlu0 %1173
      %1175 = vrot.lane.b32.xlu0 %v386, 24
      %v1176 = vpop.permute.xlu0 %1175
      %1177 = vrot.lane.b32.xlu0 %v387, 24
      %v1178 = vpop.permute.xlu0 %1177
      %1179 = vrot.lane.b32.xlu0 %v388, 24
      %v1180 = vpop.permute.xlu0 %1179
      %1181 = vrot.lane.b32.xlu0 %v389, 24
      %v1182 = vpop.permute.xlu0 %1181
      %1183 = vrot.lane.b32.xlu0 %v390, 24
      %v1184 = vpop.permute.xlu0 %1183
      %1185 = vrot.lane.b32.xlu0 %v391, 24
      %v1186 = vpop.permute.xlu0 %1185
      %1187 = vrot.lane.b32.xlu0 %v392, 24
      %v1188 = vpop.permute.xlu0 %1187
      %1189 = vrot.lane.b32.xlu0 %v393, 24
      %v1190 = vpop.permute.xlu0 %1189
      %1191 = vrot.lane.b32.xlu0 %v394, 24
      %v1192 = vpop.permute.xlu0 %1191
      %1193 = vrot.lane.b32.xlu0 %v395, 24
      %v1194 = vpop.permute.xlu0 %1193
      %1195 = vrot.lane.b32.xlu0 %v396, 24
      %v1196 = vpop.permute.xlu0 %1195
      %1261 = vrot.lane.b32.xlu0 %v397, 28
      %v1262 = vpop.permute.xlu0 %1261
      %1263 = vrot.lane.b32.xlu0 %v398, 28
      %v1264 = vpop.permute.xlu0 %1263
      %1265 = vrot.lane.b32.xlu0 %v399, 28
      %v1266 = vpop.permute.xlu0 %1265
      %1267 = vrot.lane.b32.xlu0 %v400, 28
      %v1268 = vpop.permute.xlu0 %1267
      %1269 = vrot.lane.b32.xlu0 %v401, 28
      %v1270 = vpop.permute.xlu0 %1269
      %1271 = vrot.lane.b32.xlu0 %v402, 28
      %v1272 = vpop.permute.xlu0 %1271
      %1273 = vrot.lane.b32.xlu0 %v403, 28
      %v1274 = vpop.permute.xlu0 %1273
      %1275 = vrot.lane.b32.xlu0 %v404, 28
      %v1276 = vpop.permute.xlu0 %1275
      %1277 = vrot.lane.b32.xlu0 %v405, 28
      %v1278 = vpop.permute.xlu0 %1277
      %1279 = vrot.lane.b32.xlu0 %v406, 28
      %v1280 = vpop.permute.xlu0 %1279
      %1281 = vrot.lane.b32.xlu0 %v407, 28
      %v1282 = vpop.permute.xlu0 %1281
      %1283 = vrot.lane.b32.xlu0 %v408, 28
      %v1284 = vpop.permute.xlu0 %1283
      %1285 = vrot.lane.b32.xlu0 %v409, 28
      %v1286 = vpop.permute.xlu0 %1285
      %1287 = vrot.lane.b32.xlu0 %v410, 28
      %v1288 = vpop.permute.xlu0 %1287
      %1289 = vrot.lane.b32.xlu0 %v411, 28
      %v1290 = vpop.permute.xlu0 %1289
      %1291 = vrot.lane.b32.xlu0 %v412, 28
      %v1292 = vpop.permute.xlu0 %1291
      %1293 = vrot.lane.b32.xlu0 %v413, 28
      %v1294 = vpop.permute.xlu0 %1293
      %1295 = vrot.lane.b32.xlu0 %v414, 28
      %v1296 = vpop.permute.xlu0 %1295
      %1297 = vrot.lane.b32.xlu0 %v415, 28
      %v1298 = vpop.permute.xlu0 %1297
      %1299 = vrot.lane.b32.xlu0 %v416, 28
      %v1300 = vpop.permute.xlu0 %1299
      %1301 = vrot.lane.b32.xlu0 %v417, 28
      %v1302 = vpop.permute.xlu0 %1301
      %1303 = vrot.lane.b32.xlu0 %v418, 28
      %v1304 = vpop.permute.xlu0 %1303
      %1305 = vrot.lane.b32.xlu0 %v419, 28
      %v1306 = vpop.permute.xlu0 %1305
      %1307 = vrot.lane.b32.xlu0 %v420, 28
      %v1308 = vpop.permute.xlu0 %1307
      %1309 = vrot.lane.b32.xlu0 %v421, 28
      %v1310 = vpop.permute.xlu0 %1309
      %1311 = vrot.lane.b32.xlu0 %v422, 28
      %v1312 = vpop.permute.xlu0 %1311
      %1313 = vrot.lane.b32.xlu0 %v423, 28
      %v1314 = vpop.permute.xlu0 %1313
      %1315 = vrot.lane.b32.xlu0 %v424, 28
      %v1316 = vpop.permute.xlu0 %1315
      %1317 = vrot.lane.b32.xlu0 %v425, 28
      %v1318 = vpop.permute.xlu0 %1317
      %1319 = vrot.lane.b32.xlu0 %v426, 28
      %v1320 = vpop.permute.xlu0 %1319
      %1321 = vrot.lane.b32.xlu0 %v427, 28
      %v1322 = vpop.permute.xlu0 %1321
      %1323 = vrot.lane.b32.xlu0 %v428, 28
      %v1324 = vpop.permute.xlu0 %1323
      %1389 = vrot.lane.b32.xlu0 %v429, 32
      %v1390 = vpop.permute.xlu0 %1389
      %1391 = vrot.lane.b32.xlu0 %v430, 32
      %v1392 = vpop.permute.xlu0 %1391
      %1393 = vrot.lane.b32.xlu0 %v431, 32
      %v1394 = vpop.permute.xlu0 %1393
      %1395 = vrot.lane.b32.xlu0 %v432, 32
      %v1396 = vpop.permute.xlu0 %1395
      %1397 = vrot.lane.b32.xlu0 %v433, 32
      %v1398 = vpop.permute.xlu0 %1397
      %1399 = vrot.lane.b32.xlu0 %v434, 32
      %v1400 = vpop.permute.xlu0 %1399
      %1401 = vrot.lane.b32.xlu0 %v435, 32
      %v1402 = vpop.permute.xlu0 %1401
      %1403 = vrot.lane.b32.xlu0 %v436, 32
      %v1404 = vpop.permute.xlu0 %1403
      %1405 = vrot.lane.b32.xlu0 %v437, 32
      %v1406 = vpop.permute.xlu0 %1405
      %1407 = vrot.lane.b32.xlu0 %v438, 32
      %v1408 = vpop.permute.xlu0 %1407
      %1409 = vrot.lane.b32.xlu0 %v439, 32
      %v1410 = vpop.permute.xlu0 %1409
      %1411 = vrot.lane.b32.xlu0 %v440, 32
      %v1412 = vpop.permute.xlu0 %1411
      %1413 = vrot.lane.b32.xlu0 %v441, 32
      %v1414 = vpop.permute.xlu0 %1413
      %1415 = vrot.lane.b32.xlu0 %v442, 32
      %v1416 = vpop.permute.xlu0 %1415
      %1417 = vrot.lane.b32.xlu0 %v443, 32
      %v1418 = vpop.permute.xlu0 %1417
      %1419 = vrot.lane.b32.xlu0 %v444, 32
      %v1420 = vpop.permute.xlu0 %1419
      %1421 = vrot.lane.b32.xlu0 %v445, 32
      %v1422 = vpop.permute.xlu0 %1421
      %1423 = vrot.lane.b32.xlu0 %v446, 32
      %v1424 = vpop.permute.xlu0 %1423
      %1425 = vrot.lane.b32.xlu0 %v447, 32
      %v1426 = vpop.permute.xlu0 %1425
      %1427 = vrot.lane.b32.xlu0 %v448, 32
      %v1428 = vpop.permute.xlu0 %1427
      %1429 = vrot.lane.b32.xlu0 %v449, 32
      %v1430 = vpop.permute.xlu0 %1429
      %1431 = vrot.lane.b32.xlu0 %v450, 32
      %v1432 = vpop.permute.xlu0 %1431
      %1433 = vrot.lane.b32.xlu0 %v451, 32
      %v1434 = vpop.permute.xlu0 %1433
      %1435 = vrot.lane.b32.xlu0 %v452, 32
      %v1436 = vpop.permute.xlu0 %1435
      %1437 = vrot.lane.b32.xlu0 %v453, 32
      %v1438 = vpop.permute.xlu0 %1437
      %1439 = vrot.lane.b32.xlu0 %v454, 32
      %v1440 = vpop.permute.xlu0 %1439
      %1441 = vrot.lane.b32.xlu0 %v455, 32
      %v1442 = vpop.permute.xlu0 %1441
      %1443 = vrot.lane.b32.xlu0 %v456, 32
      %v1444 = vpop.permute.xlu0 %1443
      %1445 = vrot.lane.b32.xlu0 %v457, 32
      %v1446 = vpop.permute.xlu0 %1445
      %1447 = vrot.lane.b32.xlu0 %v458, 32
      %v1448 = vpop.permute.xlu0 %1447
      %1449 = vrot.lane.b32.xlu0 %v459, 32
      %v1450 = vpop.permute.xlu0 %1449
      %1451 = vrot.lane.b32.xlu0 %v460, 32
      %v1452 = vpop.permute.xlu0 %1451
      %vm1485 = vcmask 31744
      %v1486 = vsel %vm1485, %v171, %v494
      %v1487 = vsel %vm1485, %v172, %v496
      %v1488 = vsel %vm1485, %v173, %v498
      %v1489 = vsel %vm1485, %v174, %v500
      %v1490 = vsel %vm1485, %v175, %v502
      %v1491 = vsel %vm1485, %v176, %v504
      %v1492 = vsel %vm1485, %v177, %v506
      %v1493 = vsel %vm1485, %v178, %v508
      %v1494 = vsel %vm1485, %v179, %v510
      %v1495 = vsel %vm1485, %v180, %v512
      %v1496 = vsel %vm1485, %v181, %v514
      %v1497 = vsel %vm1485, %v182, %v516
      %v1498 = vsel %vm1485, %v183, %v518
      %v1499 = vsel %vm1485, %v184, %v520
      %v1500 = vsel %vm1485, %v185, %v522
      %v1501 = vsel %vm1485, %v186, %v524
      %v1502 = vsel %vm1485, %v187, %v526
      %v1503 = vsel %vm1485, %v188, %v528
      %v1504 = vsel %vm1485, %v189, %v530
      %v1505 = vsel %vm1485, %v190, %v532
      %v1506 = vsel %vm1485, %v191, %v534
      %v1507 = vsel %vm1485, %v192, %v536
      %v1508 = vsel %vm1485, %v193, %v538
      %v1509 = vsel %vm1485, %v194, %v540
      %v1510 = vsel %vm1485, %v195, %v542
      %v1511 = vsel %vm1485, %v196, %v544
      %v1512 = vsel %vm1485, %v197, %v546
      %v1513 = vsel %vm1485, %v198, %v548
      %v1514 = vsel %vm1485, %v199, %v550
      %v1515 = vsel %vm1485, %v200, %v552
      %v1516 = vsel %vm1485, %v201, %v554
      %v1517 = vsel %vm1485, %v202, %v556
      %vm1518 = vcmask 64512
      %v1519 = vsel %vm1518, %v1486, %v622
      %v1520 = vsel %vm1518, %v1487, %v624
      %v1521 = vsel %vm1518, %v1488, %v626
      %v1522 = vsel %vm1518, %v1489, %v628
      %v1523 = vsel %vm1518, %v1490, %v630
      %v1524 = vsel %vm1518, %v1491, %v632
      %v1525 = vsel %vm1518, %v1492, %v634
      %v1526 = vsel %vm1518, %v1493, %v636
      %v1527 = vsel %vm1518, %v1494, %v638
      %v1528 = vsel %vm1518, %v1495, %v640
      %v1529 = vsel %vm1518, %v1496, %v642
      %v1530 = vsel %vm1518, %v1497, %v644
      %v1531 = vsel %vm1518, %v1498, %v646
      %v1532 = vsel %vm1518, %v1499, %v648
      %v1533 = vsel %vm1518, %v1500, %v650
      %v1534 = vsel %vm1518, %v1501, %v652
      %v1535 = vsel %vm1518, %v1502, %v654
      %v1536 = vsel %vm1518, %v1503, %v656
      %v1537 = vsel %vm1518, %v1504, %v658
      %v1538 = vsel %vm1518, %v1505, %v660
      %v1539 = vsel %vm1518, %v1506, %v662
      %v1540 = vsel %vm1518, %v1507, %v664
      %v1541 = vsel %vm1518, %v1508, %v666
      %v1542 = vsel %vm1518, %v1509, %v668
      %v1543 = vsel %vm1518, %v1510, %v670
      %v1544 = vsel %vm1518, %v1511, %v672
      %v1545 = vsel %vm1518, %v1512, %v674
      %v1546 = vsel %vm1518, %v1513, %v676
      %v1547 = vsel %vm1518, %v1514, %v678
      %v1548 = vsel %vm1518, %v1515, %v680
      %v1549 = vsel %vm1518, %v1516, %v682
      %v1550 = vsel %vm1518, %v1517, %v684
      %vm1551 = vcmask 97280
      %v1552 = vsel %vm1551, %v1519, %v750
      %v1553 = vsel %vm1551, %v1520, %v752
      %v1554 = vsel %vm1551, %v1521, %v754
      %v1555 = vsel %vm1551, %v1522, %v756
      %v1556 = vsel %vm1551, %v1523, %v758
      %v1557 = vsel %vm1551, %v1524, %v760
      %v1558 = vsel %vm1551, %v1525, %v762
      %v1559 = vsel %vm1551, %v1526, %v764
      %v1560 = vsel %vm1551, %v1527, %v766
      %v1561 = vsel %vm1551, %v1528, %v768
      %v1562 = vsel %vm1551, %v1529, %v770
      %v1563 = vsel %vm1551, %v1530, %v772
      %v1564 = vsel %vm1551, %v1531, %v774
      %v1565 = vsel %vm1551, %v1532, %v776
      %v1566 = vsel %vm1551, %v1533, %v778
      %v1567 = vsel %vm1551, %v1534, %v780
      %v1568 = vsel %vm1551, %v1535, %v782
      %v1569 = vsel %vm1551, %v1536, %v784
      %v1570 = vsel %vm1551, %v1537, %v786
      %v1571 = vsel %vm1551, %v1538, %v788
      %v1572 = vsel %vm1551, %v1539, %v790
      %v1573 = vsel %vm1551, %v1540, %v792
      %v1574 = vsel %vm1551, %v1541, %v794
      %v1575 = vsel %vm1551, %v1542, %v796
      %v1576 = vsel %vm1551, %v1543, %v798
      %v1577 = vsel %vm1551, %v1544, %v800
      %v1578 = vsel %vm1551, %v1545, %v802
      %v1579 = vsel %vm1551, %v1546, %v804
      %v1580 = vsel %vm1551, %v1547, %v806
      %v1581 = vsel %vm1551, %v1548, %v808
      %v1582 = vsel %vm1551, %v1549, %v810
      %v1583 = vsel %vm1551, %v1550, %v812
      %vm1584 = vcmask 130048
      %v1585 = vsel %vm1584, %v1552, %v878
      %v1586 = vsel %vm1584, %v1553, %v880
      %v1587 = vsel %vm1584, %v1554, %v882
      %v1588 = vsel %vm1584, %v1555, %v884
      %v1589 = vsel %vm1584, %v1556, %v886
      %v1590 = vsel %vm1584, %v1557, %v888
      %v1591 = vsel %vm1584, %v1558, %v890
      %v1592 = vsel %vm1584, %v1559, %v892
      %v1593 = vsel %vm1584, %v1560, %v894
      %v1594 = vsel %vm1584, %v1561, %v896
      %v1595 = vsel %vm1584, %v1562, %v898
      %v1596 = vsel %vm1584, %v1563, %v900
      %v1597 = vsel %vm1584, %v1564, %v902
      %v1598 = vsel %vm1584, %v1565, %v904
      %v1599 = vsel %vm1584, %v1566, %v906
      %v1600 = vsel %vm1584, %v1567, %v908
      %v1601 = vsel %vm1584, %v1568, %v910
      %v1602 = vsel %vm1584, %v1569, %v912
      %v1603 = vsel %vm1584, %v1570, %v914
      %v1604 = vsel %vm1584, %v1571, %v916
      %v1605 = vsel %vm1584, %v1572, %v918
      %v1606 = vsel %vm1584, %v1573, %v920
      %v1607 = vsel %vm1584, %v1574, %v922
      %v1608 = vsel %vm1584, %v1575, %v924
      %v1609 = vsel %vm1584, %v1576, %v926
      %v1610 = vsel %vm1584, %v1577, %v928
      %v1611 = vsel %vm1584, %v1578, %v930
      %v1612 = vsel %vm1584, %v1579, %v932
      %v1613 = vsel %vm1584, %v1580, %v934
      %v1614 = vsel %vm1584, %v1581, %v936
      %v1615 = vsel %vm1584, %v1582, %v938
      %v1616 = vsel %vm1584, %v1583, %v940
      %vm1617 = vcmask 162816
      %v1618 = vsel %vm1617, %v1585, %v1006
      %v1619 = vsel %vm1617, %v1586, %v1008
      %v1620 = vsel %vm1617, %v1587, %v1010
      %v1621 = vsel %vm1617, %v1588, %v1012
      %v1622 = vsel %vm1617, %v1589, %v1014
      %v1623 = vsel %vm1617, %v1590, %v1016
      %v1624 = vsel %vm1617, %v1591, %v1018
      %v1625 = vsel %vm1617, %v1592, %v1020
      %v1626 = vsel %vm1617, %v1593, %v1022
      %v1627 = vsel %vm1617, %v1594, %v1024
      %v1628 = vsel %vm1617, %v1595, %v1026
      %v1629 = vsel %vm1617, %v1596, %v1028
      %v1630 = vsel %vm1617, %v1597, %v1030
      %v1631 = vsel %vm1617, %v1598, %v1032
      %v1632 = vsel %vm1617, %v1599, %v1034
      %v1633 = vsel %vm1617, %v1600, %v1036
      %v1634 = vsel %vm1617, %v1601, %v1038
      %v1635 = vsel %vm1617, %v1602, %v1040
      %v1636 = vsel %vm1617, %v1603, %v1042
      %v1637 = vsel %vm1617, %v1604, %v1044
      %v1638 = vsel %vm1617, %v1605, %v1046
      %v1639 = vsel %vm1617, %v1606, %v1048
      %v1640 = vsel %vm1617, %v1607, %v1050
      %v1641 = vsel %vm1617, %v1608, %v1052
      %v1642 = vsel %vm1617, %v1609, %v1054
      %v1643 = vsel %vm1617, %v1610, %v1056
      %v1644 = vsel %vm1617, %v1611, %v1058
      %v1645 = vsel %vm1617, %v1612, %v1060
      %v1646 = vsel %vm1617, %v1613, %v1062
      %v1647 = vsel %vm1617, %v1614, %v1064
      %v1648 = vsel %vm1617, %v1615, %v1066
      %v1649 = vsel %vm1617, %v1616, %v1068
      %vm1650 = vcmask 195584
      %v1651 = vsel %vm1650, %v1618, %v1134
      %v1652 = vsel %vm1650, %v1619, %v1136
      %v1653 = vsel %vm1650, %v1620, %v1138
      %v1654 = vsel %vm1650, %v1621, %v1140
      %v1655 = vsel %vm1650, %v1622, %v1142
      %v1656 = vsel %vm1650, %v1623, %v1144
      %v1657 = vsel %vm1650, %v1624, %v1146
      %v1658 = vsel %vm1650, %v1625, %v1148
      %v1659 = vsel %vm1650, %v1626, %v1150
      %v1660 = vsel %vm1650, %v1627, %v1152
      %v1661 = vsel %vm1650, %v1628, %v1154
      %v1662 = vsel %vm1650, %v1629, %v1156
      %v1663 = vsel %vm1650, %v1630, %v1158
      %v1664 = vsel %vm1650, %v1631, %v1160
      %v1665 = vsel %vm1650, %v1632, %v1162
      %v1666 = vsel %vm1650, %v1633, %v1164
      %v1667 = vsel %vm1650, %v1634, %v1166
      %v1668 = vsel %vm1650, %v1635, %v1168
      %v1669 = vsel %vm1650, %v1636, %v1170
      %v1670 = vsel %vm1650, %v1637, %v1172
      %v1671 = vsel %vm1650, %v1638, %v1174
      %v1672 = vsel %vm1650, %v1639, %v1176
      %v1673 = vsel %vm1650, %v1640, %v1178
      %v1674 = vsel %vm1650, %v1641, %v1180
      %v1675 = vsel %vm1650, %v1642, %v1182
      %v1676 = vsel %vm1650, %v1643, %v1184
      %v1677 = vsel %vm1650, %v1644, %v1186
      %v1678 = vsel %vm1650, %v1645, %v1188
      %v1679 = vsel %vm1650, %v1646, %v1190
      %v1680 = vsel %vm1650, %v1647, %v1192
      %v1681 = vsel %vm1650, %v1648, %v1194
      %v1682 = vsel %vm1650, %v1649, %v1196
      %vm1683 = vcmask 228352
      %v1684 = vsel %vm1683, %v1651, %v1262
      %v1685 = vsel %vm1683, %v1652, %v1264
      %v1686 = vsel %vm1683, %v1653, %v1266
      %v1687 = vsel %vm1683, %v1654, %v1268
      %v1688 = vsel %vm1683, %v1655, %v1270
      %v1689 = vsel %vm1683, %v1656, %v1272
      %v1690 = vsel %vm1683, %v1657, %v1274
      %v1691 = vsel %vm1683, %v1658, %v1276
      %v1692 = vsel %vm1683, %v1659, %v1278
      %v1693 = vsel %vm1683, %v1660, %v1280
      %v1694 = vsel %vm1683, %v1661, %v1282
      %v1695 = vsel %vm1683, %v1662, %v1284
      %v1696 = vsel %vm1683, %v1663, %v1286
      %v1697 = vsel %vm1683, %v1664, %v1288
      %v1698 = vsel %vm1683, %v1665, %v1290
      %v1699 = vsel %vm1683, %v1666, %v1292
      %v1700 = vsel %vm1683, %v1667, %v1294
      %v1701 = vsel %vm1683, %v1668, %v1296
      %v1702 = vsel %vm1683, %v1669, %v1298
      %v1703 = vsel %vm1683, %v1670, %v1300
      %v1704 = vsel %vm1683, %v1671, %v1302
      %v1705 = vsel %vm1683, %v1672, %v1304
      %v1706 = vsel %vm1683, %v1673, %v1306
      %v1707 = vsel %vm1683, %v1674, %v1308
      %v1708 = vsel %vm1683, %v1675, %v1310
      %v1709 = vsel %vm1683, %v1676, %v1312
      %v1710 = vsel %vm1683, %v1677, %v1314
      %v1711 = vsel %vm1683, %v1678, %v1316
      %v1712 = vsel %vm1683, %v1679, %v1318
      %v1713 = vsel %vm1683, %v1680, %v1320
      %v1714 = vsel %vm1683, %v1681, %v1322
      %v1715 = vsel %vm1683, %v1682, %v1324
      %vm1716 = vcmask 261120
      %v1717 = vsel %vm1716, %v1684, %v1390
      %v1718 = vsel %vm1716, %v1685, %v1392
      %v1719 = vsel %vm1716, %v1686, %v1394
      %v1720 = vsel %vm1716, %v1687, %v1396
      %v1721 = vsel %vm1716, %v1688, %v1398
      %v1722 = vsel %vm1716, %v1689, %v1400
      %v1723 = vsel %vm1716, %v1690, %v1402
      %v1724 = vsel %vm1716, %v1691, %v1404
      %v1725 = vsel %vm1716, %v1692, %v1406
      %v1726 = vsel %vm1716, %v1693, %v1408
      %v1727 = vsel %vm1716, %v1694, %v1410
      %v1728 = vsel %vm1716, %v1695, %v1412
      %v1729 = vsel %vm1716, %v1696, %v1414
      %v1730 = vsel %vm1716, %v1697, %v1416
      %v1731 = vsel %vm1716, %v1698, %v1418
      %v1732 = vsel %vm1716, %v1699, %v1420
      %v1733 = vsel %vm1716, %v1700, %v1422
      %v1734 = vsel %vm1716, %v1701, %v1424
      %v1735 = vsel %vm1716, %v1702, %v1426
      %v1736 = vsel %vm1716, %v1703, %v1428
      %v1737 = vsel %vm1716, %v1704, %v1430
      %v1738 = vsel %vm1716, %v1705, %v1432
      %v1739 = vsel %vm1716, %v1706, %v1434
      %v1740 = vsel %vm1716, %v1707, %v1436
      %v1741 = vsel %vm1716, %v1708, %v1438
      %v1742 = vsel %vm1716, %v1709, %v1440
      %v1743 = vsel %vm1716, %v1710, %v1442
      %v1744 = vsel %vm1716, %v1711, %v1444
      %v1745 = vsel %vm1716, %v1712, %v1446
      %v1746 = vsel %vm1716, %v1713, %v1448
      %v1747 = vsel %vm1716, %v1714, %v1450
      %v1748 = vsel %vm1716, %v1715, %v1452
      %v1749 = vld [vmem:[%s1] sm:$0xff]
      %v1750 = vld [vmem:[%s1 + $0x8] sm:$0xff]
      %v1751 = vld [vmem:[%s1 + $0x10] sm:$0xff]
      %v1752 = vld [vmem:[%s1 + $0x18] sm:$0xff]
      %v1753 = vld [vmem:[%s1 + $0x20] sm:$0xf]
      %v1754 = vld [vmem:[%s2] sm:$0x1]
      %v1756 = vlaneseq
      %v1757 = vshrl.u32 %v1756, 7
      %v1758 = vsub.s32 0, %v1757
      %v1759 = vrot.slane %v1754, %v1758
      %vm1761 = vcmask 293888
      %v1763 = vsel %vm1761, %v1717, 0
      %v1766 = vsel %vm1761, %v1718, 0
      %v1769 = vsel %vm1761, %v1719, 0
      %v1772 = vsel %vm1761, %v1720, 0
      %v1775 = vsel %vm1761, %v1721, 0
      %v1778 = vsel %vm1761, %v1722, 0
      %v1781 = vsel %vm1761, %v1723, 0
      %v1784 = vsel %vm1761, %v1724, 0
      %v1787 = vsel %vm1761, %v1725, 0
      %v1790 = vsel %vm1761, %v1726, 0
      %v1793 = vsel %vm1761, %v1727, 0
      %v1796 = vsel %vm1761, %v1728, 0
      %v1799 = vsel %vm1761, %v1729, 0
      %v1802 = vsel %vm1761, %v1730, 0
      %v1805 = vsel %vm1761, %v1731, 0
      %v1808 = vsel %vm1761, %v1732, 0
      %v1811 = vsel %vm1761, %v1733, 0
      %v1814 = vsel %vm1761, %v1734, 0
      %v1817 = vsel %vm1761, %v1735, 0
      %v1820 = vsel %vm1761, %v1736, 0
      %v1823 = vsel %vm1761, %v1737, 0
      %v1826 = vsel %vm1761, %v1738, 0
      %v1829 = vsel %vm1761, %v1739, 0
      %v1832 = vsel %vm1761, %v1740, 0
      %v1835 = vsel %vm1761, %v1741, 0
      %v1838 = vsel %vm1761, %v1742, 0
      %v1841 = vsel %vm1761, %v1743, 0
      %v1844 = vsel %vm1761, %v1744, 0
      %v1847 = vsel %vm1761, %v1745, 0
      %v1850 = vsel %vm1761, %v1746, 0
      %v1853 = vsel %vm1761, %v1747, 0
      %v1856 = vsel %vm1761, %v1748, 0
      %vm1858 = vcmask 1043456
      %v1860 = vsel %vm1858, %v1753, 0
      %1862 = vmatprep.subr.mxu0 0.0
      %1863 = vmatpush1.msra.mxu0 %v1749
      %1864 = vmatprep.subr.mxu0 0.0
      %1865 = vmatpush1.msra.mxu0 %v1750
      %1866 = vmatprep.subr.mxu0 0.0
      %1867 = vmatpush1.msra.mxu0 %v1751
      %1868 = vmatprep.subr.mxu0 0.0
      %1869 = vmatpush1.msra.mxu0 %v1752
      %1870 = vmatprep.subr.mxu0 0.0
      %1871 = vmatpush1.msra.mxu0 %v1860
      %1872 = vmatprep.subr.mxu0 0.0
      %1873 = vmatpush1.msra.mxu0 0.0
      %1874 = vmatprep.subr.mxu0 0.0
      %1875 = vmatpush1.msra.mxu0 0.0
      %1876 = vmatprep.subr.mxu0 0.0
      %1877 = vmatpush1.msra.mxu0 0.0
      %1878 = vmatprep.subr.mxu0 0.0
      %1879 = vmatpush1.msra.mxu0 0.0
      %1880 = vmatprep.subr.mxu0 0.0
      %1881 = vmatpush1.msra.mxu0 0.0
      %1882 = vmatprep.subr.mxu0 0.0
      %1883 = vmatpush1.msra.mxu0 0.0
      %1884 = vmatprep.subr.mxu0 0.0
      %1885 = vmatpush1.msra.mxu0 0.0
      %1886 = vmatprep.subr.mxu0 0.0
      %1887 = vmatpush1.msra.mxu0 0.0
      %1888 = vmatprep.subr.mxu0 0.0
      %1889 = vmatpush1.msra.mxu0 0.0
      %1890 = vmatprep.subr.mxu0 0.0
      %1891 = vmatpush1.msra.mxu0 0.0
      %1892 = vmatprep.subr.mxu0 0.0
      %1893 = vmatpush1.msra.mxu0 0.0
      %1894 = vmatprep.subr.mxu0 0.0
      %1895 = vmatpush1.msra.mxu0 0.0
      %1896 = vmatprep.subr.mxu0 0.0
      %1897 = vmatpush1.msra.mxu0 0.0
      %1898 = vmatprep.subr.mxu0 0.0
      %1899 = vmatpush1.msra.mxu0 0.0
      %1900 = vmatprep.subr.mxu0 0.0
      %1901 = vmatpush1.msra.mxu0 0.0
      %1902 = vmatprep.subr.mxu0 0.0
      %1903 = vmatpush1.msra.mxu0 0.0
      %1904 = vmatprep.subr.mxu0 0.0
      %1905 = vmatpush1.msra.mxu0 0.0
      %1906 = vmatprep.subr.mxu0 0.0
      %1907 = vmatpush1.msra.mxu0 0.0
      %1908 = vmatprep.subr.mxu0 0.0
      %1909 = vmatpush1.msra.mxu0 0.0
      %1910 = vmatprep.subr.mxu0 0.0
      %1911 = vmatpush1.msra.mxu0 0.0
      %1912 = vmatprep.subr.mxu0 0.0
      %1913 = vmatpush1.msra.mxu0 0.0
      %1914 = vmatprep.subr.mxu0 0.0
      %1915 = vmatpush1.msra.mxu0 0.0
      %1916 = vmatprep.subr.mxu0 0.0
      %1917 = vmatpush1.msra.mxu0 0.0
      %1918 = vmatprep.subr.mxu0 0.0
      %1919 = vmatpush1.msra.mxu0 0.0
      %1920 = vmatprep.subr.mxu0 0.0
      %1921 = vmatpush1.msra.mxu0 0.0
      %1922 = vmatprep.subr.mxu0 0.0
      %1923 = vmatpush1.msra.mxu0 0.0
      %1924 = vmatprep.subr.mxu0 0.0
      %1925 = vmatpush1.msra.mxu0 0.0
      %1926 = vmatprep.mubr.f32.mxu0 0.0
      %1927 = vmatmul.mubr.f32.gmra.mrb[0].mxu0 %v1763
      %v1928 = vpop.f32.mrb[0].mxu0
      %v1929 = vadd.f32 %v1759, %v1928
      %v1930 = vpop.f32.mrb[0].mxu0
      %1931 = vmatprep.mubr.f32.mxu0 0.0
      %1932 = vmatmul.mubr.f32.gmra.mrb[0].mxu0 %v1766
      %v1933 = vpop.f32.mrb[0].mxu0
      %v1934 = vadd.f32 %v1759, %v1933
      %v1935 = vpop.f32.mrb[0].mxu0
      %1936 = vmatprep.mubr.f32.mxu0 0.0
      %1937 = vmatmul.mubr.f32.gmra.mrb[0].mxu0 %v1769
      %v1938 = vpop.f32.mrb[0].mxu0
      %v1939 = vadd.f32 %v1759, %v1938
      %v1940 = vpop.f32.mrb[0].mxu0
      %1941 = vmatprep.mubr.f32.mxu0 0.0
      %1942 = vmatmul.mubr.f32.gmra.mrb[0].mxu0 %v1772
      %v1943 = vpop.f32.mrb[0].mxu0
      %v1944 = vadd.f32 %v1759, %v1943
      %v1945 = vpop.f32.mrb[0].mxu0
      %1946 = vmatprep.mubr.f32.mxu0 0.0
      %1947 = vmatmul.mubr.f32.gmra.mrb[0].mxu0 %v1775
      %v1948 = vpop.f32.mrb[0].mxu0
      %v1949 = vadd.f32 %v1759, %v1948
      %v1950 = vpop.f32.mrb[0].mxu0
      %1951 = vmatprep.mubr.f32.mxu0 0.0
      %1952 = vmatmul.mubr.f32.gmra.mrb[0].mxu0 %v1778
      %v1953 = vpop.f32.mrb[0].mxu0
      %v1954 = vadd.f32 %v1759, %v1953
      %v1955 = vpop.f32.mrb[0].mxu0
      %1956 = vmatprep.mubr.f32.mxu0 0.0
      %1957 = vmatmul.mubr.f32.gmra.mrb[0].mxu0 %v1781
      %v1958 = vpop.f32.mrb[0].mxu0
      %v1959 = vadd.f32 %v1759, %v1958
      %v1960 = vpop.f32.mrb[0].mxu0
      %1961 = vmatprep.mubr.f32.mxu0 0.0
      %1962 = vmatmul.mubr.f32.gmra.mrb[0].mxu0 %v1784
      %v1963 = vpop.f32.mrb[0].mxu0
      %v1964 = vadd.f32 %v1759, %v1963
      %v1965 = vpop.f32.mrb[0].mxu0
      %1966 = vmatprep.mubr.f32.mxu0 0.0
      %1967 = vmatmul.mubr.f32.gmra.mrb[0].mxu0 %v1787
      %v1968 = vpop.f32.mrb[0].mxu0
      %v1969 = vadd.f32 %v1759, %v1968
      %v1970 = vpop.f32.mrb[0].mxu0
      %1971 = vmatprep.mubr.f32.mxu0 0.0
      %1972 = vmatmul.mubr.f32.gmra.mrb[0].mxu0 %v1790
      %v1973 = vpop.f32.mrb[0].mxu0
      %v1974 = vadd.f32 %v1759, %v1973
      %v1975 = vpop.f32.mrb[0].mxu0
      %1976 = vmatprep.mubr.f32.mxu0 0.0
      %1977 = vmatmul.mubr.f32.gmra.mrb[0].mxu0 %v1793
      %v1978 = vpop.f32.mrb[0].mxu0
      %v1979 = vadd.f32 %v1759, %v1978
      %v1980 = vpop.f32.mrb[0].mxu0
      %1981 = vmatprep.mubr.f32.mxu0 0.0
      %1982 = vmatmul.mubr.f32.gmra.mrb[0].mxu0 %v1796
      %v1983 = vpop.f32.mrb[0].mxu0
      %v1984 = vadd.f32 %v1759, %v1983
      %v1985 = vpop.f32.mrb[0].mxu0
      %1986 = vmatprep.mubr.f32.mxu0 0.0
      %1987 = vmatmul.mubr.f32.gmra.mrb[0].mxu0 %v1799
      %v1988 = vpop.f32.mrb[0].mxu0
      %v1989 = vadd.f32 %v1759, %v1988
      %v1990 = vpop.f32.mrb[0].mxu0
      %1991 = vmatprep.mubr.f32.mxu0 0.0
      %1992 = vmatmul.mubr.f32.gmra.mrb[0].mxu0 %v1802
      %v1993 = vpop.f32.mrb[0].mxu0
      %v1994 = vadd.f32 %v1759, %v1993
      %v1995 = vpop.f32.mrb[0].mxu0
      %1996 = vmatprep.mubr.f32.mxu0 0.0
      %1997 = vmatmul.mubr.f32.gmra.mrb[0].mxu0 %v1805
      %v1998 = vpop.f32.mrb[0].mxu0
      %v1999 = vadd.f32 %v1759, %v1998
      %v2000 = vpop.f32.mrb[0].mxu0
      %2001 = vmatprep.mubr.f32.mxu0 0.0
      %2002 = vmatmul.mubr.f32.gmra.mrb[0].mxu0 %v1808
      %v2003 = vpop.f32.mrb[0].mxu0
      %v2004 = vadd.f32 %v1759, %v2003
      %v2005 = vpop.f32.mrb[0].mxu0
      %2006 = vmatprep.mubr.f32.mxu0 0.0
      %2007 = vmatmul.mubr.f32.gmra.mrb[0].mxu0 %v1811
      %v2008 = vpop.f32.mrb[0].mxu0
      %v2009 = vadd.f32 %v1759, %v2008
      %v2010 = vpop.f32.mrb[0].mxu0
      %2011 = vmatprep.mubr.f32.mxu0 0.0
      %2012 = vmatmul.mubr.f32.gmra.mrb[0].mxu0 %v1814
      %v2013 = vpop.f32.mrb[0].mxu0
      %v2014 = vadd.f32 %v1759, %v2013
      %v2015 = vpop.f32.mrb[0].mxu0
      %2016 = vmatprep.mubr.f32.mxu0 0.0
      %2017 = vmatmul.mubr.f32.gmra.mrb[0].mxu0 %v1817
      %v2018 = vpop.f32.mrb[0].mxu0
      %v2019 = vadd.f32 %v1759, %v2018
      %v2020 = vpop.f32.mrb[0].mxu0
      %2021 = vmatprep.mubr.f32.mxu0 0.0
      %2022 = vmatmul.mubr.f32.gmra.mrb[0].mxu0 %v1820
      %v2023 = vpop.f32.mrb[0].mxu0
      %v2024 = vadd.f32 %v1759, %v2023
      %v2025 = vpop.f32.mrb[0].mxu0
      %2026 = vmatprep.mubr.f32.mxu0 0.0
      %2027 = vmatmul.mubr.f32.gmra.mrb[0].mxu0 %v1823
      %v2028 = vpop.f32.mrb[0].mxu0
      %v2029 = vadd.f32 %v1759, %v2028
      %v2030 = vpop.f32.mrb[0].mxu0
      %2031 = vmatprep.mubr.f32.mxu0 0.0
      %2032 = vmatmul.mubr.f32.gmra.mrb[0].mxu0 %v1826
      %v2033 = vpop.f32.mrb[0].mxu0
      %v2034 = vadd.f32 %v1759, %v2033
      %v2035 = vpop.f32.mrb[0].mxu0
      %2036 = vmatprep.mubr.f32.mxu0 0.0
      %2037 = vmatmul.mubr.f32.gmra.mrb[0].mxu0 %v1829
      %v2038 = vpop.f32.mrb[0].mxu0
      %v2039 = vadd.f32 %v1759, %v2038
      %v2040 = vpop.f32.mrb[0].mxu0
      %2041 = vmatprep.mubr.f32.mxu0 0.0
      %2042 = vmatmul.mubr.f32.gmra.mrb[0].mxu0 %v1832
      %v2043 = vpop.f32.mrb[0].mxu0
      %v2044 = vadd.f32 %v1759, %v2043
      %v2045 = vpop.f32.mrb[0].mxu0
      %2046 = vmatprep.mubr.f32.mxu0 0.0
      %2047 = vmatmul.mubr.f32.gmra.mrb[0].mxu0 %v1835
      %v2048 = vpop.f32.mrb[0].mxu0
      %v2049 = vadd.f32 %v1759, %v2048
      %v2050 = vpop.f32.mrb[0].mxu0
      %2051 = vmatprep.mubr.f32.mxu0 0.0
      %2052 = vmatmul.mubr.f32.gmra.mrb[0].mxu0 %v1838
      %v2053 = vpop.f32.mrb[0].mxu0
      %v2054 = vadd.f32 %v1759, %v2053
      %v2055 = vpop.f32.mrb[0].mxu0
      %2056 = vmatprep.mubr.f32.mxu0 0.0
      %2057 = vmatmul.mubr.f32.gmra.mrb[0].mxu0 %v1841
      %v2058 = vpop.f32.mrb[0].mxu0
      %v2059 = vadd.f32 %v1759, %v2058
      %v2060 = vpop.f32.mrb[0].mxu0
      %2061 = vmatprep.mubr.f32.mxu0 0.0
      %2062 = vmatmul.mubr.f32.gmra.mrb[0].mxu0 %v1844
      %v2063 = vpop.f32.mrb[0].mxu0
      %v2064 = vadd.f32 %v1759, %v2063
      %v2065 = vpop.f32.mrb[0].mxu0
      %2066 = vmatprep.mubr.f32.mxu0 0.0
      %2067 = vmatmul.mubr.f32.gmra.mrb[0].mxu0 %v1847
      %v2068 = vpop.f32.mrb[0].mxu0
      %v2069 = vadd.f32 %v1759, %v2068
      %v2070 = vpop.f32.mrb[0].mxu0
      %2071 = vmatprep.mubr.f32.mxu0 0.0
      %2072 = vmatmul.mubr.f32.gmra.mrb[0].mxu0 %v1850
      %v2073 = vpop.f32.mrb[0].mxu0
      %v2074 = vadd.f32 %v1759, %v2073
      %v2075 = vpop.f32.mrb[0].mxu0
      %2076 = vmatprep.mubr.f32.mxu0 0.0
      %2077 = vmatmul.mubr.f32.gmra.mrb[0].mxu0 %v1853
      %v2078 = vpop.f32.mrb[0].mxu0
      %v2079 = vadd.f32 %v1759, %v2078
      %v2080 = vpop.f32.mrb[0].mxu0
      %2081 = vmatprep.mubr.f32.mxu0 0.0
      %2082 = vmatmul.mubr.f32.gmra.mrb[0].mxu0 %v1856
      %v2083 = vpop.f32.mrb[0].mxu0
      %v2084 = vadd.f32 %v1759, %v2083
      %v2085 = vpop.f32.mrb[0].mxu0
      %2086 = vdwg.mxu0
      %v2087 = vmax.f32 %v1929, 0.0
      %v2088 = vmax.f32 %v1934, 0.0
      %v2089 = vmax.f32 %v1939, 0.0
      %v2090 = vmax.f32 %v1944, 0.0
      %v2091 = vmax.f32 %v1949, 0.0
      %v2092 = vmax.f32 %v1954, 0.0
      %v2093 = vmax.f32 %v1959, 0.0
      %v2094 = vmax.f32 %v1964, 0.0
      %v2095 = vmax.f32 %v1969, 0.0
      %v2096 = vmax.f32 %v1974, 0.0
      %v2097 = vmax.f32 %v1979, 0.0
      %v2098 = vmax.f32 %v1984, 0.0
      %v2099 = vmax.f32 %v1989, 0.0
      %v2100 = vmax.f32 %v1994, 0.0
      %v2101 = vmax.f32 %v1999, 0.0
      %v2102 = vmax.f32 %v2004, 0.0
      %v2103 = vmax.f32 %v2009, 0.0
      %v2104 = vmax.f32 %v2014, 0.0
      %v2105 = vmax.f32 %v2019, 0.0
      %v2106 = vmax.f32 %v2024, 0.0
      %v2107 = vmax.f32 %v2029, 0.0
      %v2108 = vmax.f32 %v2034, 0.0
      %v2109 = vmax.f32 %v2039, 0.0
      %v2110 = vmax.f32 %v2044, 0.0
      %v2111 = vmax.f32 %v2049, 0.0
      %v2112 = vmax.f32 %v2054, 0.0
      %v2113 = vmax.f32 %v2059, 0.0
      %v2114 = vmax.f32 %v2064, 0.0
      %v2115 = vmax.f32 %v2069, 0.0
      %v2116 = vmax.f32 %v2074, 0.0
      %v2117 = vmax.f32 %v2079, 0.0
      %v2118 = vmax.f32 %v2084, 0.0
      %2119 = vst.msk [vmem:[%s170] sm:$0xff] %vm1485, %v2087
      %2120 = vst.msk [vmem:[%s170 + $0x8] sm:$0xff] %vm1485, %v2088
      %2121 = vst.msk [vmem:[%s170 + $0x10] sm:$0xff] %vm1485, %v2089
      %2122 = vst.msk [vmem:[%s170 + $0x18] sm:$0xff] %vm1485, %v2090
      %2123 = vst.msk [vmem:[%s170 + $0x20] sm:$0xff] %vm1485, %v2091
      %2124 = vst.msk [vmem:[%s170 + $0x28] sm:$0xff] %vm1485, %v2092
      %2125 = vst.msk [vmem:[%s170 + $0x30] sm:$0xff] %vm1485, %v2093
      %2126 = vst.msk [vmem:[%s170 + $0x38] sm:$0xff] %vm1485, %v2094
      %2127 = vst.msk [vmem:[%s170 + $0x40] sm:$0xff] %vm1485, %v2095
      %2128 = vst.msk [vmem:[%s170 + $0x48] sm:$0xff] %vm1485, %v2096
      %2129 = vst.msk [vmem:[%s170 + $0x50] sm:$0xff] %vm1485, %v2097
      %2130 = vst.msk [vmem:[%s170 + $0x58] sm:$0xff] %vm1485, %v2098
      %2131 = vst.msk [vmem:[%s170 + $0x60] sm:$0xff] %vm1485, %v2099
      %2132 = vst.msk [vmem:[%s170 + $0x68] sm:$0xff] %vm1485, %v2100
      %2133 = vst.msk [vmem:[%s170 + $0x70] sm:$0xff] %vm1485, %v2101
      %2134 = vst.msk [vmem:[%s170 + $0x78] sm:$0xff] %vm1485, %v2102
      %2135 = vst.msk [vmem:[%s170 + $0x80] sm:$0xff] %vm1485, %v2103
      %2136 = vst.msk [vmem:[%s170 + $0x88] sm:$0xff] %vm1485, %v2104
      %2137 = vst.msk [vmem:[%s170 + $0x90] sm:$0xff] %vm1485, %v2105
      %2138 = vst.msk [vmem:[%s170 + $0x98] sm:$0xff] %vm1485, %v2106
      %2139 = vst.msk [vmem:[%s170 + $0xa0] sm:$0xff] %vm1485, %v2107
      %2140 = vst.msk [vmem:[%s170 + $0xa8] sm:$0xff] %vm1485, %v2108
      %2141 = vst.msk [vmem:[%s170 + $0xb0] sm:$0xff] %vm1485, %v2109
      %2142 = vst.msk [vmem:[%s170 + $0xb8] sm:$0xff] %vm1485, %v2110
      %2143 = vst.msk [vmem:[%s170 + $0xc0] sm:$0xff] %vm1485, %v2111
      %2144 = vst.msk [vmem:[%s170 + $0xc8] sm:$0xff] %vm1485, %v2112
      %2145 = vst.msk [vmem:[%s170 + $0xd0] sm:$0xff] %vm1485, %v2113
      %2146 = vst.msk [vmem:[%s170 + $0xd8] sm:$0xff] %vm1485, %v2114
      %2147 = vst.msk [vmem:[%s170 + $0xe0] sm:$0xff] %vm1485, %v2115
      %2148 = vst.msk [vmem:[%s170 + $0xe8] sm:$0xff] %vm1485, %v2116
      %2149 = vst.msk [vmem:[%s170 + $0xf0] sm:$0xff] %vm1485, %v2117
      %2150 = vst.msk [vmem:[%s170 + $0xf8] sm:$0xff] %vm1485, %v2118
      %p2151 = scmp.lt.s32.totalorder %s14, 1
      %s2152 = scalar_select %p2151, %s14, 1
      %s2153 = smul.addr %s2152, 32
      %s2154 = smul.addr %s2153, 8
      %s2155 = scalar_lea.vmem %s3, %s2154
      // Predicated region
      $region33: #{bottleneck_forward.4} parent=31 // pred_check
        %p2156 = pneg %p100
      $region34: #{bottleneck_forward.4} parent=31 // pred_check_branch
        %2158 = sbr.rel (%p2156) target = $region36
      $region35: #{bottleneck_forward.4} parent=31 // pred_region
        _
      $region36: #{bottleneck_forward.4} parent=31 // pred_fallthru
        _
    $region32: #{bottleneck_forward.4} parent=5 // pred_fallthru
      _
    %p2159 = scmp.le.s32.totalorder 2, %s9
    // Predicated region
    $region37: #{bottleneck_forward.4} parent=5 // pred_check
      %p2160 = pneg %p2159
    $region38: #{bottleneck_forward.4} parent=5 // pred_check_branch
      %2162 = sbr.rel (%p2160) target = $region40
    $region39: #{bottleneck_forward.4} parent=5 // pred_region
      %s2163 = ssub.s32 %s9, 2
      // Predicated region
      $region41: #{bottleneck_forward.4} parent=39 // pred_check
        %p2164 = pneg %p106
      $region42: #{bottleneck_forward.4} parent=39 // pred_check_branch
        %2166 = sbr.rel (%p2164) target = $region44
      $region43: #{bottleneck_forward.4} parent=39 // pred_region
        %p2167 = scmp.lt.s32.totalorder %s15, 1
        %s2168 = scalar_select %p2167, %s15, 1
        %s2169 = smul.addr %s2168, 32
        %s2170 = smul.addr %s2169, 8
        %s2171 = scalar_lea.vmem %s3, %s2170
      $region44: #{bottleneck_forward.4} parent=39 // pred_fallthru
        _
    $region40: #{bottleneck_forward.4} parent=5 // pred_fallthru
      _
  $region6: #{bottleneck_forward.4} parent=0 // loop_footer
    %s13 = sadd.s32 1, %s9
  $region7: #{bottleneck_forward.4} parent=0 // loop_footer_branch
    %8 = sbr.rel target = $region3
  $region8: #{bottleneck_forward.4} parent=0 // loop_exit
    _

</llo_original>
